<compile_context>
chip_gen: v6e
topology: v6e:2x2x1
jax: 0.10.0
libtpu: 0.0.40
codegen_flags: <defaults>
</compile_context>

<pallas_src>
import functools
import math

import jax
import jax.numpy as jnp
from jax import lax
from jax.experimental import pallas as pl
from jax.experimental.pallas import tpu as pltpu

# Softplus bias so that softplus(0 + BIAS) == 1.0  (torchrl "biased_softplus_1.0")
_BIASED_SOFTPLUS_BIAS = math.log(math.exp(1.0) - 1.0)
_SCALE_LB = 1e-4

_IN_PAD = 16     # input features padded 11 -> 16
_WIDTH = 128     # all activations / weight columns padded to 128 lanes

# Packed weight-slab row offsets (all multiples of 8 sublanes).
_R_W0 = 0        # [16, 128]  Linear(11,64):  rows 0..10 / cols 0..63 real
_R_WREL1 = 16    # [128,128]  GraphConv1 lin_rel : [0:64, 0:64] real
_R_WROOT1 = 144  # [128,128]  GraphConv1 lin_root
_R_WREL2 = 272   # [128,128]  GraphConv2 lin_rel
_R_WROOT2 = 400  # [128,128]  GraphConv2 lin_root
_R_W3 = 528      # [128,128]  Linear(64,16): [0:64, 0:16] real
_W_ROWS = 656


def actor_kernel(gt, n, src_ref, dst_ref, x_ref, w_ref, b_ref, out_ref):
    """One grid step = one group of `gt` graphs, each with `n` nodes."""
    f32 = jnp.float32
    cdt = jnp.bfloat16
    gn = gt * n                      # nodes in the group
    ge = src_ref.shape[-1]           # edges in the group

    # ---- block-diagonal adjacency of the group, built in-kernel (no HBM one-hots)
    src = src_ref[0]                 # [1, ge] int32, in-group global node ids
    dst = dst_ref[0]                 # [1, ge] int32
    node_iota = lax.broadcasted_iota(jnp.int32, (gn, ge), 0)
    d_oh = (node_iota == dst).astype(cdt)          # [gn, ge]  dst one-hot
    s_oh = (node_iota == src).astype(cdt)          # [gn, ge]  src one-hot
    # adj[i, j] = #edges j -> i (duplicates accumulate); cross-graph entries are 0
    adj = lax.dot_general(d_oh, s_oh, (((1,), (1,)), ((), ())),
                          preferred_element_type=f32)          # [gn, gn]
    adj = adj.astype(cdt)            # small integer counts: exact in bf16

    # ---- packed parameters (static, sublane-tile-aligned slices)
    w0 = w_ref[_R_W0:_R_W0 + _IN_PAD, :]
    wr1 = w_ref[_R_WREL1:_R_WREL1 + _WIDTH, :]
    ws1 = w_ref[_R_WROOT1:_R_WROOT1 + _WIDTH, :]
    wr2 = w_ref[_R_WREL2:_R_WREL2 + _WIDTH, :]
    ws2 = w_ref[_R_WROOT2:_R_WROOT2 + _WIDTH, :]
    w3 = w_ref[_R_W3:_R_W3 + _WIDTH, :]
    b0 = b_ref[0:1, :]
    b1 = b_ref[1:2, :]
    b2 = b_ref[2:3, :]
    b3 = b_ref[3:4, :]

    # ---- feature path, M = gt*n rows (columns 64..127 are zero by construction)
    x = x_ref[...]                                                  # [gn, 16] bf16
    h = jnp.dot(x, w0, preferred_element_type=f32) + b0             # Linear(11,64)

    # GraphConv 1: tanh( (adj @ h) @ Wrel + h @ Wroot + b )   (no concat, 3 matmuls)
    hb = h.astype(cdt)
    agg = jnp.dot(adj, hb, preferred_element_type=f32).astype(cdt)
    h = jnp.tanh(jnp.dot(agg, wr1, preferred_element_type=f32)
                 + jnp.dot(hb, ws1, preferred_element_type=f32) + b1)

    # GraphConv 2
    hb = h.astype(cdt)
    agg = jnp.dot(adj, hb, preferred_element_type=f32).astype(cdt)
    h = jnp.tanh(jnp.dot(agg, wr2, preferred_element_type=f32)
                 + jnp.dot(hb, ws2, preferred_element_type=f32) + b2)

    # Linear(64,16) + tanh (output cols 16..127 zero-padded -> tanh(0) = 0)
    h = jnp.tanh(jnp.dot(h.astype(cdt), w3, preferred_element_type=f32) + b3)

    # ---- global_mean_pool per graph via a [gt, gn] segment matrix on the MXU
    g_iota = lax.broadcasted_iota(jnp.int32, (gt, gn), 0)
    r_iota = lax.broadcasted_iota(jnp.int32, (gt, gn), 1)
    pool = jnp.logical_and(r_iota >= g_iota * n,
                           r_iota < (g_iota + 1) * n).astype(cdt)   # [gt, gn]
    pooled = jnp.dot(pool, h.astype(cdt),
                     preferred_element_type=f32) * (1.0 / n)        # [gt, 128]

    # ---- NormalParamExtractor: lanes 0..7 = loc, lanes 8..15 = biased softplus
    z = pooled + _BIASED_SOFTPLUS_BIAS
    softplus = jnp.maximum(z, 0.0) + jnp.log1p(jnp.exp(-jnp.abs(z)))
    scale = jnp.maximum(softplus, _SCALE_LB)
    lane = lax.broadcasted_iota(jnp.int32, (gt, _WIDTH), 1)
    out_ref[...] = jnp.where(lane < 8, pooled,
                             jnp.where(lane < 16, scale, 0.0))      # [gt, 128]


def pack_params(params):
    """Pack the 11 parameter arrays into one bf16 weight slab + one f32 bias slab."""
    slab = jnp.zeros((_W_ROWS, _WIDTH), jnp.float32)
    slab = slab.at[_R_W0:_R_W0 + 11, :64].set(params["w0"])
    slab = slab.at[_R_WREL1:_R_WREL1 + 64, :64].set(params["wrel1"])
    slab = slab.at[_R_WROOT1:_R_WROOT1 + 64, :64].set(params["wroot1"])
    slab = slab.at[_R_WREL2:_R_WREL2 + 64, :64].set(params["wrel2"])
    slab = slab.at[_R_WROOT2:_R_WROOT2 + 64, :64].set(params["wroot2"])
    slab = slab.at[_R_W3:_R_W3 + 64, :16].set(params["w3"])
    w_packed = slab.astype(jnp.bfloat16)

    bias = jnp.zeros((4, _WIDTH), jnp.float32)
    bias = bias.at[0, :64].set(params["b0"][0])
    bias = bias.at[1, :64].set(params["brel1"][0])
    bias = bias.at[2, :64].set(params["brel2"][0])
    bias = bias.at[3, :16].set(params["b3"][0])
    return w_packed, bias


def _choose_group_size(bsz, n, max_rows=256):
    """Largest divisor Gt of bsz with Gt*N <= max_rows (targets MXU M>=256)."""
    best = 1
    for g in range(1, bsz + 1):
        if bsz % g == 0 and g * n <= max_rows:
            best = g
    return best


def multinode_actor_forward_batched(x, edge_index, w_packed, b_packed,
                                    group_size=None):
    """Batched path (uniform-size graphs).
    x: [B, N, 11] f32, edge_index: [B, 2, E] int32 (row0=src, row1=dst).
    Returns (loc, scale), each [B, 8]."""
    bsz, n, f = x.shape
    e = edge_index.shape[-1]
    gt = _choose_group_size(bsz, n) if group_size is None else group_size
    assert bsz % gt == 0, "batch must be divisible by the graph group size"
    num_groups = bsz // gt
    gn, ge = gt * n, gt * e

    # Node features: pad 11 -> 16 lanes, flatten graphs, bf16 matmul operands.
    x_p = jnp.pad(x.astype(jnp.float32), ((0, 0), (0, 0), (0, _IN_PAD - f)))
    x_p = x_p.reshape(bsz * n, _IN_PAD).astype(jnp.bfloat16)

    # Edge lists -> in-group global node ids (graph l of a group owns rows l*n..).
    offs = (jnp.arange(bsz, dtype=jnp.int32) % gt) * n
    eg = edge_index.astype(jnp.int32) + offs[:, None, None]
    src = eg[:, 0, :].reshape(num_groups, 1, ge)
    dst = eg[:, 1, :].reshape(num_groups, 1, ge)

    # VMEM budget (per step, double-buffered inputs + in-kernel temporaries).
    block_bytes = (2 * ge * 4 + gn * _IN_PAD * 2 + _W_ROWS * _WIDTH * 2
                   + 4 * _WIDTH * 4 + gt * _WIDTH * 4)
    interm_bytes = 2 * gn * ge * 2 + 2 * gn * gn * 4 + 8 * gn * _WIDTH * 4
    vmem_limit = int(min(48 * 1024 * 1024,
                         max(8 * 1024 * 1024, 2 * block_bytes + interm_bytes)))

    per_group_flops = (2 * gn * ge * gn                        # adjacency
                       + 2 * gn * _IN_PAD * _WIDTH             # Linear(11,64)
                       + 2 * (2 * gn * gn * _WIDTH + 4 * gn * _WIDTH * _WIDTH)
                       + 2 * gn * _WIDTH * _WIDTH              # Linear(64,16)
                       + 2 * gt * gn * _WIDTH)                 # mean pool
    per_group_trans = 3 * gn * _WIDTH + 2 * gt * _WIDTH
    bytes_accessed = (num_groups * (2 * ge * 4 + gn * _IN_PAD * 2 + gt * _WIDTH * 4)
                      + _W_ROWS * _WIDTH * 2 + 4 * _WIDTH * 4)

    # TODO(synk): on v7x, add an explicit 2-TensorCore split (pltpu.CORE_PARALLEL /
    # pl.core_map over create_tensorcore_mesh) instead of relying on "parallel".
    # TODO(synk): if the per-step input DMAs show up as exposed latency, add
    # pipeline_mode=pl.Buffered(3) on the src/dst/x BlockSpecs and sweep.
    out = pl.pallas_call(
        functools.partial(actor_kernel, gt, n),
        out_shape=jax.ShapeDtypeStruct((bsz, _WIDTH), jnp.float32),
        grid_spec=pltpu.PrefetchScalarGridSpec(
            num_scalar_prefetch=0,
            grid=(num_groups,),
            in_specs=[
                pl.BlockSpec((1, 1, ge), lambda g: (g, 0, 0)),          # src ids
                pl.BlockSpec((1, 1, ge), lambda g: (g, 0, 0)),          # dst ids
                pl.BlockSpec((gn, _IN_PAD), lambda g: (g, 0)),          # node feats
                pl.BlockSpec((_W_ROWS, _WIDTH), lambda g: (0, 0)),      # weights (once)
                pl.BlockSpec((4, _WIDTH), lambda g: (0, 0)),            # biases (once)
            ],
            out_specs=pl.BlockSpec((gt, _WIDTH), lambda g: (g, 0)),     # lane-dense
        ),
        compiler_params=pltpu.CompilerParams(
            dimension_semantics=("parallel",),
            vmem_limit_bytes=vmem_limit),
        cost_estimate=pl.CostEstimate(
            flops=num_groups * per_group_flops,
            transcendentals=num_groups * per_group_trans,
            bytes_accessed=bytes_accessed),
    )(src, dst, x_p, w_packed, b_packed)

    out = out[:, :16]                                                  # [B, 16]
    return out[:, :8], out[:, 8:16]


def multinode_actor_forward(x, edge_index, w_packed, b_packed):
    """Single-Data path of forward(): x [N, 11], edge_index [2, E] -> ([8], [8])."""
    loc, scale = multinode_actor_forward_batched(
        x[None], edge_index[None], w_packed, b_packed, group_size=1)
    # mirrors loc.t().squeeze(-1) / scale.t().squeeze(-1) for a single graph
    return loc[0], scale[0]


def init_params(key):
    ks = jax.random.split(key, 10)

    def uni(k, shape, fan_in):
        bound = 1.0 / math.sqrt(fan_in)
        return jax.random.uniform(k, shape, jnp.float32, -bound, bound)

    return {
        # Linear(11, 64): stored (fan_in, fan_out), y = x @ W + b
        "w0": uni(ks[0], (11, 64), 11), "b0": uni(ks[1], (1, 64), 11),
        # GraphConv(64, 64) #1 (lin_rel has bias, lin_root has none)
        "wrel1": uni(ks[2], (64, 64), 64), "brel1": uni(ks[3], (1, 64), 64),
        "wroot1": uni(ks[4], (64, 64), 64),
        # GraphConv(64, 64) #2
        "wrel2": uni(ks[5], (64, 64), 64), "brel2": uni(ks[6], (1, 64), 64),
        "wroot2": uni(ks[7], (64, 64), 64),
        # Linear(64, 16)
        "w3": uni(ks[8], (64, 16), 64), "b3": uni(ks[9], (1, 16), 64),
    }


def _reference_single(x, edge_index, params):
    """Pure-JAX f32 reference of the original PyG pipeline for one graph."""
    n = x.shape[0]
    src, dst = edge_index[0], edge_index[1]
    adj = jnp.zeros((n, n), jnp.float32).at[dst, src].add(1.0)
    h = x @ params["w0"] + params["b0"]
    h = jnp.tanh((adj @ h) @ params["wrel1"] + params["brel1"] + h @ params["wroot1"])
    h = jnp.tanh((adj @ h) @ params["wrel2"] + params["brel2"] + h @ params["wroot2"])
    h = jnp.tanh(h @ params["w3"] + params["b3"])
    pooled = jnp.mean(h, axis=0, keepdims=True)
    loc = pooled[:, :8]
    z = pooled[:, 8:] + _BIASED_SOFTPLUS_BIAS
    scale = jnp.maximum(jnp.logaddexp(z, 0.0), _SCALE_LB)
    return loc[0], scale[0]


# TODO(synk): Batch.from_data_list over heterogeneous graph sizes (dynamic N/E
# per graph) is not expressible with static Pallas shapes; the batched path
# assumes uniform N and E per graph (any future N-padding must mask padded
# nodes before pooling and divide by the true node count).

if __name__ == "__main__":
    key = jax.random.PRNGKey(0)
    k_param, k_x, k_src, k_dst = jax.random.split(key, 4)

    B, N, E = 64, 8, 16
    x = jax.random.normal(k_x, (B, N, 11), jnp.float32)
    edge_index = jnp.stack([
        jax.random.randint(k_src, (B, E), 0, N, jnp.int32),   # src
        jax.random.randint(k_dst, (B, E), 0, N, jnp.int32),   # dst
    ], axis=1)                                                 # [B, 2, E]

    params = init_params(k_param)
    w_packed, b_packed = pack_params(params)                   # pack once, reuse

    # Batched path (list-of-Data branch with uniform-sized graphs).
    loc_b, scale_b = jax.jit(multinode_actor_forward_batched)(
        x, edge_index, w_packed, b_packed)
    jax.block_until_ready((loc_b, scale_b))
    assert loc_b.shape == (B, 8) and scale_b.shape == (B, 8)
    assert bool(jnp.all(scale_b >= _SCALE_LB))

    # Single-Data path.
    loc_s, scale_s = multinode_actor_forward(x[0], edge_index[0], w_packed, b_packed)
    jax.block_until_ready((loc_s, scale_s))
    assert loc_s.shape == (8,) and scale_s.shape == (8,)

    # Cross-check against a pure-JAX f32 reference (kernel uses bf16 operands
    # with f32 accumulation, hence the relaxed tolerance).
    loc_ref, scale_ref = jax.vmap(_reference_single, in_axes=(0, 0, None))(
        x, edge_index, params)
    assert jnp.allclose(loc_b, loc_ref, atol=3e-2, rtol=3e-2)
    assert jnp.allclose(scale_b, scale_ref, atol=3e-2, rtol=3e-2)
    assert jnp.allclose(loc_s, loc_ref[0], atol=3e-2, rtol=3e-2)
    assert jnp.allclose(scale_s, scale_ref[0], atol=3e-2, rtol=3e-2)

    print("KERNEL_OK")
</pallas_src>

<mosaic_0001>
module attributes {stable_mosaic.version = 11 : i64} {
  func.func @actor_kernel(%arg0: i32, %arg1: memref<1x1x512xi32, #tpu.memory_space<vmem>>, %arg2: memref<1x1x512xi32, #tpu.memory_space<vmem>>, %arg3: memref<256x16xbf16, #tpu.memory_space<vmem>>, %arg4: memref<656x128xbf16, #tpu.memory_space<vmem>>, %arg5: memref<4x128xf32, #tpu.memory_space<vmem>>, %arg6: memref<32x128xf32, #tpu.memory_space<vmem>>) attributes {dimension_semantics = [#tpu.dimension_semantics<parallel>], iteration_bounds = array<i64: 2>, scalar_prefetch = 0 : i64, scratch_operands = 0 : i64, tpu.core_type = #tpu.core_type<tc>, window_params = [{transform_indices = @transform_0, window_bounds = array<i64: 1, 1, 512>}, {transform_indices = @transform_1, window_bounds = array<i64: 1, 1, 512>}, {transform_indices = @transform_2, window_bounds = array<i64: 256, 16>}, {pipeline_mode = #tpu.pipeline_mode<synchronous>, transform_indices = @transform_3, window_bounds = array<i64: 656, 128>}, {pipeline_mode = #tpu.pipeline_mode<synchronous>, transform_indices = @transform_4, window_bounds = array<i64: 4, 128>}, {transform_indices = @transform_5, window_bounds = array<i64: 32, 128>}]} {
    %c0 = arith.constant 0 : index
    %c0_0 = arith.constant 0 : index
    %c0_1 = arith.constant 0 : index
    %0 = vector.load %arg1[%c0, %c0_0, %c0_1] : memref<1x1x512xi32, #tpu.memory_space<vmem>>, vector<1x1x512xi32>
    %1 = vector.shape_cast %0 : vector<1x1x512xi32> to vector<1x512xi32>
    %c0_2 = arith.constant 0 : index
    %c0_3 = arith.constant 0 : index
    %c0_4 = arith.constant 0 : index
    %2 = vector.load %arg2[%c0_2, %c0_3, %c0_4] : memref<1x1x512xi32, #tpu.memory_space<vmem>>, vector<1x1x512xi32>
    %3 = vector.shape_cast %2 : vector<1x1x512xi32> to vector<1x512xi32>
    %4 = tpu.iota {dimensions = array<i32: 0>} : vector<256x512xi32>
    %5 = vector.broadcast %3 : vector<1x512xi32> to vector<256x512xi32>
    %6 = arith.cmpi eq, %4, %5 : vector<256x512xi32>
    %7 = arith.extui %6 : vector<256x512xi1> to vector<256x512xi32>
    %8 = arith.sitofp %7 : vector<256x512xi32> to vector<256x512xf32>
    %9 = arith.truncf %8 : vector<256x512xf32> to vector<256x512xbf16>
    %10 = vector.broadcast %1 : vector<1x512xi32> to vector<256x512xi32>
    %11 = arith.cmpi eq, %4, %10 : vector<256x512xi32>
    %12 = arith.extui %11 : vector<256x512xi1> to vector<256x512xi32>
    %13 = arith.sitofp %12 : vector<256x512xi32> to vector<256x512xf32>
    %14 = arith.truncf %13 : vector<256x512xf32> to vector<256x512xbf16>
    %cst = arith.constant dense<0.000000e+00> : vector<256x256xf32>
    %15 = tpu.matmul %9, %14, %cst {dimension_numbers = #tpu.dot_dimension_numbers<[1], [1], [0], [0], [0, 0, 1, 0], [], []>} : vector<256x512xbf16>, vector<256x512xbf16>, vector<256x256xf32> -> vector<256x256xf32>
    %16 = arith.truncf %15 : vector<256x256xf32> to vector<256x256xbf16>
    %c0_5 = arith.constant 0 : index
    %c0_6 = arith.constant 0 : index
    %17 = vector.load %arg4[%c0_5, %c0_6] : memref<656x128xbf16, #tpu.memory_space<vmem>>, vector<16x128xbf16>
    %c16 = arith.constant 16 : index
    %c0_7 = arith.constant 0 : index
    %18 = vector.load %arg4[%c16, %c0_7] : memref<656x128xbf16, #tpu.memory_space<vmem>>, vector<128x128xbf16>
    %c144 = arith.constant 144 : index
    %c0_8 = arith.constant 0 : index
    %19 = vector.load %arg4[%c144, %c0_8] : memref<656x128xbf16, #tpu.memory_space<vmem>>, vector<128x128xbf16>
    %c272 = arith.constant 272 : index
    %c0_9 = arith.constant 0 : index
    %20 = vector.load %arg4[%c272, %c0_9] : memref<656x128xbf16, #tpu.memory_space<vmem>>, vector<128x128xbf16>
    %c400 = arith.constant 400 : index
    %c0_10 = arith.constant 0 : index
    %21 = vector.load %arg4[%c400, %c0_10] : memref<656x128xbf16, #tpu.memory_space<vmem>>, vector<128x128xbf16>
    %c528 = arith.constant 528 : index
    %c0_11 = arith.constant 0 : index
    %22 = vector.load %arg4[%c528, %c0_11] : memref<656x128xbf16, #tpu.memory_space<vmem>>, vector<128x128xbf16>
    %c0_12 = arith.constant 0 : index
    %c0_13 = arith.constant 0 : index
    %23 = vector.load %arg5[%c0_12, %c0_13] : memref<4x128xf32, #tpu.memory_space<vmem>>, vector<1x128xf32>
    %c1 = arith.constant 1 : index
    %c0_14 = arith.constant 0 : index
    %24 = vector.load %arg5[%c1, %c0_14] : memref<4x128xf32, #tpu.memory_space<vmem>>, vector<1x128xf32>
    %c2 = arith.constant 2 : index
    %c0_15 = arith.constant 0 : index
    %25 = vector.load %arg5[%c2, %c0_15] : memref<4x128xf32, #tpu.memory_space<vmem>>, vector<1x128xf32>
    %c3 = arith.constant 3 : index
    %c0_16 = arith.constant 0 : index
    %26 = vector.load %arg5[%c3, %c0_16] : memref<4x128xf32, #tpu.memory_space<vmem>>, vector<1x128xf32>
    %c0_17 = arith.constant 0 : index
    %c0_18 = arith.constant 0 : index
    %27 = vector.load %arg3[%c0_17, %c0_18] : memref<256x16xbf16, #tpu.memory_space<vmem>>, vector<256x16xbf16>
    %cst_19 = arith.constant dense<0.000000e+00> : vector<256x128xf32>
    %28 = tpu.matmul %27, %17, %cst_19 {dimension_numbers = #tpu.dot_dimension_numbers<[1], [0], [0], [1], [0, 0, 1, 1], [], []>} : vector<256x16xbf16>, vector<16x128xbf16>, vector<256x128xf32> -> vector<256x128xf32>
    %29 = vector.broadcast %23 : vector<1x128xf32> to vector<256x128xf32>
    %30 = arith.addf %28, %29 : vector<256x128xf32>
    %31 = arith.truncf %30 : vector<256x128xf32> to vector<256x128xbf16>
    %cst_20 = arith.constant dense<0.000000e+00> : vector<256x128xf32>
    %32 = tpu.matmul %16, %31, %cst_20 {dimension_numbers = #tpu.dot_dimension_numbers<[1], [0], [0], [1], [0, 0, 1, 1], [], []>} : vector<256x256xbf16>, vector<256x128xbf16>, vector<256x128xf32> -> vector<256x128xf32>
    %33 = arith.truncf %32 : vector<256x128xf32> to vector<256x128xbf16>
    %cst_21 = arith.constant dense<0.000000e+00> : vector<256x128xf32>
    %34 = tpu.matmul %33, %18, %cst_21 {dimension_numbers = #tpu.dot_dimension_numbers<[1], [0], [0], [1], [0, 0, 1, 1], [], []>} : vector<256x128xbf16>, vector<128x128xbf16>, vector<256x128xf32> -> vector<256x128xf32>
    %cst_22 = arith.constant dense<0.000000e+00> : vector<256x128xf32>
    %35 = tpu.matmul %31, %19, %cst_22 {dimension_numbers = #tpu.dot_dimension_numbers<[1], [0], [0], [1], [0, 0, 1, 1], [], []>} : vector<256x128xbf16>, vector<128x128xbf16>, vector<256x128xf32> -> vector<256x128xf32>
    %36 = arith.addf %34, %35 : vector<256x128xf32>
    %37 = vector.broadcast %24 : vector<1x128xf32> to vector<256x128xf32>
    %38 = arith.addf %36, %37 : vector<256x128xf32>
    %39 = math.tanh %38 : vector<256x128xf32>
    %40 = arith.truncf %39 : vector<256x128xf32> to vector<256x128xbf16>
    %cst_23 = arith.constant dense<0.000000e+00> : vector<256x128xf32>
    %41 = tpu.matmul %16, %40, %cst_23 {dimension_numbers = #tpu.dot_dimension_numbers<[1], [0], [0], [1], [0, 0, 1, 1], [], []>} : vector<256x256xbf16>, vector<256x128xbf16>, vector<256x128xf32> -> vector<256x128xf32>
    %42 = arith.truncf %41 : vector<256x128xf32> to vector<256x128xbf16>
    %cst_24 = arith.constant dense<0.000000e+00> : vector<256x128xf32>
    %43 = tpu.matmul %42, %20, %cst_24 {dimension_numbers = #tpu.dot_dimension_numbers<[1], [0], [0], [1], [0, 0, 1, 1], [], []>} : vector<256x128xbf16>, vector<128x128xbf16>, vector<256x128xf32> -> vector<256x128xf32>
    %cst_25 = arith.constant dense<0.000000e+00> : vector<256x128xf32>
    %44 = tpu.matmul %40, %21, %cst_25 {dimension_numbers = #tpu.dot_dimension_numbers<[1], [0], [0], [1], [0, 0, 1, 1], [], []>} : vector<256x128xbf16>, vector<128x128xbf16>, vector<256x128xf32> -> vector<256x128xf32>
    %45 = arith.addf %43, %44 : vector<256x128xf32>
    %46 = vector.broadcast %25 : vector<1x128xf32> to vector<256x128xf32>
    %47 = arith.addf %45, %46 : vector<256x128xf32>
    %48 = math.tanh %47 : vector<256x128xf32>
    %49 = arith.truncf %48 : vector<256x128xf32> to vector<256x128xbf16>
    %cst_26 = arith.constant dense<0.000000e+00> : vector<256x128xf32>
    %50 = tpu.matmul %49, %22, %cst_26 {dimension_numbers = #tpu.dot_dimension_numbers<[1], [0], [0], [1], [0, 0, 1, 1], [], []>} : vector<256x128xbf16>, vector<128x128xbf16>, vector<256x128xf32> -> vector<256x128xf32>
    %51 = vector.broadcast %26 : vector<1x128xf32> to vector<256x128xf32>
    %52 = arith.addf %50, %51 : vector<256x128xf32>
    %53 = math.tanh %52 : vector<256x128xf32>
    %54 = tpu.iota {dimensions = array<i32: 0>} : vector<32x256xi32>
    %55 = tpu.iota {dimensions = array<i32: 1>} : vector<32x256xi32>
    %c8_i32 = arith.constant 8 : i32
    %56 = vector.broadcast %c8_i32 : i32 to vector<32x256xi32>
    %57 = arith.muli %54, %56 : vector<32x256xi32>
    %58 = arith.cmpi sge, %55, %57 : vector<32x256xi32>
    %c1_i32 = arith.constant 1 : i32
    %59 = vector.broadcast %c1_i32 : i32 to vector<32x256xi32>
    %60 = arith.addi %54, %59 : vector<32x256xi32>
    %c8_i32_27 = arith.constant 8 : i32
    %61 = vector.broadcast %c8_i32_27 : i32 to vector<32x256xi32>
    %62 = arith.muli %60, %61 : vector<32x256xi32>
    %63 = arith.cmpi slt, %55, %62 : vector<32x256xi32>
    %64 = arith.andi %58, %63 : vector<32x256xi1>
    %65 = arith.extui %64 : vector<32x256xi1> to vector<32x256xi32>
    %66 = arith.sitofp %65 : vector<32x256xi32> to vector<32x256xf32>
    %67 = arith.truncf %66 : vector<32x256xf32> to vector<32x256xbf16>
    %68 = arith.truncf %53 : vector<256x128xf32> to vector<256x128xbf16>
    %cst_28 = arith.constant dense<0.000000e+00> : vector<32x128xf32>
    %69 = tpu.matmul %67, %68, %cst_28 {dimension_numbers = #tpu.dot_dimension_numbers<[1], [0], [0], [1], [0, 0, 1, 1], [], []>} : vector<32x256xbf16>, vector<256x128xbf16>, vector<32x128xf32> -> vector<32x128xf32>
    %cst_29 = arith.constant 1.250000e-01 : f32
    %70 = vector.broadcast %cst_29 : f32 to vector<32x128xf32>
    %71 = arith.mulf %69, %70 : vector<32x128xf32>
    %cst_30 = arith.constant 0.541324854 : f32
    %72 = vector.broadcast %cst_30 : f32 to vector<32x128xf32>
    %73 = arith.addf %71, %72 : vector<32x128xf32>
    %cst_31 = arith.constant 0.000000e+00 : f32
    %74 = vector.broadcast %cst_31 : f32 to vector<32x128xf32>
    %75 = arith.maximumf %73, %74 : vector<32x128xf32>
    %76 = math.absf %73 : vector<32x128xf32>
    %cst_32 = arith.constant 0.000000e+00 : f32
    %77 = vector.broadcast %cst_32 : f32 to vector<32x128xf32>
    %78 = arith.subf %77, %76 : vector<32x128xf32>
    %79 = math.exp %78 : vector<32x128xf32>
    %80 = math.log1p %79 : vector<32x128xf32>
    %81 = arith.addf %75, %80 : vector<32x128xf32>
    %cst_33 = arith.constant 9.99999974E-5 : f32
    %82 = vector.broadcast %cst_33 : f32 to vector<32x128xf32>
    %83 = arith.maximumf %81, %82 : vector<32x128xf32>
    %84 = tpu.iota {dimensions = array<i32: 1>} : vector<32x128xi32>
    %c8_i32_34 = arith.constant 8 : i32
    %85 = vector.broadcast %c8_i32_34 : i32 to vector<32x128xi32>
    %86 = arith.cmpi slt, %84, %85 : vector<32x128xi32>
    %c16_i32 = arith.constant 16 : i32
    %87 = vector.broadcast %c16_i32 : i32 to vector<32x128xi32>
    %88 = arith.cmpi slt, %84, %87 : vector<32x128xi32>
    %cst_35 = arith.constant 0.000000e+00 : f32
    %89 = vector.broadcast %cst_35 : f32 to vector<32x128xf32>
    %90 = arith.select %88, %83, %89 : vector<32x128xi1>, vector<32x128xf32>
    %91 = arith.select %86, %71, %90 : vector<32x128xi1>, vector<32x128xf32>
    %c0_36 = arith.constant 0 : index
    %c0_37 = arith.constant 0 : index
    %92 = vector.load %arg6[%c0_36, %c0_37] : memref<32x128xf32, #tpu.memory_space<vmem>>, vector<32x128xf32>
    tpu.vector_store %arg6[%c0_36, %c0_37], %91 {strides = array<i32>} : memref<32x128xf32, #tpu.memory_space<vmem>>, vector<32x128xf32>,
    return
  }
  func.func @transform_0(%arg0: i32) -> (i32, i32, i32) {
    %c0_i32 = arith.constant 0 : i32
    %c0_i32_0 = arith.constant 0 : i32
    %c0_i32_1 = arith.constant 0 : i32
    return %arg0, %c0_i32, %c0_i32_0 : i32, i32, i32
  }
  func.func @transform_1(%arg0: i32) -> (i32, i32, i32) {
    %c0_i32 = arith.constant 0 : i32
    %c0_i32_0 = arith.constant 0 : i32
    %c0_i32_1 = arith.constant 0 : i32
    return %arg0, %c0_i32, %c0_i32_0 : i32, i32, i32
  }
  func.func @transform_2(%arg0: i32) -> (i32, i32) {
    %c0_i32 = arith.constant 0 : i32
    %c0_i32_0 = arith.constant 0 : i32
    return %arg0, %c0_i32 : i32, i32
  }
  func.func @transform_3(%arg0: i32) -> (i32, i32) {
    %c0_i32 = arith.constant 0 : i32
    %c0_i32_0 = arith.constant 0 : i32
    %c0_i32_1 = arith.constant 0 : i32
    return %c0_i32, %c0_i32_0 : i32, i32
  }
  func.func @transform_4(%arg0: i32) -> (i32, i32) {
    %c0_i32 = arith.constant 0 : i32
    %c0_i32_0 = arith.constant 0 : i32
    %c0_i32_1 = arith.constant 0 : i32
    return %c0_i32, %c0_i32_0 : i32, i32
  }
  func.func @transform_5(%arg0: i32) -> (i32, i32) {
    %c0_i32 = arith.constant 0 : i32
    %c0_i32_0 = arith.constant 0 : i32
    return %arg0, %c0_i32 : i32, i32
  }
}

</mosaic_0001>

<llo_original>
// kernel: squeeze.1
$region0: #{squeeze.1}
  %s0 = inlined_call_operand.vmem [shape: s32[64,1,16], index: 0, kind: input, shape index: {}]
  %s1 = inlined_call_operand.vmem [shape: s32[2,1,512], index: 1, kind: output, shape index: {}]
  $region1: #{squeeze.1} parent=0
    #allocation0 [shape = 'u8[32768]{0}', space=vmem, size = 0x8000, scoped, tag = 'scoped mem for output reshape']
    %v2 = vld [vmem:[%s0] ss:$8 sm:$0xf]
    %v3 = vld [vmem:[%s0] ss:$8 sm:$0xf0]
    %vm4 = vcmask 1047556
    %v5 = vsel %vm4, %v3, %v2
    %vm6 = vcmask 130048
    %7 = vst.msk [vmem:[#allocation0] ss:$8 sm:$0xf] %vm6, %v5
    %8 = vst.msk [vmem:[#allocation0] ss:$8 sm:$0xf0] %vm6, %v5
    %s9 = scalar_lea.vmem %s0, 7
    %v10 = vld [vmem:[%s9] ss:$8 sm:$0xf]
    %s11 = scalar_lea.vmem %s0, 7
    %v12 = vld [vmem:[%s11] ss:$8 sm:$0xf0]
    %vm13 = vcmask 1047556
    %v14 = vsel %vm13, %v12, %v10
    %15 = vrot.lane.b32.xlu0 %v14, 112
    %v16 = vpop.permute.xlu0 %15
    %vm17 = vcmask 1048448
    %18 = vst.msk [vmem:[#allocation0] ss:$8 sm:$0xf] %vm17, %v16
    %19 = vst.msk [vmem:[#allocation0] ss:$8 sm:$0xf0] %vm17, %v16
    %s20 = scalar_lea.vmem %s0, 6
    %v21 = vld [vmem:[%s20] ss:$8 sm:$0xf]
    %s22 = scalar_lea.vmem %s0, 6
    %v23 = vld [vmem:[%s22] ss:$8 sm:$0xf0]
    %vm24 = vcmask 1047556
    %v25 = vsel %vm24, %v23, %v21
    %26 = vrot.lane.b32.xlu0 %v25, 96
    %v27 = vpop.permute.xlu0 %26
    %vm28 = vcmask 917248
    %29 = vst.msk [vmem:[#allocation0] ss:$8 sm:$0xf] %vm28, %v27
    %30 = vst.msk [vmem:[#allocation0] ss:$8 sm:$0xf0] %vm28, %v27
    %s31 = scalar_lea.vmem %s0, 5
    %v32 = vld [vmem:[%s31] ss:$8 sm:$0xf]
    %s33 = scalar_lea.vmem %s0, 5
    %v34 = vld [vmem:[%s33] ss:$8 sm:$0xf0]
    %vm35 = vcmask 1047556
    %v36 = vsel %vm35, %v34, %v32
    %37 = vrot.lane.b32.xlu0 %v36, 80
    %v38 = vpop.permute.xlu0 %37
    %vm39 = vcmask 786048
    %40 = vst.msk [vmem:[#allocation0] ss:$8 sm:$0xf] %vm39, %v38
    %41 = vst.msk [vmem:[#allocation0] ss:$8 sm:$0xf0] %vm39, %v38
    %s42 = scalar_lea.vmem %s0, 4
    %v43 = vld [vmem:[%s42] ss:$8 sm:$0xf]
    %s44 = scalar_lea.vmem %s0, 4
    %v45 = vld [vmem:[%s44] ss:$8 sm:$0xf0]
    %vm46 = vcmask 1047556
    %v47 = vsel %vm46, %v45, %v43
    %48 = vrot.lane.b32.xlu0 %v47, 64
    %v49 = vpop.permute.xlu0 %48
    %vm50 = vcmask 654848
    %51 = vst.msk [vmem:[#allocation0] ss:$8 sm:$0xf] %vm50, %v49
    %52 = vst.msk [vmem:[#allocation0] ss:$8 sm:$0xf0] %vm50, %v49
    %s53 = scalar_lea.vmem %s0, 3
    %v54 = vld [vmem:[%s53] ss:$8 sm:$0xf]
    %s55 = scalar_lea.vmem %s0, 3
    %v56 = vld [vmem:[%s55] ss:$8 sm:$0xf0]
    %vm57 = vcmask 1047556
    %v58 = vsel %vm57, %v56, %v54
    %59 = vrot.lane.b32.xlu0 %v58, 48
    %v60 = vpop.permute.xlu0 %59
    %vm61 = vcmask 523648
    %62 = vst.msk [vmem:[#allocation0] ss:$8 sm:$0xf] %vm61, %v60
    %63 = vst.msk [vmem:[#allocation0] ss:$8 sm:$0xf0] %vm61, %v60
    %s64 = scalar_lea.vmem %s0, 2
    %v65 = vld [vmem:[%s64] ss:$8 sm:$0xf]
    %s66 = scalar_lea.vmem %s0, 2
    %v67 = vld [vmem:[%s66] ss:$8 sm:$0xf0]
    %vm68 = vcmask 1047556
    %v69 = vsel %vm68, %v67, %v65
    %70 = vrot.lane.b32.xlu0 %v69, 32
    %v71 = vpop.permute.xlu0 %70
    %vm72 = vcmask 392448
    %73 = vst.msk [vmem:[#allocation0] ss:$8 sm:$0xf] %vm72, %v71
    %74 = vst.msk [vmem:[#allocation0] ss:$8 sm:$0xf0] %vm72, %v71
    %s75 = scalar_lea.vmem %s0, 1
    %v76 = vld [vmem:[%s75] ss:$8 sm:$0xf]
    %s77 = scalar_lea.vmem %s0, 1
    %v78 = vld [vmem:[%s77] ss:$8 sm:$0xf0]
    %vm79 = vcmask 1047556
    %v80 = vsel %vm79, %v78, %v76
    %81 = vrot.lane.b32.xlu0 %v80, 16
    %v82 = vpop.permute.xlu0 %81
    %vm83 = vcmask 261248
    %84 = vst.msk [vmem:[#allocation0] ss:$8 sm:$0xf] %vm83, %v82
    %85 = vst.msk [vmem:[#allocation0] ss:$8 sm:$0xf0] %vm83, %v82
    %s87 = sshll.u32 1, 1
    %s88 = ssub.s32 %s87, 1
    %v90 = vld [vmem:[#allocation0] sm:%s88]
    %s91 = sshll.u32 1, 1
    %s92 = ssub.s32 %s91, 1
    %93 = vst [vmem:[%s1] sm:%s92] %v90
    %s94 = scalar_lea.vmem [#allocation0], 8
    %v95 = vld [vmem:[%s94] sm:%s88]
    %s96 = sshll.u32 1, 1
    %s97 = ssub.s32 %s96, 1
    %s98 = scalar_lea.vmem %s1, 1
    %99 = vst [vmem:[%s98] sm:%s97] %v95
    %s100 = scalar_lea.vmem [#allocation0], 16
    %v101 = vld [vmem:[%s100] sm:%s88]
    %s102 = sshll.u32 1, 1
    %s103 = ssub.s32 %s102, 1
    %s104 = smul.addr 1, 2
    %s105 = scalar_lea.vmem %s1, %s104
    %106 = vst [vmem:[%s105] sm:%s103] %v101
    %s107 = scalar_lea.vmem [#allocation0], 24
    %v108 = vld [vmem:[%s107] sm:%s88]
    %s109 = sshll.u32 1, 1
    %s110 = ssub.s32 %s109, 1
    %s111 = smul.addr 1, 3
    %s112 = scalar_lea.vmem %s1, %s111
    %113 = vst [vmem:[%s112] sm:%s110] %v108
    %s114 = scalar_lea.vmem [#allocation0], 32
    %v115 = vld [vmem:[%s114] sm:%s88]
    %s116 = sshll.u32 1, 1
    %s117 = ssub.s32 %s116, 1
    %s118 = smul.addr 1, 4
    %s119 = scalar_lea.vmem %s1, %s118
    %120 = vst [vmem:[%s119] sm:%s117] %v115
    %s121 = scalar_lea.vmem [#allocation0], 40
    %v122 = vld [vmem:[%s121] sm:%s88]
    %s123 = sshll.u32 1, 1
    %s124 = ssub.s32 %s123, 1
    %s125 = smul.addr 1, 5
    %s126 = scalar_lea.vmem %s1, %s125
    %127 = vst [vmem:[%s126] sm:%s124] %v122
    %s128 = scalar_lea.vmem [#allocation0], 48
    %v129 = vld [vmem:[%s128] sm:%s88]
    %s130 = sshll.u32 1, 1
    %s131 = ssub.s32 %s130, 1
    %s132 = smul.addr 1, 6
    %s133 = scalar_lea.vmem %s1, %s132
    %134 = vst [vmem:[%s133] sm:%s131] %v129
    %s135 = scalar_lea.vmem [#allocation0], 56
    %v136 = vld [vmem:[%s135] sm:%s88]
    %s137 = sshll.u32 1, 1
    %s138 = ssub.s32 %s137, 1
    %s139 = smul.addr 1, 7
    %s140 = scalar_lea.vmem %s1, %s139
    %141 = vst [vmem:[%s140] sm:%s138] %v136

// kernel: multinode_actor_forward_batched.1
$region0: #{multinode_actor_forward_batched.1}
  #allocation0 [shape = 'u32[]', space=smem, size = 0x4, offset = 0x4, fixed_abs, tag = 'smem constant byte address 0x4 - core index']
  #allocation1 [shape = 'u32[144,128]{1,0:T(1,128)}', space=vmem, size = 0x12000, scoped, tag = 'internal scratch']
  %s0 = inlined_call_operand.vmem [shape: s32[2,1,512], index: 0, kind: input, shape index: {}]
  %s1 = inlined_call_operand.vmem [shape: s32[2,1,512], index: 1, kind: input, shape index: {}]
  %s2 = inlined_call_operand.vmem [shape: bf16[512,16], index: 2, kind: input, shape index: {}]
  %s3 = inlined_call_operand.vmem [shape: bf16[656,128], index: 3, kind: input, shape index: {}]
  %s4 = inlined_call_operand.vmem [shape: f32[4,128], index: 4, kind: input, shape index: {}]
  %s5 = inlined_call_operand.vmem [shape: f32[64,128], index: 5, kind: output, shape index: {}]
  %s6 = sld [smem:[#allocation0]]
  $region53: #{multinode_actor_forward_batched.1} parent=0
    _
  %s8 = ssub.s32 1, %s6
  %s9 = scalar_select 0, %s8, %s6
  loop: start=0, step=1, limit=4
  $region2: #{multinode_actor_forward_batched.1} parent=0 // loop_pre_header
    _
  $region3: #{multinode_actor_forward_batched.1} parent=0 // loop_header
    %s11 = sphi 0, %s15
    %p12 = scmp.ge.s32.totalorder %s11, 4
    %s21 = sphi 0, %s23
    %s24 = sphi 0, %s21
    %s25 = sphi 0, %s24
    %s41 = sphi 0, %s25
    %s47 = sphi 0, %s49
    %s50 = sphi 0, %s47
    %s51 = sphi 0, %s50
    %s67 = sphi 0, %s51
    %s73 = sphi 0, %s75
    %s76 = sphi 0, %s73
    %s77 = sphi 0, %s76
    %s93 = sphi 0, %s77
    %s97 = sphi 0, %s97
    %s99 = sphi 0, %s97
    %s100 = sphi 0, %s99
    %s114 = sphi 0, %s100
    %s118 = sphi 0, %s118
    %s120 = sphi 0, %s118
    %s121 = sphi 0, %s120
    %s135 = sphi 0, %s121
    %s141 = sphi 0, %s143
    %s144 = sphi 0, %s141
    %s145 = sphi 0, %s144
    %s161 = sphi 0, %s145
  $region4: #{multinode_actor_forward_batched.1} parent=0 // loop_header_branch
    %14 = sbr.rel (%p12) target = $region8
  $region5: #{multinode_actor_forward_batched.1} parent=0 // loop_body
    %s16 = ssub.s32 %s11, 1
    %s17 = ssub.s32 %s11, 2
    %s18 = sadd.s32 %s11, 1
    %s19 = ssub.s32 %s11, %s18
    %p20 = scmp.eq.s32.totalorder %s19, 0
    %s22 = sadd.s32 %s21, 1
    %s23 = scalar_select %p20, %s21, %s22
    %p26 = pneg %p20
    %p27 = scmp.eq.s32.totalorder %s11, 1
    %p28 = por %p26, %p27
    %p29 = scmp.ne.s32.totalorder %s21, %s24
    %p30 = scmp.eq.s32.totalorder %s11, 0
    %p31 = por %p29, %p30
    %p32 = scmp.ne.s32.totalorder %s21, %s24
    %p33 = scmp.eq.s32.totalorder %s16, 1
    %p34 = por %p32, %p33
    %p35 = scmp.ne.s32.totalorder %s24, %s25
    %p36 = scmp.eq.s32.totalorder %s16, 0
    %p37 = por %p35, %p36
    %p38 = scmp.ne.s32.totalorder %s24, %s25
    %p39 = scmp.eq.s32.totalorder %s17, 1
    %p40 = por %p38, %p39
    %p42 = scmp.ne.s32.totalorder %s25, %s41
    %p43 = scmp.eq.s32.totalorder %s17, 0
    %p44 = por %p42, %p43
    %s45 = ssub.s32 %s11, %s18
    %p46 = scmp.eq.s32.totalorder %s45, 0
    %s48 = sadd.s32 %s47, 1
    %s49 = scalar_select %p46, %s47, %s48
    %p52 = pneg %p46
    %p53 = scmp.eq.s32.totalorder %s11, 1
    %p54 = por %p52, %p53
    %p55 = scmp.ne.s32.totalorder %s47, %s50
    %p56 = scmp.eq.s32.totalorder %s11, 0
    %p57 = por %p55, %p56
    %p58 = scmp.ne.s32.totalorder %s47, %s50
    %p59 = scmp.eq.s32.totalorder %s16, 1
    %p60 = por %p58, %p59
    %p61 = scmp.ne.s32.totalorder %s50, %s51
    %p62 = scmp.eq.s32.totalorder %s16, 0
    %p63 = por %p61, %p62
    %p64 = scmp.ne.s32.totalorder %s50, %s51
    %p65 = scmp.eq.s32.totalorder %s17, 1
    %p66 = por %p64, %p65
    %p68 = scmp.ne.s32.totalorder %s51, %s67
    %p69 = scmp.eq.s32.totalorder %s17, 0
    %p70 = por %p68, %p69
    %s71 = ssub.s32 %s11, %s18
    %p72 = scmp.eq.s32.totalorder %s71, 0
    %s74 = sadd.s32 %s73, 1
    %s75 = scalar_select %p72, %s73, %s74
    %p78 = pneg %p72
    %p79 = scmp.eq.s32.totalorder %s11, 1
    %p80 = por %p78, %p79
    %p81 = scmp.ne.s32.totalorder %s73, %s76
    %p82 = scmp.eq.s32.totalorder %s11, 0
    %p83 = por %p81, %p82
    %p84 = scmp.ne.s32.totalorder %s73, %s76
    %p85 = scmp.eq.s32.totalorder %s16, 1
    %p86 = por %p84, %p85
    %p87 = scmp.ne.s32.totalorder %s76, %s77
    %p88 = scmp.eq.s32.totalorder %s16, 0
    %p89 = por %p87, %p88
    %p90 = scmp.ne.s32.totalorder %s76, %s77
    %p91 = scmp.eq.s32.totalorder %s17, 1
    %p92 = por %p90, %p91
    %p94 = scmp.ne.s32.totalorder %s77, %s93
    %p95 = scmp.eq.s32.totalorder %s17, 0
    %p96 = por %p94, %p95
    %s98 = sadd.s32 %s97, 1
    %p101 = scmp.eq.s32.totalorder %s11, 1
    %p102 = scmp.ne.s32.totalorder %s97, %s99
    %p103 = scmp.eq.s32.totalorder %s11, 0
    %p104 = por %p102, %p103
    %p105 = scmp.ne.s32.totalorder %s97, %s99
    %p106 = scmp.eq.s32.totalorder %s16, 1
    %p107 = por %p105, %p106
    %p108 = scmp.ne.s32.totalorder %s99, %s100
    %p109 = scmp.eq.s32.totalorder %s16, 0
    %p110 = por %p108, %p109
    %p111 = scmp.ne.s32.totalorder %s99, %s100
    %p112 = scmp.eq.s32.totalorder %s17, 1
    %p113 = por %p111, %p112
    %p115 = scmp.ne.s32.totalorder %s100, %s114
    %p116 = scmp.eq.s32.totalorder %s17, 0
    %p117 = por %p115, %p116
    %s119 = sadd.s32 %s118, 1
    %p122 = scmp.eq.s32.totalorder %s11, 1
    %p123 = scmp.ne.s32.totalorder %s118, %s120
    %p124 = scmp.eq.s32.totalorder %s11, 0
    %p125 = por %p123, %p124
    %p126 = scmp.ne.s32.totalorder %s118, %s120
    %p127 = scmp.eq.s32.totalorder %s16, 1
    %p128 = por %p126, %p127
    %p129 = scmp.ne.s32.totalorder %s120, %s121
    %p130 = scmp.eq.s32.totalorder %s16, 0
    %p131 = por %p129, %p130
    %p132 = scmp.ne.s32.totalorder %s120, %s121
    %p133 = scmp.eq.s32.totalorder %s17, 1
    %p134 = por %p132, %p133
    %p136 = scmp.ne.s32.totalorder %s121, %s135
    %p137 = scmp.eq.s32.totalorder %s17, 0
    %p138 = por %p136, %p137
    %s139 = ssub.s32 %s11, %s18
    %p140 = scmp.eq.s32.totalorder %s139, 0
    %s142 = sadd.s32 %s141, 1
    %s143 = scalar_select %p140, %s141, %s142
    %p146 = pneg %p140
    %p147 = scmp.eq.s32.totalorder %s11, 1
    %p148 = por %p146, %p147
    %p149 = scmp.ne.s32.totalorder %s141, %s144
    %p150 = scmp.eq.s32.totalorder %s11, 0
    %p151 = por %p149, %p150
    %p152 = scmp.ne.s32.totalorder %s141, %s144
    %p153 = scmp.eq.s32.totalorder %s16, 1
    %p154 = por %p152, %p153
    %p155 = scmp.ne.s32.totalorder %s144, %s145
    %p156 = scmp.eq.s32.totalorder %s16, 0
    %p157 = por %p155, %p156
    %p158 = scmp.ne.s32.totalorder %s144, %s145
    %p159 = scmp.eq.s32.totalorder %s17, 1
    %p160 = por %p158, %p159
    %p162 = scmp.ne.s32.totalorder %s145, %s161
    %p163 = scmp.eq.s32.totalorder %s17, 0
    %p164 = por %p162, %p163
    %p165 = scmp.le.s32.totalorder 1, %s11
    %p166 = scmp.lt.s32.totalorder %s11, 3
    %p167 = pnand %p165, %p166
    %p168 = pneg %p167
    // Predicated region
    $region9: #{multinode_actor_forward_batched.1} parent=5 // pred_check
      _
    $region10: #{multinode_actor_forward_batched.1} parent=5 // pred_check_branch
      %170 = sbr.rel (%p167) target = $region12
    $region11: #{multinode_actor_forward_batched.1} parent=5 // pred_region
      %s171 = ssub.s32 %s11, 1
      // Predicated region
      $region13: #{multinode_actor_forward_batched.1} parent=11 // pred_check
        %p172 = pneg %p110
      $region14: #{multinode_actor_forward_batched.1} parent=11 // pred_check_branch
        %174 = sbr.rel (%p172) target = $region16
      $region15: #{multinode_actor_forward_batched.1} parent=11 // pred_region
        _
      $region16: #{multinode_actor_forward_batched.1} parent=11 // pred_fallthru
        _
      // Predicated region
      $region17: #{multinode_actor_forward_batched.1} parent=11 // pred_check
        %p175 = pneg %p131
      $region18: #{multinode_actor_forward_batched.1} parent=11 // pred_check_branch
        %177 = sbr.rel (%p175) target = $region20
      $region19: #{multinode_actor_forward_batched.1} parent=11 // pred_region
        _
      $region20: #{multinode_actor_forward_batched.1} parent=11 // pred_fallthru
        _
    $region12: #{multinode_actor_forward_batched.1} parent=5 // pred_fallthru
      _
    %p178 = scmp.lt.s32.totalorder %s11, 2
    // Predicated region
    $region21: #{multinode_actor_forward_batched.1} parent=5 // pred_check
      %p179 = pneg %p178
    $region22: #{multinode_actor_forward_batched.1} parent=5 // pred_check_branch
      %181 = sbr.rel (%p179) target = $region24
    $region23: #{multinode_actor_forward_batched.1} parent=5 // pred_region
      // Predicated region
      $region25: #{multinode_actor_forward_batched.1} parent=23 // pred_check
        %p182 = pneg %p31
      $region26: #{multinode_actor_forward_batched.1} parent=23 // pred_check_branch
        %184 = sbr.rel (%p182) target = $region28
      $region27: #{multinode_actor_forward_batched.1} parent=23 // pred_region
        %p185 = scmp.lt.s32.totalorder %s11, 1
        %s186 = scalar_select %p185, %s11, 1
        %s187 = smul.addr %s186, 4
        %s188 = scalar_lea.vmem %s0, %s187
      $region28: #{multinode_actor_forward_batched.1} parent=23 // pred_fallthru
        _
      // Predicated region
      $region29: #{multinode_actor_forward_batched.1} parent=23 // pred_check
        %p189 = pneg %p57
      $region30: #{multinode_actor_forward_batched.1} parent=23 // pred_check_branch
        %191 = sbr.rel (%p189) target = $region32
      $region31: #{multinode_actor_forward_batched.1} parent=23 // pred_region
        %p192 = scmp.lt.s32.totalorder %s11, 1
        %s193 = scalar_select %p192, %s11, 1
        %s194 = smul.addr %s193, 4
        %s195 = scalar_lea.vmem %s1, %s194
      $region32: #{multinode_actor_forward_batched.1} parent=23 // pred_fallthru
        _
      // Predicated region
      $region33: #{multinode_actor_forward_batched.1} parent=23 // pred_check
        %p196 = pneg %p83
      $region34: #{multinode_actor_forward_batched.1} parent=23 // pred_check_branch
        %198 = sbr.rel (%p196) target = $region36
      $region35: #{multinode_actor_forward_batched.1} parent=23 // pred_region
        %s199 = smul.u32 32, %s11
        %p200 = scmp.lt.s32.totalorder %s199, 63
        %s201 = scalar_select %p200, %s199, 63
        %s202 = smul.addr %s201, 4
        %s203 = scalar_lea.vmem %s2, %s202
        %s204 = smul.u32 32, %s11
      $region36: #{multinode_actor_forward_batched.1} parent=23 // pred_fallthru
        _
    $region24: #{multinode_actor_forward_batched.1} parent=5 // pred_fallthru
      _
    %p205 = scmp.le.s32.totalorder 1, %s11
    %p206 = scmp.lt.s32.totalorder %s11, 3
    %p207 = pnand %p205, %p206
    %p208 = pneg %p207
    // Predicated region
    $region37: #{multinode_actor_forward_batched.1} parent=5 // pred_check
      _
    $region38: #{multinode_actor_forward_batched.1} parent=5 // pred_check_branch
      %210 = sbr.rel (%p207) target = $region40
    $region39: #{multinode_actor_forward_batched.1} parent=5 // pred_region
      %s211 = ssub.s32 %s11, 1
      %p212 = scmp.lt.s32.totalorder %s16, 1
      %s213 = scalar_select %p212, %s16, 1
      %s214 = smul.addr %s213, 4
      %s215 = scalar_lea.vmem %s0, %s214
      %p216 = pneg %p37
      %p217 = pneg %p34
      %p218 = scmp.lt.s32.totalorder %s16, 1
      %s219 = scalar_select %p218, %s16, 1
      %s220 = smul.addr %s219, 4
      %s221 = scalar_lea.vmem %s1, %s220
      %p222 = pneg %p63
      %p223 = pneg %p60
      %s224 = smul.u32 32, %s16
      %p225 = scmp.lt.s32.totalorder %s224, 63
      %s226 = scalar_select %p225, %s224, 63
      %s227 = smul.addr %s226, 4
      %s228 = scalar_lea.vmem %s2, %s227
      %p229 = pneg %p89
      %p230 = pneg %p86
      %p231 = pneg %p110
      %p232 = pneg %p107
      %p233 = pneg %p131
      %p234 = pneg %p128
      %p235 = pneg %p157
      %p236 = pneg %p154
      %s237 = smul.u32 4, %s16
      %p238 = scmp.lt.s32.totalorder %s237, 7
      %s239 = scalar_select %p238, %s237, 7
      %s240 = smul.addr %s239, 8
      %s241 = scalar_lea.vmem %s5, %s240
      %p242 = scmp.lt.s32.totalorder %s16, 1
      %s243 = scalar_select %p242, %s16, 1
      %s244 = smul.addr %s243, 4
      %s245 = scalar_lea.vmem %s0, %s244
      %p246 = scmp.lt.s32.totalorder %s16, 1
      %s247 = scalar_select %p246, %s16, 1
      %s248 = smul.addr %s247, 4
      %s249 = scalar_lea.vmem %s1, %s248
      %s250 = smul.u32 32, %s16
      %p251 = scmp.lt.s32.totalorder %s250, 63
      %s252 = scalar_select %p251, %s250, 63
      %s253 = smul.addr %s252, 4
      %s254 = scalar_lea.vmem %s2, %s253
      %s255 = smul.u32 32, %s16
      %s256 = smul.u32 4, %s16
      %p257 = scmp.lt.s32.totalorder %s256, 7
      %s258 = scalar_select %p257, %s256, 7
      %s259 = smul.addr %s258, 8
      %s260 = scalar_lea.vmem %s5, %s259
      %s261 = smul.u32 4, %s16
      %v263 = vld [vmem:[%s245] sm:$0xf]
      %v264 = vld [vmem:[%s249] sm:$0xf]
      %v265 = vlaneseq
      %v266 = vshrl.u32 %v265, 7
      %v267 = vadd.s32 %v266, 8
      %v268 = vadd.s32 %v266, 16
      %v269 = vadd.s32 %v266, 24
      %v270 = vadd.s32 %v266, 32
      %v271 = vadd.s32 %v266, 40
      %v272 = vadd.s32 %v266, 48
      %v273 = vadd.s32 %v266, 56
      %v274 = vadd.s32 %v266, 64
      %v275 = vadd.s32 %v266, 72
      %v276 = vadd.s32 %v266, 80
      %v277 = vadd.s32 %v266, 88
      %v278 = vadd.s32 %v266, 96
      %v279 = vadd.s32 %v266, 104
      %v280 = vadd.s32 %v266, 112
      %v281 = vadd.s32 %v266, 120
      %v282 = vadd.s32 %v266, 128
      %v283 = vadd.s32 %v266, 136
      %v284 = vadd.s32 %v266, 144
      %v285 = vadd.s32 %v266, 152
      %v286 = vadd.s32 %v266, 160
      %v287 = vadd.s32 %v266, 168
      %v288 = vadd.s32 %v266, 176
      %v289 = vadd.s32 %v266, 184
      %v290 = vadd.s32 %v266, 192
      %v291 = vadd.s32 %v266, 200
      %v292 = vadd.s32 %v266, 208
      %v293 = vadd.s32 %v266, 216
      %v294 = vadd.s32 %v266, 224
      %v295 = vadd.s32 %v266, 232
      %v296 = vadd.s32 %v266, 240
      %v297 = vadd.s32 %v266, 248
      %v298 = vlaneseq
      %v299 = vshrl.u32 %v298, 7
      %v300 = vsub.s32 0, %v299
      %v301 = vrot.slane %v264, %v300
      %v302 = vlaneseq
      %v303 = vshrl.u32 %v302, 7
      %v304 = vsub.s32 1, %v303
      %v305 = vrot.slane %v264, %v304
      %v306 = vlaneseq
      %v307 = vshrl.u32 %v306, 7
      %v308 = vsub.s32 2, %v307
      %v309 = vrot.slane %v264, %v308
      %v310 = vlaneseq
      %v311 = vshrl.u32 %v310, 7
      %v312 = vsub.s32 3, %v311
      %v313 = vrot.slane %v264, %v312
      %vm314 = vcmp.eq.s32.totalorder %v266, %v301
      %vm315 = vcmp.eq.s32.totalorder %v266, %v305
      %vm316 = vcmp.eq.s32.totalorder %v266, %v309
      %vm317 = vcmp.eq.s32.totalorder %v266, %v313
      %vm318 = vcmp.eq.s32.totalorder %v267, %v301
      %vm319 = vcmp.eq.s32.totalorder %v267, %v305
      %vm320 = vcmp.eq.s32.totalorder %v267, %v309
      %vm321 = vcmp.eq.s32.totalorder %v267, %v313
      %vm322 = vcmp.eq.s32.totalorder %v268, %v301
      %vm323 = vcmp.eq.s32.totalorder %v268, %v305
      %vm324 = vcmp.eq.s32.totalorder %v268, %v309
      %vm325 = vcmp.eq.s32.totalorder %v268, %v313
      %vm326 = vcmp.eq.s32.totalorder %v269, %v301
      %vm327 = vcmp.eq.s32.totalorder %v269, %v305
      %vm328 = vcmp.eq.s32.totalorder %v269, %v309
      %vm329 = vcmp.eq.s32.totalorder %v269, %v313
      %vm330 = vcmp.eq.s32.totalorder %v270, %v301
      %vm331 = vcmp.eq.s32.totalorder %v270, %v305
      %vm332 = vcmp.eq.s32.totalorder %v270, %v309
      %vm333 = vcmp.eq.s32.totalorder %v270, %v313
      %vm334 = vcmp.eq.s32.totalorder %v271, %v301
      %vm335 = vcmp.eq.s32.totalorder %v271, %v305
      %vm336 = vcmp.eq.s32.totalorder %v271, %v309
      %vm337 = vcmp.eq.s32.totalorder %v271, %v313
      %vm338 = vcmp.eq.s32.totalorder %v272, %v301
      %vm339 = vcmp.eq.s32.totalorder %v272, %v305
      %vm340 = vcmp.eq.s32.totalorder %v272, %v309
      %vm341 = vcmp.eq.s32.totalorder %v272, %v313
      %vm342 = vcmp.eq.s32.totalorder %v273, %v301
      %vm343 = vcmp.eq.s32.totalorder %v273, %v305
      %vm344 = vcmp.eq.s32.totalorder %v273, %v309
      %vm345 = vcmp.eq.s32.totalorder %v273, %v313
      %vm346 = vcmp.eq.s32.totalorder %v274, %v301
      %vm347 = vcmp.eq.s32.totalorder %v274, %v305
      %vm348 = vcmp.eq.s32.totalorder %v274, %v309
      %vm349 = vcmp.eq.s32.totalorder %v274, %v313
      %vm350 = vcmp.eq.s32.totalorder %v275, %v301
      %vm351 = vcmp.eq.s32.totalorder %v275, %v305
      %vm352 = vcmp.eq.s32.totalorder %v275, %v309
      %vm353 = vcmp.eq.s32.totalorder %v275, %v313
      %vm354 = vcmp.eq.s32.totalorder %v276, %v301
      %vm355 = vcmp.eq.s32.totalorder %v276, %v305
      %vm356 = vcmp.eq.s32.totalorder %v276, %v309
      %vm357 = vcmp.eq.s32.totalorder %v276, %v313
      %vm358 = vcmp.eq.s32.totalorder %v277, %v301
      %vm359 = vcmp.eq.s32.totalorder %v277, %v305
      %vm360 = vcmp.eq.s32.totalorder %v277, %v309
      %vm361 = vcmp.eq.s32.totalorder %v277, %v313
      %vm362 = vcmp.eq.s32.totalorder %v278, %v301
      %vm363 = vcmp.eq.s32.totalorder %v278, %v305
      %vm364 = vcmp.eq.s32.totalorder %v278, %v309
      %vm365 = vcmp.eq.s32.totalorder %v278, %v313
      %vm366 = vcmp.eq.s32.totalorder %v279, %v301
      %vm367 = vcmp.eq.s32.totalorder %v279, %v305
      %vm368 = vcmp.eq.s32.totalorder %v279, %v309
      %vm369 = vcmp.eq.s32.totalorder %v279, %v313
      %vm370 = vcmp.eq.s32.totalorder %v280, %v301
      %vm371 = vcmp.eq.s32.totalorder %v280, %v305
      %vm372 = vcmp.eq.s32.totalorder %v280, %v309
      %vm373 = vcmp.eq.s32.totalorder %v280, %v313
      %vm374 = vcmp.eq.s32.totalorder %v281, %v301
      %vm375 = vcmp.eq.s32.totalorder %v281, %v305
      %vm376 = vcmp.eq.s32.totalorder %v281, %v309
      %vm377 = vcmp.eq.s32.totalorder %v281, %v313
      %vm378 = vcmp.eq.s32.totalorder %v282, %v301
      %vm379 = vcmp.eq.s32.totalorder %v282, %v305
      %vm380 = vcmp.eq.s32.totalorder %v282, %v309
      %vm381 = vcmp.eq.s32.totalorder %v282, %v313
      %vm382 = vcmp.eq.s32.totalorder %v283, %v301
      %vm383 = vcmp.eq.s32.totalorder %v283, %v305
      %vm384 = vcmp.eq.s32.totalorder %v283, %v309
      %vm385 = vcmp.eq.s32.totalorder %v283, %v313
      %vm386 = vcmp.eq.s32.totalorder %v284, %v301
      %vm387 = vcmp.eq.s32.totalorder %v284, %v305
      %vm388 = vcmp.eq.s32.totalorder %v284, %v309
      %vm389 = vcmp.eq.s32.totalorder %v284, %v313
      %vm390 = vcmp.eq.s32.totalorder %v285, %v301
      %vm391 = vcmp.eq.s32.totalorder %v285, %v305
      %vm392 = vcmp.eq.s32.totalorder %v285, %v309
      %vm393 = vcmp.eq.s32.totalorder %v285, %v313
      %vm394 = vcmp.eq.s32.totalorder %v286, %v301
      %vm395 = vcmp.eq.s32.totalorder %v286, %v305
      %vm396 = vcmp.eq.s32.totalorder %v286, %v309
      %vm397 = vcmp.eq.s32.totalorder %v286, %v313
      %vm398 = vcmp.eq.s32.totalorder %v287, %v301
      %vm399 = vcmp.eq.s32.totalorder %v287, %v305
      %vm400 = vcmp.eq.s32.totalorder %v287, %v309
      %vm401 = vcmp.eq.s32.totalorder %v287, %v313
      %vm402 = vcmp.eq.s32.totalorder %v288, %v301
      %vm403 = vcmp.eq.s32.totalorder %v288, %v305
      %vm404 = vcmp.eq.s32.totalorder %v288, %v309
      %vm405 = vcmp.eq.s32.totalorder %v288, %v313
      %vm406 = vcmp.eq.s32.totalorder %v289, %v301
      %vm407 = vcmp.eq.s32.totalorder %v289, %v305
      %vm408 = vcmp.eq.s32.totalorder %v289, %v309
      %vm409 = vcmp.eq.s32.totalorder %v289, %v313
      %vm410 = vcmp.eq.s32.totalorder %v290, %v301
      %vm411 = vcmp.eq.s32.totalorder %v290, %v305
      %vm412 = vcmp.eq.s32.totalorder %v290, %v309
      %vm413 = vcmp.eq.s32.totalorder %v290, %v313
      %vm414 = vcmp.eq.s32.totalorder %v291, %v301
      %vm415 = vcmp.eq.s32.totalorder %v291, %v305
      %vm416 = vcmp.eq.s32.totalorder %v291, %v309
      %vm417 = vcmp.eq.s32.totalorder %v291, %v313
      %vm418 = vcmp.eq.s32.totalorder %v292, %v301
      %vm419 = vcmp.eq.s32.totalorder %v292, %v305
      %vm420 = vcmp.eq.s32.totalorder %v292, %v309
      %vm421 = vcmp.eq.s32.totalorder %v292, %v313
      %vm422 = vcmp.eq.s32.totalorder %v293, %v301
      %vm423 = vcmp.eq.s32.totalorder %v293, %v305
      %vm424 = vcmp.eq.s32.totalorder %v293, %v309
      %vm425 = vcmp.eq.s32.totalorder %v293, %v313
      %vm426 = vcmp.eq.s32.totalorder %v294, %v301
      %vm427 = vcmp.eq.s32.totalorder %v294, %v305
      %vm428 = vcmp.eq.s32.totalorder %v294, %v309
      %vm429 = vcmp.eq.s32.totalorder %v294, %v313
      %vm430 = vcmp.eq.s32.totalorder %v295, %v301
      %vm431 = vcmp.eq.s32.totalorder %v295, %v305
      %vm432 = vcmp.eq.s32.totalorder %v295, %v309
      %vm433 = vcmp.eq.s32.totalorder %v295, %v313
      %vm434 = vcmp.eq.s32.totalorder %v296, %v301
      %vm435 = vcmp.eq.s32.totalorder %v296, %v305
      %vm436 = vcmp.eq.s32.totalorder %v296, %v309
      %vm437 = vcmp.eq.s32.totalorder %v296, %v313
      %vm438 = vcmp.eq.s32.totalorder %v297, %v301
      %vm439 = vcmp.eq.s32.totalorder %v297, %v305
      %vm440 = vcmp.eq.s32.totalorder %v297, %v309
      %vm441 = vcmp.eq.s32.totalorder %v297, %v313
      %v442 = vsel %vm314, 1, 0
      %v443 = vsel %vm315, 1, 0
      %v444 = vsel %vm316, 1, 0
      %v445 = vsel %vm317, 1, 0
      %v446 = vsel %vm318, 1, 0
      %v447 = vsel %vm319, 1, 0
      %v448 = vsel %vm320, 1, 0
      %v449 = vsel %vm321, 1, 0
      %v450 = vsel %vm322, 1, 0
      %v451 = vsel %vm323, 1, 0
      %v452 = vsel %vm324, 1, 0
      %v453 = vsel %vm325, 1, 0
      %v454 = vsel %vm326, 1, 0
      %v455 = vsel %vm327, 1, 0
      %v456 = vsel %vm328, 1, 0
      %v457 = vsel %vm329, 1, 0
      %v458 = vsel %vm330, 1, 0
      %v459 = vsel %vm331, 1, 0
      %v460 = vsel %vm332, 1, 0
      %v461 = vsel %vm333, 1, 0
      %v462 = vsel %vm334, 1, 0
      %v463 = vsel %vm335, 1, 0
      %v464 = vsel %vm336, 1, 0
      %v465 = vsel %vm337, 1, 0
      %v466 = vsel %vm338, 1, 0
      %v467 = vsel %vm339, 1, 0
      %v468 = vsel %vm340, 1, 0
      %v469 = vsel %vm341, 1, 0
      %v470 = vsel %vm342, 1, 0
      %v471 = vsel %vm343, 1, 0
      %v472 = vsel %vm344, 1, 0
      %v473 = vsel %vm345, 1, 0
      %v474 = vsel %vm346, 1, 0
      %v475 = vsel %vm347, 1, 0
      %v476 = vsel %vm348, 1, 0
      %v477 = vsel %vm349, 1, 0
      %v478 = vsel %vm350, 1, 0
      %v479 = vsel %vm351, 1, 0
      %v480 = vsel %vm352, 1, 0
      %v481 = vsel %vm353, 1, 0
      %v482 = vsel %vm354, 1, 0
      %v483 = vsel %vm355, 1, 0
      %v484 = vsel %vm356, 1, 0
      %v485 = vsel %vm357, 1, 0
      %v486 = vsel %vm358, 1, 0
      %v487 = vsel %vm359, 1, 0
      %v488 = vsel %vm360, 1, 0
      %v489 = vsel %vm361, 1, 0
      %v490 = vsel %vm362, 1, 0
      %v491 = vsel %vm363, 1, 0
      %v492 = vsel %vm364, 1, 0
      %v493 = vsel %vm365, 1, 0
      %v494 = vsel %vm366, 1, 0
      %v495 = vsel %vm367, 1, 0
      %v496 = vsel %vm368, 1, 0
      %v497 = vsel %vm369, 1, 0
      %v498 = vsel %vm370, 1, 0
      %v499 = vsel %vm371, 1, 0
      %v500 = vsel %vm372, 1, 0
      %v501 = vsel %vm373, 1, 0
      %v502 = vsel %vm374, 1, 0
      %v503 = vsel %vm375, 1, 0
      %v504 = vsel %vm376, 1, 0
      %v505 = vsel %vm377, 1, 0
      %v506 = vsel %vm378, 1, 0
      %v507 = vsel %vm379, 1, 0
      %v508 = vsel %vm380, 1, 0
      %v509 = vsel %vm381, 1, 0
      %v510 = vsel %vm382, 1, 0
      %v511 = vsel %vm383, 1, 0
      %v512 = vsel %vm384, 1, 0
      %v513 = vsel %vm385, 1, 0
      %v514 = vsel %vm386, 1, 0
      %v515 = vsel %vm387, 1, 0
      %v516 = vsel %vm388, 1, 0
      %v517 = vsel %vm389, 1, 0
      %v518 = vsel %vm390, 1, 0
      %v519 = vsel %vm391, 1, 0
      %v520 = vsel %vm392, 1, 0
      %v521 = vsel %vm393, 1, 0
      %v522 = vsel %vm394, 1, 0
      %v523 = vsel %vm395, 1, 0
      %v524 = vsel %vm396, 1, 0
      %v525 = vsel %vm397, 1, 0
      %v526 = vsel %vm398, 1, 0
      %v527 = vsel %vm399, 1, 0
      %v528 = vsel %vm400, 1, 0
      %v529 = vsel %vm401, 1, 0
      %v530 = vsel %vm402, 1, 0
      %v531 = vsel %vm403, 1, 0
      %v532 = vsel %vm404, 1, 0
      %v533 = vsel %vm405, 1, 0
      %v534 = vsel %vm406, 1, 0
      %v535 = vsel %vm407, 1, 0
      %v536 = vsel %vm408, 1, 0
      %v537 = vsel %vm409, 1, 0
      %v538 = vsel %vm410, 1, 0
      %v539 = vsel %vm411, 1, 0
      %v540 = vsel %vm412, 1, 0
      %v541 = vsel %vm413, 1, 0
      %v542 = vsel %vm414, 1, 0
      %v543 = vsel %vm415, 1, 0
      %v544 = vsel %vm416, 1, 0
      %v545 = vsel %vm417, 1, 0
      %v546 = vsel %vm418, 1, 0
      %v547 = vsel %vm419, 1, 0
      %v548 = vsel %vm420, 1, 0
      %v549 = vsel %vm421, 1, 0
      %v550 = vsel %vm422, 1, 0
      %v551 = vsel %vm423, 1, 0
      %v552 = vsel %vm424, 1, 0
      %v553 = vsel %vm425, 1, 0
      %v554 = vsel %vm426, 1, 0
      %v555 = vsel %vm427, 1, 0
      %v556 = vsel %vm428, 1, 0
      %v557 = vsel %vm429, 1, 0
      %v558 = vsel %vm430, 1, 0
      %v559 = vsel %vm431, 1, 0
      %v560 = vsel %vm432, 1, 0
      %v561 = vsel %vm433, 1, 0
      %v562 = vsel %vm434, 1, 0
      %v563 = vsel %vm435, 1, 0
      %v564 = vsel %vm436, 1, 0
      %v565 = vsel %vm437, 1, 0
      %v566 = vsel %vm438, 1, 0
      %v567 = vsel %vm439, 1, 0
      %v568 = vsel %vm440, 1, 0
      %v569 = vsel %vm441, 1, 0
      %v570 = vcvt.s32.f32 %v442
      %v571 = vcvt.s32.f32 %v443
      %v572 = vcvt.s32.f32 %v444
      %v573 = vcvt.s32.f32 %v445
      %v574 = vcvt.s32.f32 %v446
      %v575 = vcvt.s32.f32 %v447
      %v576 = vcvt.s32.f32 %v448
      %v577 = vcvt.s32.f32 %v449
      %v578 = vcvt.s32.f32 %v450
      %v579 = vcvt.s32.f32 %v451
      %v580 = vcvt.s32.f32 %v452
      %v581 = vcvt.s32.f32 %v453
      %v582 = vcvt.s32.f32 %v454
      %v583 = vcvt.s32.f32 %v455
      %v584 = vcvt.s32.f32 %v456
      %v585 = vcvt.s32.f32 %v457
      %v586 = vcvt.s32.f32 %v458
      %v587 = vcvt.s32.f32 %v459
      %v588 = vcvt.s32.f32 %v460
      %v589 = vcvt.s32.f32 %v461
      %v590 = vcvt.s32.f32 %v462
      %v591 = vcvt.s32.f32 %v463
      %v592 = vcvt.s32.f32 %v464
      %v593 = vcvt.s32.f32 %v465
      %v594 = vcvt.s32.f32 %v466
      %v595 = vcvt.s32.f32 %v467
      %v596 = vcvt.s32.f32 %v468
      %v597 = vcvt.s32.f32 %v469
      %v598 = vcvt.s32.f32 %v470
      %v599 = vcvt.s32.f32 %v471
      %v600 = vcvt.s32.f32 %v472
      %v601 = vcvt.s32.f32 %v473
      %v602 = vcvt.s32.f32 %v474
      %v603 = vcvt.s32.f32 %v475
      %v604 = vcvt.s32.f32 %v476
      %v605 = vcvt.s32.f32 %v477
      %v606 = vcvt.s32.f32 %v478
      %v607 = vcvt.s32.f32 %v479
      %v608 = vcvt.s32.f32 %v480
      %v609 = vcvt.s32.f32 %v481
      %v610 = vcvt.s32.f32 %v482
      %v611 = vcvt.s32.f32 %v483
      %v612 = vcvt.s32.f32 %v484
      %v613 = vcvt.s32.f32 %v485
      %v614 = vcvt.s32.f32 %v486
      %v615 = vcvt.s32.f32 %v487
      %v616 = vcvt.s32.f32 %v488
      %v617 = vcvt.s32.f32 %v489
      %v618 = vcvt.s32.f32 %v490
      %v619 = vcvt.s32.f32 %v491
      %v620 = vcvt.s32.f32 %v492
      %v621 = vcvt.s32.f32 %v493
      %v622 = vcvt.s32.f32 %v494
      %v623 = vcvt.s32.f32 %v495
      %v624 = vcvt.s32.f32 %v496
      %v625 = vcvt.s32.f32 %v497
      %v626 = vcvt.s32.f32 %v498
      %v627 = vcvt.s32.f32 %v499
      %v628 = vcvt.s32.f32 %v500
      %v629 = vcvt.s32.f32 %v501
      %v630 = vcvt.s32.f32 %v502
      %v631 = vcvt.s32.f32 %v503
      %v632 = vcvt.s32.f32 %v504
      %v633 = vcvt.s32.f32 %v505
      %v634 = vcvt.s32.f32 %v506
      %v635 = vcvt.s32.f32 %v507
      %v636 = vcvt.s32.f32 %v508
      %v637 = vcvt.s32.f32 %v509
      %v638 = vcvt.s32.f32 %v510
      %v639 = vcvt.s32.f32 %v511
      %v640 = vcvt.s32.f32 %v512
      %v641 = vcvt.s32.f32 %v513
      %v642 = vcvt.s32.f32 %v514
      %v643 = vcvt.s32.f32 %v515
      %v644 = vcvt.s32.f32 %v516
      %v645 = vcvt.s32.f32 %v517
      %v646 = vcvt.s32.f32 %v518
      %v647 = vcvt.s32.f32 %v519
      %v648 = vcvt.s32.f32 %v520
      %v649 = vcvt.s32.f32 %v521
      %v650 = vcvt.s32.f32 %v522
      %v651 = vcvt.s32.f32 %v523
      %v652 = vcvt.s32.f32 %v524
      %v653 = vcvt.s32.f32 %v525
      %v654 = vcvt.s32.f32 %v526
      %v655 = vcvt.s32.f32 %v527
      %v656 = vcvt.s32.f32 %v528
      %v657 = vcvt.s32.f32 %v529
      %v658 = vcvt.s32.f32 %v530
      %v659 = vcvt.s32.f32 %v531
      %v660 = vcvt.s32.f32 %v532
      %v661 = vcvt.s32.f32 %v533
      %v662 = vcvt.s32.f32 %v534
      %v663 = vcvt.s32.f32 %v535
      %v664 = vcvt.s32.f32 %v536
      %v665 = vcvt.s32.f32 %v537
      %v666 = vcvt.s32.f32 %v538
      %v667 = vcvt.s32.f32 %v539
      %v668 = vcvt.s32.f32 %v540
      %v669 = vcvt.s32.f32 %v541
      %v670 = vcvt.s32.f32 %v542
      %v671 = vcvt.s32.f32 %v543
      %v672 = vcvt.s32.f32 %v544
      %v673 = vcvt.s32.f32 %v545
      %v674 = vcvt.s32.f32 %v546
      %v675 = vcvt.s32.f32 %v547
      %v676 = vcvt.s32.f32 %v548
      %v677 = vcvt.s32.f32 %v549
      %v678 = vcvt.s32.f32 %v550
      %v679 = vcvt.s32.f32 %v551
      %v680 = vcvt.s32.f32 %v552
      %v681 = vcvt.s32.f32 %v553
      %v682 = vcvt.s32.f32 %v554
      %v683 = vcvt.s32.f32 %v555
      %v684 = vcvt.s32.f32 %v556
      %v685 = vcvt.s32.f32 %v557
      %v686 = vcvt.s32.f32 %v558
      %v687 = vcvt.s32.f32 %v559
      %v688 = vcvt.s32.f32 %v560
      %v689 = vcvt.s32.f32 %v561
      %v690 = vcvt.s32.f32 %v562
      %v691 = vcvt.s32.f32 %v563
      %v692 = vcvt.s32.f32 %v564
      %v693 = vcvt.s32.f32 %v565
      %v694 = vcvt.s32.f32 %v566
      %v695 = vcvt.s32.f32 %v567
      %v696 = vcvt.s32.f32 %v568
      %v697 = vcvt.s32.f32 %v569
      %v698 = vpack.c.bf16 %v574, %v570
      %v699 = vpack.c.bf16 %v575, %v571
      %v700 = vpack.c.bf16 %v576, %v572
      %v701 = vpack.c.bf16 %v577, %v573
      %v702 = vpack.c.bf16 %v582, %v578
      %v703 = vpack.c.bf16 %v583, %v579
      %v704 = vpack.c.bf16 %v584, %v580
      %v705 = vpack.c.bf16 %v585, %v581
      %v706 = vpack.c.bf16 %v590, %v586
      %v707 = vpack.c.bf16 %v591, %v587
      %v708 = vpack.c.bf16 %v592, %v588
      %v709 = vpack.c.bf16 %v593, %v589
      %v710 = vpack.c.bf16 %v598, %v594
      %v711 = vpack.c.bf16 %v599, %v595
      %v712 = vpack.c.bf16 %v600, %v596
      %v713 = vpack.c.bf16 %v601, %v597
      %v714 = vpack.c.bf16 %v606, %v602
      %v715 = vpack.c.bf16 %v607, %v603
      %v716 = vpack.c.bf16 %v608, %v604
      %v717 = vpack.c.bf16 %v609, %v605
      %v718 = vpack.c.bf16 %v614, %v610
      %v719 = vpack.c.bf16 %v615, %v611
      %v720 = vpack.c.bf16 %v616, %v612
      %v721 = vpack.c.bf16 %v617, %v613
      %v722 = vpack.c.bf16 %v622, %v618
      %v723 = vpack.c.bf16 %v623, %v619
      %v724 = vpack.c.bf16 %v624, %v620
      %v725 = vpack.c.bf16 %v625, %v621
      %v726 = vpack.c.bf16 %v630, %v626
      %v727 = vpack.c.bf16 %v631, %v627
      %v728 = vpack.c.bf16 %v632, %v628
      %v729 = vpack.c.bf16 %v633, %v629
      %v730 = vpack.c.bf16 %v638, %v634
      %v731 = vpack.c.bf16 %v639, %v635
      %v732 = vpack.c.bf16 %v640, %v636
      %v733 = vpack.c.bf16 %v641, %v637
      %v734 = vpack.c.bf16 %v646, %v642
      %v735 = vpack.c.bf16 %v647, %v643
      %v736 = vpack.c.bf16 %v648, %v644
      %v737 = vpack.c.bf16 %v649, %v645
      %v738 = vpack.c.bf16 %v654, %v650
      %v739 = vpack.c.bf16 %v655, %v651
      %v740 = vpack.c.bf16 %v656, %v652
      %v741 = vpack.c.bf16 %v657, %v653
      %v742 = vpack.c.bf16 %v662, %v658
      %v743 = vpack.c.bf16 %v663, %v659
      %v744 = vpack.c.bf16 %v664, %v660
      %v745 = vpack.c.bf16 %v665, %v661
      %v746 = vpack.c.bf16 %v670, %v666
      %v747 = vpack.c.bf16 %v671, %v667
      %v748 = vpack.c.bf16 %v672, %v668
      %v749 = vpack.c.bf16 %v673, %v669
      %v750 = vpack.c.bf16 %v678, %v674
      %v751 = vpack.c.bf16 %v679, %v675
      %v752 = vpack.c.bf16 %v680, %v676
      %v753 = vpack.c.bf16 %v681, %v677
      %v754 = vpack.c.bf16 %v686, %v682
      %v755 = vpack.c.bf16 %v687, %v683
      %v756 = vpack.c.bf16 %v688, %v684
      %v757 = vpack.c.bf16 %v689, %v685
      %v758 = vpack.c.bf16 %v694, %v690
      %v759 = vpack.c.bf16 %v695, %v691
      %v760 = vpack.c.bf16 %v696, %v692
      %v761 = vpack.c.bf16 %v697, %v693
      %v762 = vlaneseq
      %v763 = vshrl.u32 %v762, 7
      %v764 = vsub.s32 0, %v763
      %v765 = vrot.slane %v263, %v764
      %v766 = vlaneseq
      %v767 = vshrl.u32 %v766, 7
      %v768 = vsub.s32 1, %v767
      %v769 = vrot.slane %v263, %v768
      %v770 = vlaneseq
      %v771 = vshrl.u32 %v770, 7
      %v772 = vsub.s32 2, %v771
      %v773 = vrot.slane %v263, %v772
      %v774 = vlaneseq
      %v775 = vshrl.u32 %v774, 7
      %v776 = vsub.s32 3, %v775
      %v777 = vrot.slane %v263, %v776
      %vm778 = vcmp.eq.s32.totalorder %v266, %v765
      %vm779 = vcmp.eq.s32.totalorder %v266, %v769
      %vm780 = vcmp.eq.s32.totalorder %v266, %v773
      %vm781 = vcmp.eq.s32.totalorder %v266, %v777
      %vm782 = vcmp.eq.s32.totalorder %v267, %v765
      %vm783 = vcmp.eq.s32.totalorder %v267, %v769
      %vm784 = vcmp.eq.s32.totalorder %v267, %v773
      %vm785 = vcmp.eq.s32.totalorder %v267, %v777
      %vm786 = vcmp.eq.s32.totalorder %v268, %v765
      %vm787 = vcmp.eq.s32.totalorder %v268, %v769
      %vm788 = vcmp.eq.s32.totalorder %v268, %v773
      %vm789 = vcmp.eq.s32.totalorder %v268, %v777
      %vm790 = vcmp.eq.s32.totalorder %v269, %v765
      %vm791 = vcmp.eq.s32.totalorder %v269, %v769
      %vm792 = vcmp.eq.s32.totalorder %v269, %v773
      %vm793 = vcmp.eq.s32.totalorder %v269, %v777
      %vm794 = vcmp.eq.s32.totalorder %v270, %v765
      %vm795 = vcmp.eq.s32.totalorder %v270, %v769
      %vm796 = vcmp.eq.s32.totalorder %v270, %v773
      %vm797 = vcmp.eq.s32.totalorder %v270, %v777
      %vm798 = vcmp.eq.s32.totalorder %v271, %v765
      %vm799 = vcmp.eq.s32.totalorder %v271, %v769
      %vm800 = vcmp.eq.s32.totalorder %v271, %v773
      %vm801 = vcmp.eq.s32.totalorder %v271, %v777
      %vm802 = vcmp.eq.s32.totalorder %v272, %v765
      %vm803 = vcmp.eq.s32.totalorder %v272, %v769
      %vm804 = vcmp.eq.s32.totalorder %v272, %v773
      %vm805 = vcmp.eq.s32.totalorder %v272, %v777
      %vm806 = vcmp.eq.s32.totalorder %v273, %v765
      %vm807 = vcmp.eq.s32.totalorder %v273, %v769
      %vm808 = vcmp.eq.s32.totalorder %v273, %v773
      %vm809 = vcmp.eq.s32.totalorder %v273, %v777
      %vm810 = vcmp.eq.s32.totalorder %v274, %v765
      %vm811 = vcmp.eq.s32.totalorder %v274, %v769
      %vm812 = vcmp.eq.s32.totalorder %v274, %v773
      %vm813 = vcmp.eq.s32.totalorder %v274, %v777
      %vm814 = vcmp.eq.s32.totalorder %v275, %v765
      %vm815 = vcmp.eq.s32.totalorder %v275, %v769
      %vm816 = vcmp.eq.s32.totalorder %v275, %v773
      %vm817 = vcmp.eq.s32.totalorder %v275, %v777
      %vm818 = vcmp.eq.s32.totalorder %v276, %v765
      %vm819 = vcmp.eq.s32.totalorder %v276, %v769
      %vm820 = vcmp.eq.s32.totalorder %v276, %v773
      %vm821 = vcmp.eq.s32.totalorder %v276, %v777
      %vm822 = vcmp.eq.s32.totalorder %v277, %v765
      %vm823 = vcmp.eq.s32.totalorder %v277, %v769
      %vm824 = vcmp.eq.s32.totalorder %v277, %v773
      %vm825 = vcmp.eq.s32.totalorder %v277, %v777
      %vm826 = vcmp.eq.s32.totalorder %v278, %v765
      %vm827 = vcmp.eq.s32.totalorder %v278, %v769
      %vm828 = vcmp.eq.s32.totalorder %v278, %v773
      %vm829 = vcmp.eq.s32.totalorder %v278, %v777
      %vm830 = vcmp.eq.s32.totalorder %v279, %v765
      %vm831 = vcmp.eq.s32.totalorder %v279, %v769
      %vm832 = vcmp.eq.s32.totalorder %v279, %v773
      %vm833 = vcmp.eq.s32.totalorder %v279, %v777
      %vm834 = vcmp.eq.s32.totalorder %v280, %v765
      %vm835 = vcmp.eq.s32.totalorder %v280, %v769
      %vm836 = vcmp.eq.s32.totalorder %v280, %v773
      %vm837 = vcmp.eq.s32.totalorder %v280, %v777
      %vm838 = vcmp.eq.s32.totalorder %v281, %v765
      %vm839 = vcmp.eq.s32.totalorder %v281, %v769
      %vm840 = vcmp.eq.s32.totalorder %v281, %v773
      %vm841 = vcmp.eq.s32.totalorder %v281, %v777
      %vm842 = vcmp.eq.s32.totalorder %v282, %v765
      %vm843 = vcmp.eq.s32.totalorder %v282, %v769
      %vm844 = vcmp.eq.s32.totalorder %v282, %v773
      %vm845 = vcmp.eq.s32.totalorder %v282, %v777
      %vm846 = vcmp.eq.s32.totalorder %v283, %v765
      %vm847 = vcmp.eq.s32.totalorder %v283, %v769
      %vm848 = vcmp.eq.s32.totalorder %v283, %v773
      %vm849 = vcmp.eq.s32.totalorder %v283, %v777
      %vm850 = vcmp.eq.s32.totalorder %v284, %v765
      %vm851 = vcmp.eq.s32.totalorder %v284, %v769
      %vm852 = vcmp.eq.s32.totalorder %v284, %v773
      %vm853 = vcmp.eq.s32.totalorder %v284, %v777
      %vm854 = vcmp.eq.s32.totalorder %v285, %v765
      %vm855 = vcmp.eq.s32.totalorder %v285, %v769
      %vm856 = vcmp.eq.s32.totalorder %v285, %v773
      %vm857 = vcmp.eq.s32.totalorder %v285, %v777
      %vm858 = vcmp.eq.s32.totalorder %v286, %v765
      %vm859 = vcmp.eq.s32.totalorder %v286, %v769
      %vm860 = vcmp.eq.s32.totalorder %v286, %v773
      %vm861 = vcmp.eq.s32.totalorder %v286, %v777
      %vm862 = vcmp.eq.s32.totalorder %v287, %v765
      %vm863 = vcmp.eq.s32.totalorder %v287, %v769
      %vm864 = vcmp.eq.s32.totalorder %v287, %v773
      %vm865 = vcmp.eq.s32.totalorder %v287, %v777
      %vm866 = vcmp.eq.s32.totalorder %v288, %v765
      %vm867 = vcmp.eq.s32.totalorder %v288, %v769
      %vm868 = vcmp.eq.s32.totalorder %v288, %v773
      %vm869 = vcmp.eq.s32.totalorder %v288, %v777
      %vm870 = vcmp.eq.s32.totalorder %v289, %v765
      %vm871 = vcmp.eq.s32.totalorder %v289, %v769
      %vm872 = vcmp.eq.s32.totalorder %v289, %v773
      %vm873 = vcmp.eq.s32.totalorder %v289, %v777
      %vm874 = vcmp.eq.s32.totalorder %v290, %v765
      %vm875 = vcmp.eq.s32.totalorder %v290, %v769
      %vm876 = vcmp.eq.s32.totalorder %v290, %v773
      %vm877 = vcmp.eq.s32.totalorder %v290, %v777
      %vm878 = vcmp.eq.s32.totalorder %v291, %v765
      %vm879 = vcmp.eq.s32.totalorder %v291, %v769
      %vm880 = vcmp.eq.s32.totalorder %v291, %v773
      %vm881 = vcmp.eq.s32.totalorder %v291, %v777
      %vm882 = vcmp.eq.s32.totalorder %v292, %v765
      %vm883 = vcmp.eq.s32.totalorder %v292, %v769
      %vm884 = vcmp.eq.s32.totalorder %v292, %v773
      %vm885 = vcmp.eq.s32.totalorder %v292, %v777
      %vm886 = vcmp.eq.s32.totalorder %v293, %v765
      %vm887 = vcmp.eq.s32.totalorder %v293, %v769
      %vm888 = vcmp.eq.s32.totalorder %v293, %v773
      %vm889 = vcmp.eq.s32.totalorder %v293, %v777
      %vm890 = vcmp.eq.s32.totalorder %v294, %v765
      %vm891 = vcmp.eq.s32.totalorder %v294, %v769
      %vm892 = vcmp.eq.s32.totalorder %v294, %v773
      %vm893 = vcmp.eq.s32.totalorder %v294, %v777
      %vm894 = vcmp.eq.s32.totalorder %v295, %v765
      %vm895 = vcmp.eq.s32.totalorder %v295, %v769
      %vm896 = vcmp.eq.s32.totalorder %v295, %v773
      %vm897 = vcmp.eq.s32.totalorder %v295, %v777
      %vm898 = vcmp.eq.s32.totalorder %v296, %v765
      %vm899 = vcmp.eq.s32.totalorder %v296, %v769
      %vm900 = vcmp.eq.s32.totalorder %v296, %v773
      %vm901 = vcmp.eq.s32.totalorder %v296, %v777
      %vm902 = vcmp.eq.s32.totalorder %v297, %v765
      %vm903 = vcmp.eq.s32.totalorder %v297, %v769
      %vm904 = vcmp.eq.s32.totalorder %v297, %v773
      %vm905 = vcmp.eq.s32.totalorder %v297, %v777
      %v906 = vsel %vm778, 1, 0
      %v907 = vsel %vm779, 1, 0
      %v908 = vsel %vm780, 1, 0
      %v909 = vsel %vm781, 1, 0
      %v910 = vsel %vm782, 1, 0
      %v911 = vsel %vm783, 1, 0
      %v912 = vsel %vm784, 1, 0
      %v913 = vsel %vm785, 1, 0
      %v914 = vsel %vm786, 1, 0
      %v915 = vsel %vm787, 1, 0
      %v916 = vsel %vm788, 1, 0
      %v917 = vsel %vm789, 1, 0
      %v918 = vsel %vm790, 1, 0
      %v919 = vsel %vm791, 1, 0
      %v920 = vsel %vm792, 1, 0
      %v921 = vsel %vm793, 1, 0
      %v922 = vsel %vm794, 1, 0
      %v923 = vsel %vm795, 1, 0
      %v924 = vsel %vm796, 1, 0
      %v925 = vsel %vm797, 1, 0
      %v926 = vsel %vm798, 1, 0
      %v927 = vsel %vm799, 1, 0
      %v928 = vsel %vm800, 1, 0
      %v929 = vsel %vm801, 1, 0
      %v930 = vsel %vm802, 1, 0
      %v931 = vsel %vm803, 1, 0
      %v932 = vsel %vm804, 1, 0
      %v933 = vsel %vm805, 1, 0
      %v934 = vsel %vm806, 1, 0
      %v935 = vsel %vm807, 1, 0
      %v936 = vsel %vm808, 1, 0
      %v937 = vsel %vm809, 1, 0
      %v938 = vsel %vm810, 1, 0
      %v939 = vsel %vm811, 1, 0
      %v940 = vsel %vm812, 1, 0
      %v941 = vsel %vm813, 1, 0
      %v942 = vsel %vm814, 1, 0
      %v943 = vsel %vm815, 1, 0
      %v944 = vsel %vm816, 1, 0
      %v945 = vsel %vm817, 1, 0
      %v946 = vsel %vm818, 1, 0
      %v947 = vsel %vm819, 1, 0
      %v948 = vsel %vm820, 1, 0
      %v949 = vsel %vm821, 1, 0
      %v950 = vsel %vm822, 1, 0
      %v951 = vsel %vm823, 1, 0
      %v952 = vsel %vm824, 1, 0
      %v953 = vsel %vm825, 1, 0
      %v954 = vsel %vm826, 1, 0
      %v955 = vsel %vm827, 1, 0
      %v956 = vsel %vm828, 1, 0
      %v957 = vsel %vm829, 1, 0
      %v958 = vsel %vm830, 1, 0
      %v959 = vsel %vm831, 1, 0
      %v960 = vsel %vm832, 1, 0
      %v961 = vsel %vm833, 1, 0
      %v962 = vsel %vm834, 1, 0
      %v963 = vsel %vm835, 1, 0
      %v964 = vsel %vm836, 1, 0
      %v965 = vsel %vm837, 1, 0
      %v966 = vsel %vm838, 1, 0
      %v967 = vsel %vm839, 1, 0
      %v968 = vsel %vm840, 1, 0
      %v969 = vsel %vm841, 1, 0
      %v970 = vsel %vm842, 1, 0
      %v971 = vsel %vm843, 1, 0
      %v972 = vsel %vm844, 1, 0
      %v973 = vsel %vm845, 1, 0
      %v974 = vsel %vm846, 1, 0
      %v975 = vsel %vm847, 1, 0
      %v976 = vsel %vm848, 1, 0
      %v977 = vsel %vm849, 1, 0
      %v978 = vsel %vm850, 1, 0
      %v979 = vsel %vm851, 1, 0
      %v980 = vsel %vm852, 1, 0
      %v981 = vsel %vm853, 1, 0
      %v982 = vsel %vm854, 1, 0
      %v983 = vsel %vm855, 1, 0
      %v984 = vsel %vm856, 1, 0
      %v985 = vsel %vm857, 1, 0
      %v986 = vsel %vm858, 1, 0
      %v987 = vsel %vm859, 1, 0
      %v988 = vsel %vm860, 1, 0
      %v989 = vsel %vm861, 1, 0
      %v990 = vsel %vm862, 1, 0
      %v991 = vsel %vm863, 1, 0
      %v992 = vsel %vm864, 1, 0
      %v993 = vsel %vm865, 1, 0
      %v994 = vsel %vm866, 1, 0
      %v995 = vsel %vm867, 1, 0
      %v996 = vsel %vm868, 1, 0
      %v997 = vsel %vm869, 1, 0
      %v998 = vsel %vm870, 1, 0
      %v999 = vsel %vm871, 1, 0
      %v1000 = vsel %vm872, 1, 0
      %v1001 = vsel %vm873, 1, 0
      %v1002 = vsel %vm874, 1, 0
      %v1003 = vsel %vm875, 1, 0
      %v1004 = vsel %vm876, 1, 0
      %v1005 = vsel %vm877, 1, 0
      %v1006 = vsel %vm878, 1, 0
      %v1007 = vsel %vm879, 1, 0
      %v1008 = vsel %vm880, 1, 0
      %v1009 = vsel %vm881, 1, 0
      %v1010 = vsel %vm882, 1, 0
      %v1011 = vsel %vm883, 1, 0
      %v1012 = vsel %vm884, 1, 0
      %v1013 = vsel %vm885, 1, 0
      %v1014 = vsel %vm886, 1, 0
      %v1015 = vsel %vm887, 1, 0
      %v1016 = vsel %vm888, 1, 0
      %v1017 = vsel %vm889, 1, 0
      %v1018 = vsel %vm890, 1, 0
      %v1019 = vsel %vm891, 1, 0
      %v1020 = vsel %vm892, 1, 0
      %v1021 = vsel %vm893, 1, 0
      %v1022 = vsel %vm894, 1, 0
      %v1023 = vsel %vm895, 1, 0
      %v1024 = vsel %vm896, 1, 0
      %v1025 = vsel %vm897, 1, 0
      %v1026 = vsel %vm898, 1, 0
      %v1027 = vsel %vm899, 1, 0
      %v1028 = vsel %vm900, 1, 0
      %v1029 = vsel %vm901, 1, 0
      %v1030 = vsel %vm902, 1, 0
      %v1031 = vsel %vm903, 1, 0
      %v1032 = vsel %vm904, 1, 0
      %v1033 = vsel %vm905, 1, 0
      %v1034 = vcvt.s32.f32 %v906
      %v1035 = vcvt.s32.f32 %v907
      %v1036 = vcvt.s32.f32 %v908
      %v1037 = vcvt.s32.f32 %v909
      %v1038 = vcvt.s32.f32 %v910
      %v1039 = vcvt.s32.f32 %v911
      %v1040 = vcvt.s32.f32 %v912
      %v1041 = vcvt.s32.f32 %v913
      %v1042 = vcvt.s32.f32 %v914
      %v1043 = vcvt.s32.f32 %v915
      %v1044 = vcvt.s32.f32 %v916
      %v1045 = vcvt.s32.f32 %v917
      %v1046 = vcvt.s32.f32 %v918
      %v1047 = vcvt.s32.f32 %v919
      %v1048 = vcvt.s32.f32 %v920
      %v1049 = vcvt.s32.f32 %v921
      %v1050 = vcvt.s32.f32 %v922
      %v1051 = vcvt.s32.f32 %v923
      %v1052 = vcvt.s32.f32 %v924
      %v1053 = vcvt.s32.f32 %v925
      %v1054 = vcvt.s32.f32 %v926
      %v1055 = vcvt.s32.f32 %v927
      %v1056 = vcvt.s32.f32 %v928
      %v1057 = vcvt.s32.f32 %v929
      %v1058 = vcvt.s32.f32 %v930
      %v1059 = vcvt.s32.f32 %v931
      %v1060 = vcvt.s32.f32 %v932
      %v1061 = vcvt.s32.f32 %v933
      %v1062 = vcvt.s32.f32 %v934
      %v1063 = vcvt.s32.f32 %v935
      %v1064 = vcvt.s32.f32 %v936
      %v1065 = vcvt.s32.f32 %v937
      %v1066 = vcvt.s32.f32 %v938
      %v1067 = vcvt.s32.f32 %v939
      %v1068 = vcvt.s32.f32 %v940
      %v1069 = vcvt.s32.f32 %v941
      %v1070 = vcvt.s32.f32 %v942
      %v1071 = vcvt.s32.f32 %v943
      %v1072 = vcvt.s32.f32 %v944
      %v1073 = vcvt.s32.f32 %v945
      %v1074 = vcvt.s32.f32 %v946
      %v1075 = vcvt.s32.f32 %v947
      %v1076 = vcvt.s32.f32 %v948
      %v1077 = vcvt.s32.f32 %v949
      %v1078 = vcvt.s32.f32 %v950
      %v1079 = vcvt.s32.f32 %v951
      %v1080 = vcvt.s32.f32 %v952
      %v1081 = vcvt.s32.f32 %v953
      %v1082 = vcvt.s32.f32 %v954
      %v1083 = vcvt.s32.f32 %v955
      %v1084 = vcvt.s32.f32 %v956
      %v1085 = vcvt.s32.f32 %v957
      %v1086 = vcvt.s32.f32 %v958
      %v1087 = vcvt.s32.f32 %v959
      %v1088 = vcvt.s32.f32 %v960
      %v1089 = vcvt.s32.f32 %v961
      %v1090 = vcvt.s32.f32 %v962
      %v1091 = vcvt.s32.f32 %v963
      %v1092 = vcvt.s32.f32 %v964
      %v1093 = vcvt.s32.f32 %v965
      %v1094 = vcvt.s32.f32 %v966
      %v1095 = vcvt.s32.f32 %v967
      %v1096 = vcvt.s32.f32 %v968
      %v1097 = vcvt.s32.f32 %v969
      %v1098 = vcvt.s32.f32 %v970
      %v1099 = vcvt.s32.f32 %v971
      %v1100 = vcvt.s32.f32 %v972
      %v1101 = vcvt.s32.f32 %v973
      %v1102 = vcvt.s32.f32 %v974
      %v1103 = vcvt.s32.f32 %v975
      %v1104 = vcvt.s32.f32 %v976
      %v1105 = vcvt.s32.f32 %v977
      %v1106 = vcvt.s32.f32 %v978
      %v1107 = vcvt.s32.f32 %v979
      %v1108 = vcvt.s32.f32 %v980
      %v1109 = vcvt.s32.f32 %v981
      %v1110 = vcvt.s32.f32 %v982
      %v1111 = vcvt.s32.f32 %v983
      %v1112 = vcvt.s32.f32 %v984
      %v1113 = vcvt.s32.f32 %v985
      %v1114 = vcvt.s32.f32 %v986
      %v1115 = vcvt.s32.f32 %v987
      %v1116 = vcvt.s32.f32 %v988
      %v1117 = vcvt.s32.f32 %v989
      %v1118 = vcvt.s32.f32 %v990
      %v1119 = vcvt.s32.f32 %v991
      %v1120 = vcvt.s32.f32 %v992
      %v1121 = vcvt.s32.f32 %v993
      %v1122 = vcvt.s32.f32 %v994
      %v1123 = vcvt.s32.f32 %v995
      %v1124 = vcvt.s32.f32 %v996
      %v1125 = vcvt.s32.f32 %v997
      %v1126 = vcvt.s32.f32 %v998
      %v1127 = vcvt.s32.f32 %v999
      %v1128 = vcvt.s32.f32 %v1000
      %v1129 = vcvt.s32.f32 %v1001
      %v1130 = vcvt.s32.f32 %v1002
      %v1131 = vcvt.s32.f32 %v1003
      %v1132 = vcvt.s32.f32 %v1004
      %v1133 = vcvt.s32.f32 %v1005
      %v1134 = vcvt.s32.f32 %v1006
      %v1135 = vcvt.s32.f32 %v1007
      %v1136 = vcvt.s32.f32 %v1008
      %v1137 = vcvt.s32.f32 %v1009
      %v1138 = vcvt.s32.f32 %v1010
      %v1139 = vcvt.s32.f32 %v1011
      %v1140 = vcvt.s32.f32 %v1012
      %v1141 = vcvt.s32.f32 %v1013
      %v1142 = vcvt.s32.f32 %v1014
      %v1143 = vcvt.s32.f32 %v1015
      %v1144 = vcvt.s32.f32 %v1016
      %v1145 = vcvt.s32.f32 %v1017
      %v1146 = vcvt.s32.f32 %v1018
      %v1147 = vcvt.s32.f32 %v1019
      %v1148 = vcvt.s32.f32 %v1020
      %v1149 = vcvt.s32.f32 %v1021
      %v1150 = vcvt.s32.f32 %v1022
      %v1151 = vcvt.s32.f32 %v1023
      %v1152 = vcvt.s32.f32 %v1024
      %v1153 = vcvt.s32.f32 %v1025
      %v1154 = vcvt.s32.f32 %v1026
      %v1155 = vcvt.s32.f32 %v1027
      %v1156 = vcvt.s32.f32 %v1028
      %v1157 = vcvt.s32.f32 %v1029
      %v1158 = vcvt.s32.f32 %v1030
      %v1159 = vcvt.s32.f32 %v1031
      %v1160 = vcvt.s32.f32 %v1032
      %v1161 = vcvt.s32.f32 %v1033
      %v1162 = vpack.c.bf16 %v1038, %v1034
      %v1163 = vpack.c.bf16 %v1039, %v1035
      %v1164 = vpack.c.bf16 %v1040, %v1036
      %v1165 = vpack.c.bf16 %v1041, %v1037
      %v1166 = vpack.c.bf16 %v1046, %v1042
      %v1167 = vpack.c.bf16 %v1047, %v1043
      %v1168 = vpack.c.bf16 %v1048, %v1044
      %v1169 = vpack.c.bf16 %v1049, %v1045
      %v1170 = vpack.c.bf16 %v1054, %v1050
      %v1171 = vpack.c.bf16 %v1055, %v1051
      %v1172 = vpack.c.bf16 %v1056, %v1052
      %v1173 = vpack.c.bf16 %v1057, %v1053
      %v1174 = vpack.c.bf16 %v1062, %v1058
      %v1175 = vpack.c.bf16 %v1063, %v1059
      %v1176 = vpack.c.bf16 %v1064, %v1060
      %v1177 = vpack.c.bf16 %v1065, %v1061
      %v1178 = vpack.c.bf16 %v1070, %v1066
      %v1179 = vpack.c.bf16 %v1071, %v1067
      %v1180 = vpack.c.bf16 %v1072, %v1068
      %v1181 = vpack.c.bf16 %v1073, %v1069
      %v1182 = vpack.c.bf16 %v1078, %v1074
      %v1183 = vpack.c.bf16 %v1079, %v1075
      %v1184 = vpack.c.bf16 %v1080, %v1076
      %v1185 = vpack.c.bf16 %v1081, %v1077
      %v1186 = vpack.c.bf16 %v1086, %v1082
      %v1187 = vpack.c.bf16 %v1087, %v1083
      %v1188 = vpack.c.bf16 %v1088, %v1084
      %v1189 = vpack.c.bf16 %v1089, %v1085
      %v1190 = vpack.c.bf16 %v1094, %v1090
      %v1191 = vpack.c.bf16 %v1095, %v1091
      %v1192 = vpack.c.bf16 %v1096, %v1092
      %v1193 = vpack.c.bf16 %v1097, %v1093
      %v1194 = vpack.c.bf16 %v1102, %v1098
      %v1195 = vpack.c.bf16 %v1103, %v1099
      %v1196 = vpack.c.bf16 %v1104, %v1100
      %v1197 = vpack.c.bf16 %v1105, %v1101
      %v1198 = vpack.c.bf16 %v1110, %v1106
      %v1199 = vpack.c.bf16 %v1111, %v1107
      %v1200 = vpack.c.bf16 %v1112, %v1108
      %v1201 = vpack.c.bf16 %v1113, %v1109
      %v1202 = vpack.c.bf16 %v1118, %v1114
      %v1203 = vpack.c.bf16 %v1119, %v1115
      %v1204 = vpack.c.bf16 %v1120, %v1116
      %v1205 = vpack.c.bf16 %v1121, %v1117
      %v1206 = vpack.c.bf16 %v1126, %v1122
      %v1207 = vpack.c.bf16 %v1127, %v1123
      %v1208 = vpack.c.bf16 %v1128, %v1124
      %v1209 = vpack.c.bf16 %v1129, %v1125
      %v1210 = vpack.c.bf16 %v1134, %v1130
      %v1211 = vpack.c.bf16 %v1135, %v1131
      %v1212 = vpack.c.bf16 %v1136, %v1132
      %v1213 = vpack.c.bf16 %v1137, %v1133
      %v1214 = vpack.c.bf16 %v1142, %v1138
      %v1215 = vpack.c.bf16 %v1143, %v1139
      %v1216 = vpack.c.bf16 %v1144, %v1140
      %v1217 = vpack.c.bf16 %v1145, %v1141
      %v1218 = vpack.c.bf16 %v1150, %v1146
      %v1219 = vpack.c.bf16 %v1151, %v1147
      %v1220 = vpack.c.bf16 %v1152, %v1148
      %v1221 = vpack.c.bf16 %v1153, %v1149
      %v1222 = vpack.c.bf16 %v1158, %v1154
      %v1223 = vpack.c.bf16 %v1159, %v1155
      %v1224 = vpack.c.bf16 %v1160, %v1156
      %v1225 = vpack.c.bf16 %v1161, %v1157
      %1226 = vmatprep.subr.bf16.mxu0 %v1191
      %1227 = vmatpush1.bf16.xpose.msra.mxu0 %v1190
      %1228 = vmatprep.subr.bf16.mxu0 %v1187
      %1229 = vmatpush1.bf16.xpose.msra.mxu0 %v1186
      %1230 = vmatprep.subr.bf16.mxu0 %v1183
      %1231 = vmatpush1.bf16.xpose.msra.mxu0 %v1182
      %1232 = vmatprep.subr.bf16.mxu0 %v1179
      %1233 = vmatpush1.bf16.xpose.msra.mxu0 %v1178
      %1234 = vmatprep.subr.bf16.mxu0 %v1175
      %1235 = vmatpush1.bf16.xpose.msra.mxu0 %v1174
      %1236 = vmatprep.subr.bf16.mxu0 %v1171
      %1237 = vmatpush1.bf16.xpose.msra.mxu0 %v1170
      %1238 = vmatprep.subr.bf16.mxu0 %v1167
      %1239 = vmatpush1.bf16.xpose.msra.mxu0 %v1166
      %1240 = vmatprep.subr.bf16.mxu0 %v1163
      %1241 = vmatpush1.bf16.xpose.msra.mxu0 %v1162
      %1242 = vmatprep.subr.bf16.mxu0 %v1223
      %1243 = vmatpush2.bf16.xpose.msra.mxu0 %v1222
      %1244 = vmatprep.subr.bf16.mxu0 %v1219
      %1245 = vmatpush2.bf16.xpose.msra.mxu0 %v1218
      %1246 = vmatprep.subr.bf16.mxu0 %v1215
      %1247 = vmatpush2.bf16.xpose.msra.mxu0 %v1214
      %1248 = vmatprep.subr.bf16.mxu0 %v1211
      %1249 = vmatpush2.bf16.xpose.msra.mxu0 %v1210
      %1250 = vmatprep.subr.bf16.mxu0 %v1207
      %1251 = vmatpush2.bf16.xpose.msra.mxu0 %v1206
      %1252 = vmatprep.subr.bf16.mxu0 %v1203
      %1253 = vmatpush2.bf16.xpose.msra.mxu0 %v1202
      %1254 = vmatprep.subr.bf16.mxu0 %v1199
      %1255 = vmatpush2.bf16.xpose.msra.mxu0 %v1198
      %1256 = vmatprep.subr.bf16.mxu0 %v1195
      %1257 = vmatpush2.bf16.xpose.msra.mxu0 %v1194
      %1258 = vmatprep.mubr.bf16.mxu0 %v699
      %1259 = vmatmul.mubr.bf16.gmra.mxu0 %v698
      %v1260 = vpop.f32.mrf.mxu0
      %v1261 = vadd.f32 0.0, %v1260
      %v1262 = vpop.f32.mrf.mxu0
      %v1263 = vadd.f32 0.0, %v1262
      %v1264 = vpop.f32.mrf.mxu0
      %v1265 = vadd.f32 0.0, %v1264
      %v1266 = vpop.f32.mrf.mxu0
      %v1267 = vadd.f32 0.0, %v1266
      %1268 = vmatprep.mubr.bf16.mxu0 %v703
      %1269 = vmatmul.mubr.bf16.gmra.mxu0 %v702
      %v1270 = vpop.f32.mrf.mxu0
      %v1271 = vadd.f32 0.0, %v1270
      %v1272 = vpop.f32.mrf.mxu0
      %v1273 = vadd.f32 0.0, %v1272
      %v1274 = vpop.f32.mrf.mxu0
      %v1275 = vadd.f32 0.0, %v1274
      %v1276 = vpop.f32.mrf.mxu0
      %v1277 = vadd.f32 0.0, %v1276
      %1278 = vmatprep.mubr.bf16.mxu0 %v707
      %1279 = vmatmul.mubr.bf16.gmra.mxu0 %v706
      %v1280 = vpop.f32.mrf.mxu0
      %v1281 = vadd.f32 0.0, %v1280
      %v1282 = vpop.f32.mrf.mxu0
      %v1283 = vadd.f32 0.0, %v1282
      %v1284 = vpop.f32.mrf.mxu0
      %v1285 = vadd.f32 0.0, %v1284
      %v1286 = vpop.f32.mrf.mxu0
      %v1287 = vadd.f32 0.0, %v1286
      %1288 = vmatprep.mubr.bf16.mxu0 %v711
      %1289 = vmatmul.mubr.bf16.gmra.mxu0 %v710
      %v1290 = vpop.f32.mrf.mxu0
      %v1291 = vadd.f32 0.0, %v1290
      %v1292 = vpop.f32.mrf.mxu0
      %v1293 = vadd.f32 0.0, %v1292
      %v1294 = vpop.f32.mrf.mxu0
      %v1295 = vadd.f32 0.0, %v1294
      %v1296 = vpop.f32.mrf.mxu0
      %v1297 = vadd.f32 0.0, %v1296
      %1298 = vmatprep.mubr.bf16.mxu0 %v715
      %1299 = vmatmul.mubr.bf16.gmra.mxu0 %v714
      %v1300 = vpop.f32.mrf.mxu0
      %v1301 = vadd.f32 0.0, %v1300
      %v1302 = vpop.f32.mrf.mxu0
      %v1303 = vadd.f32 0.0, %v1302
      %v1304 = vpop.f32.mrf.mxu0
      %v1305 = vadd.f32 0.0, %v1304
      %v1306 = vpop.f32.mrf.mxu0
      %v1307 = vadd.f32 0.0, %v1306
      %1308 = vmatprep.mubr.bf16.mxu0 %v719
      %1309 = vmatmul.mubr.bf16.gmra.mxu0 %v718
      %v1310 = vpop.f32.mrf.mxu0
      %v1311 = vadd.f32 0.0, %v1310
      %v1312 = vpop.f32.mrf.mxu0
      %v1313 = vadd.f32 0.0, %v1312
      %v1314 = vpop.f32.mrf.mxu0
      %v1315 = vadd.f32 0.0, %v1314
      %v1316 = vpop.f32.mrf.mxu0
      %v1317 = vadd.f32 0.0, %v1316
      %1318 = vmatprep.mubr.bf16.mxu0 %v723
      %1319 = vmatmul.mubr.bf16.gmra.mxu0 %v722
      %v1320 = vpop.f32.mrf.mxu0
      %v1321 = vadd.f32 0.0, %v1320
      %v1322 = vpop.f32.mrf.mxu0
      %v1323 = vadd.f32 0.0, %v1322
      %v1324 = vpop.f32.mrf.mxu0
      %v1325 = vadd.f32 0.0, %v1324
      %v1326 = vpop.f32.mrf.mxu0
      %v1327 = vadd.f32 0.0, %v1326
      %1328 = vmatprep.mubr.bf16.mxu0 %v727
      %1329 = vmatmul.mubr.bf16.gmra.mxu0 %v726
      %v1330 = vpop.f32.mrf.mxu0
      %v1331 = vadd.f32 0.0, %v1330
      %v1332 = vpop.f32.mrf.mxu0
      %v1333 = vadd.f32 0.0, %v1332
      %v1334 = vpop.f32.mrf.mxu0
      %v1335 = vadd.f32 0.0, %v1334
      %v1336 = vpop.f32.mrf.mxu0
      %v1337 = vadd.f32 0.0, %v1336
      %1338 = vmatprep.mubr.bf16.mxu0 %v731
      %1339 = vmatmul.mubr.bf16.gmra.mxu0 %v730
      %v1340 = vpop.f32.mrf.mxu0
      %v1341 = vadd.f32 0.0, %v1340
      %v1342 = vpop.f32.mrf.mxu0
      %v1343 = vadd.f32 0.0, %v1342
      %v1344 = vpop.f32.mrf.mxu0
      %v1345 = vadd.f32 0.0, %v1344
      %v1346 = vpop.f32.mrf.mxu0
      %v1347 = vadd.f32 0.0, %v1346
      %1348 = vmatprep.mubr.bf16.mxu0 %v735
      %1349 = vmatmul.mubr.bf16.gmra.mxu0 %v734
      %v1350 = vpop.f32.mrf.mxu0
      %v1351 = vadd.f32 0.0, %v1350
      %v1352 = vpop.f32.mrf.mxu0
      %v1353 = vadd.f32 0.0, %v1352
      %v1354 = vpop.f32.mrf.mxu0
      %v1355 = vadd.f32 0.0, %v1354
      %v1356 = vpop.f32.mrf.mxu0
      %v1357 = vadd.f32 0.0, %v1356
      %1358 = vmatprep.mubr.bf16.mxu0 %v739
      %1359 = vmatmul.mubr.bf16.gmra.mxu0 %v738
      %v1360 = vpop.f32.mrf.mxu0
      %v1361 = vadd.f32 0.0, %v1360
      %v1362 = vpop.f32.mrf.mxu0
      %v1363 = vadd.f32 0.0, %v1362
      %v1364 = vpop.f32.mrf.mxu0
      %v1365 = vadd.f32 0.0, %v1364
      %v1366 = vpop.f32.mrf.mxu0
      %v1367 = vadd.f32 0.0, %v1366
      %1368 = vmatprep.mubr.bf16.mxu0 %v743
      %1369 = vmatmul.mubr.bf16.gmra.mxu0 %v742
      %v1370 = vpop.f32.mrf.mxu0
      %v1371 = vadd.f32 0.0, %v1370
      %v1372 = vpop.f32.mrf.mxu0
      %v1373 = vadd.f32 0.0, %v1372
      %v1374 = vpop.f32.mrf.mxu0
      %v1375 = vadd.f32 0.0, %v1374
      %v1376 = vpop.f32.mrf.mxu0
      %v1377 = vadd.f32 0.0, %v1376
      %1378 = vmatprep.mubr.bf16.mxu0 %v747
      %1379 = vmatmul.mubr.bf16.gmra.mxu0 %v746
      %v1380 = vpop.f32.mrf.mxu0
      %v1381 = vadd.f32 0.0, %v1380
      %v1382 = vpop.f32.mrf.mxu0
      %v1383 = vadd.f32 0.0, %v1382
      %v1384 = vpop.f32.mrf.mxu0
      %v1385 = vadd.f32 0.0, %v1384
      %v1386 = vpop.f32.mrf.mxu0
      %v1387 = vadd.f32 0.0, %v1386
      %1388 = vmatprep.mubr.bf16.mxu0 %v751
      %1389 = vmatmul.mubr.bf16.gmra.mxu0 %v750
      %v1390 = vpop.f32.mrf.mxu0
      %v1391 = vadd.f32 0.0, %v1390
      %v1392 = vpop.f32.mrf.mxu0
      %v1393 = vadd.f32 0.0, %v1392
      %v1394 = vpop.f32.mrf.mxu0
      %v1395 = vadd.f32 0.0, %v1394
      %v1396 = vpop.f32.mrf.mxu0
      %v1397 = vadd.f32 0.0, %v1396
      %1398 = vmatprep.mubr.bf16.mxu0 %v755
      %1399 = vmatmul.mubr.bf16.gmra.mxu0 %v754
      %v1400 = vpop.f32.mrf.mxu0
      %v1401 = vadd.f32 0.0, %v1400
      %v1402 = vpop.f32.mrf.mxu0
      %v1403 = vadd.f32 0.0, %v1402
      %v1404 = vpop.f32.mrf.mxu0
      %v1405 = vadd.f32 0.0, %v1404
      %v1406 = vpop.f32.mrf.mxu0
      %v1407 = vadd.f32 0.0, %v1406
      %1408 = vmatprep.mubr.bf16.mxu0 %v759
      %1409 = vmatmul.mubr.bf16.gmra.mxu0 %v758
      %v1410 = vpop.f32.mrf.mxu0
      %v1411 = vadd.f32 0.0, %v1410
      %v1412 = vpop.f32.mrf.mxu0
      %v1413 = vadd.f32 0.0, %v1412
      %v1414 = vpop.f32.mrf.mxu0
      %v1415 = vadd.f32 0.0, %v1414
      %v1416 = vpop.f32.mrf.mxu0
      %v1417 = vadd.f32 0.0, %v1416
      %1418 = vdwg.mxu0
      %1419 = vmatprep.subr.bf16.mxu0 %v1193
      %1420 = vmatpush1.bf16.xpose.msra.mxu0 %v1192
      %1421 = vmatprep.subr.bf16.mxu0 %v1189
      %1422 = vmatpush1.bf16.xpose.msra.mxu0 %v1188
      %1423 = vmatprep.subr.bf16.mxu0 %v1185
      %1424 = vmatpush1.bf16.xpose.msra.mxu0 %v1184
      %1425 = vmatprep.subr.bf16.mxu0 %v1181
      %1426 = vmatpush1.bf16.xpose.msra.mxu0 %v1180
      %1427 = vmatprep.subr.bf16.mxu0 %v1177
      %1428 = vmatpush1.bf16.xpose.msra.mxu0 %v1176
      %1429 = vmatprep.subr.bf16.mxu0 %v1173
      %1430 = vmatpush1.bf16.xpose.msra.mxu0 %v1172
      %1431 = vmatprep.subr.bf16.mxu0 %v1169
      %1432 = vmatpush1.bf16.xpose.msra.mxu0 %v1168
      %1433 = vmatprep.subr.bf16.mxu0 %v1165
      %1434 = vmatpush1.bf16.xpose.msra.mxu0 %v1164
      %1435 = vmatprep.subr.bf16.mxu0 %v1225
      %1436 = vmatpush2.bf16.xpose.msra.mxu0 %v1224
      %1437 = vmatprep.subr.bf16.mxu0 %v1221
      %1438 = vmatpush2.bf16.xpose.msra.mxu0 %v1220
      %1439 = vmatprep.subr.bf16.mxu0 %v1217
      %1440 = vmatpush2.bf16.xpose.msra.mxu0 %v1216
      %1441 = vmatprep.subr.bf16.mxu0 %v1213
      %1442 = vmatpush2.bf16.xpose.msra.mxu0 %v1212
      %1443 = vmatprep.subr.bf16.mxu0 %v1209
      %1444 = vmatpush2.bf16.xpose.msra.mxu0 %v1208
      %1445 = vmatprep.subr.bf16.mxu0 %v1205
      %1446 = vmatpush2.bf16.xpose.msra.mxu0 %v1204
      %1447 = vmatprep.subr.bf16.mxu0 %v1201
      %1448 = vmatpush2.bf16.xpose.msra.mxu0 %v1200
      %1449 = vmatprep.subr.bf16.mxu0 %v1197
      %1450 = vmatpush2.bf16.xpose.msra.mxu0 %v1196
      %1451 = vmatprep.mubr.bf16.mxu0 %v701
      %1452 = vmatmul.mubr.bf16.gmra.mxu0 %v700
      %v1453 = vpop.f32.mrf.mxu0
      %v1454 = vadd.f32 %v1261, %v1453
      %v1455 = vpop.f32.mrf.mxu0
      %v1456 = vadd.f32 %v1263, %v1455
      %v1457 = vpop.f32.mrf.mxu0
      %v1458 = vadd.f32 %v1265, %v1457
      %v1459 = vpop.f32.mrf.mxu0
      %v1460 = vadd.f32 %v1267, %v1459
      %1461 = vmatprep.mubr.bf16.mxu0 %v705
      %1462 = vmatmul.mubr.bf16.gmra.mxu0 %v704
      %v1463 = vpop.f32.mrf.mxu0
      %v1464 = vadd.f32 %v1271, %v1463
      %v1465 = vpop.f32.mrf.mxu0
      %v1466 = vadd.f32 %v1273, %v1465
      %v1467 = vpop.f32.mrf.mxu0
      %v1468 = vadd.f32 %v1275, %v1467
      %v1469 = vpop.f32.mrf.mxu0
      %v1470 = vadd.f32 %v1277, %v1469
      %1471 = vmatprep.mubr.bf16.mxu0 %v709
      %1472 = vmatmul.mubr.bf16.gmra.mxu0 %v708
      %v1473 = vpop.f32.mrf.mxu0
      %v1474 = vadd.f32 %v1281, %v1473
      %v1475 = vpop.f32.mrf.mxu0
      %v1476 = vadd.f32 %v1283, %v1475
      %v1477 = vpop.f32.mrf.mxu0
      %v1478 = vadd.f32 %v1285, %v1477
      %v1479 = vpop.f32.mrf.mxu0
      %v1480 = vadd.f32 %v1287, %v1479
      %1481 = vmatprep.mubr.bf16.mxu0 %v713
      %1482 = vmatmul.mubr.bf16.gmra.mxu0 %v712
      %v1483 = vpop.f32.mrf.mxu0
      %v1484 = vadd.f32 %v1291, %v1483
      %v1485 = vpop.f32.mrf.mxu0
      %v1486 = vadd.f32 %v1293, %v1485
      %v1487 = vpop.f32.mrf.mxu0
      %v1488 = vadd.f32 %v1295, %v1487
      %v1489 = vpop.f32.mrf.mxu0
      %v1490 = vadd.f32 %v1297, %v1489
      %1491 = vmatprep.mubr.bf16.mxu0 %v717
      %1492 = vmatmul.mubr.bf16.gmra.mxu0 %v716
      %v1493 = vpop.f32.mrf.mxu0
      %v1494 = vadd.f32 %v1301, %v1493
      %v1495 = vpop.f32.mrf.mxu0
      %v1496 = vadd.f32 %v1303, %v1495
      %v1497 = vpop.f32.mrf.mxu0
      %v1498 = vadd.f32 %v1305, %v1497
      %v1499 = vpop.f32.mrf.mxu0
      %v1500 = vadd.f32 %v1307, %v1499
      %1501 = vmatprep.mubr.bf16.mxu0 %v721
      %1502 = vmatmul.mubr.bf16.gmra.mxu0 %v720
      %v1503 = vpop.f32.mrf.mxu0
      %v1504 = vadd.f32 %v1311, %v1503
      %v1505 = vpop.f32.mrf.mxu0
      %v1506 = vadd.f32 %v1313, %v1505
      %v1507 = vpop.f32.mrf.mxu0
      %v1508 = vadd.f32 %v1315, %v1507
      %v1509 = vpop.f32.mrf.mxu0
      %v1510 = vadd.f32 %v1317, %v1509
      %1511 = vmatprep.mubr.bf16.mxu0 %v725
      %1512 = vmatmul.mubr.bf16.gmra.mxu0 %v724
      %v1513 = vpop.f32.mrf.mxu0
      %v1514 = vadd.f32 %v1321, %v1513
      %v1515 = vpop.f32.mrf.mxu0
      %v1516 = vadd.f32 %v1323, %v1515
      %v1517 = vpop.f32.mrf.mxu0
      %v1518 = vadd.f32 %v1325, %v1517
      %v1519 = vpop.f32.mrf.mxu0
      %v1520 = vadd.f32 %v1327, %v1519
      %1521 = vmatprep.mubr.bf16.mxu0 %v729
      %1522 = vmatmul.mubr.bf16.gmra.mxu0 %v728
      %v1523 = vpop.f32.mrf.mxu0
      %v1524 = vadd.f32 %v1331, %v1523
      %v1525 = vpop.f32.mrf.mxu0
      %v1526 = vadd.f32 %v1333, %v1525
      %v1527 = vpop.f32.mrf.mxu0
      %v1528 = vadd.f32 %v1335, %v1527
      %v1529 = vpop.f32.mrf.mxu0
      %v1530 = vadd.f32 %v1337, %v1529
      %1531 = vmatprep.mubr.bf16.mxu0 %v733
      %1532 = vmatmul.mubr.bf16.gmra.mxu0 %v732
      %v1533 = vpop.f32.mrf.mxu0
      %v1534 = vadd.f32 %v1341, %v1533
      %v1535 = vpop.f32.mrf.mxu0
      %v1536 = vadd.f32 %v1343, %v1535
      %v1537 = vpop.f32.mrf.mxu0
      %v1538 = vadd.f32 %v1345, %v1537
      %v1539 = vpop.f32.mrf.mxu0
      %v1540 = vadd.f32 %v1347, %v1539
      %1541 = vmatprep.mubr.bf16.mxu0 %v737
      %1542 = vmatmul.mubr.bf16.gmra.mxu0 %v736
      %v1543 = vpop.f32.mrf.mxu0
      %v1544 = vadd.f32 %v1351, %v1543
      %v1545 = vpop.f32.mrf.mxu0
      %v1546 = vadd.f32 %v1353, %v1545
      %v1547 = vpop.f32.mrf.mxu0
      %v1548 = vadd.f32 %v1355, %v1547
      %v1549 = vpop.f32.mrf.mxu0
      %v1550 = vadd.f32 %v1357, %v1549
      %1551 = vmatprep.mubr.bf16.mxu0 %v741
      %1552 = vmatmul.mubr.bf16.gmra.mxu0 %v740
      %v1553 = vpop.f32.mrf.mxu0
      %v1554 = vadd.f32 %v1361, %v1553
      %v1555 = vpop.f32.mrf.mxu0
      %v1556 = vadd.f32 %v1363, %v1555
      %v1557 = vpop.f32.mrf.mxu0
      %v1558 = vadd.f32 %v1365, %v1557
      %v1559 = vpop.f32.mrf.mxu0
      %v1560 = vadd.f32 %v1367, %v1559
      %1561 = vmatprep.mubr.bf16.mxu0 %v745
      %1562 = vmatmul.mubr.bf16.gmra.mxu0 %v744
      %v1563 = vpop.f32.mrf.mxu0
      %v1564 = vadd.f32 %v1371, %v1563
      %v1565 = vpop.f32.mrf.mxu0
      %v1566 = vadd.f32 %v1373, %v1565
      %v1567 = vpop.f32.mrf.mxu0
      %v1568 = vadd.f32 %v1375, %v1567
      %v1569 = vpop.f32.mrf.mxu0
      %v1570 = vadd.f32 %v1377, %v1569
      %1571 = vmatprep.mubr.bf16.mxu0 %v749
      %1572 = vmatmul.mubr.bf16.gmra.mxu0 %v748
      %v1573 = vpop.f32.mrf.mxu0
      %v1574 = vadd.f32 %v1381, %v1573
      %v1575 = vpop.f32.mrf.mxu0
      %v1576 = vadd.f32 %v1383, %v1575
      %v1577 = vpop.f32.mrf.mxu0
      %v1578 = vadd.f32 %v1385, %v1577
      %v1579 = vpop.f32.mrf.mxu0
      %v1580 = vadd.f32 %v1387, %v1579
      %1581 = vmatprep.mubr.bf16.mxu0 %v753
      %1582 = vmatmul.mubr.bf16.gmra.mxu0 %v752
      %v1583 = vpop.f32.mrf.mxu0
      %v1584 = vadd.f32 %v1391, %v1583
      %v1585 = vpop.f32.mrf.mxu0
      %v1586 = vadd.f32 %v1393, %v1585
      %v1587 = vpop.f32.mrf.mxu0
      %v1588 = vadd.f32 %v1395, %v1587
      %v1589 = vpop.f32.mrf.mxu0
      %v1590 = vadd.f32 %v1397, %v1589
      %1591 = vmatprep.mubr.bf16.mxu0 %v757
      %1592 = vmatmul.mubr.bf16.gmra.mxu0 %v756
      %v1593 = vpop.f32.mrf.mxu0
      %v1594 = vadd.f32 %v1401, %v1593
      %v1595 = vpop.f32.mrf.mxu0
      %v1596 = vadd.f32 %v1403, %v1595
      %v1597 = vpop.f32.mrf.mxu0
      %v1598 = vadd.f32 %v1405, %v1597
      %v1599 = vpop.f32.mrf.mxu0
      %v1600 = vadd.f32 %v1407, %v1599
      %1601 = vmatprep.mubr.bf16.mxu0 %v761
      %1602 = vmatmul.mubr.bf16.gmra.mxu0 %v760
      %v1603 = vpop.f32.mrf.mxu0
      %v1604 = vadd.f32 %v1411, %v1603
      %v1605 = vpop.f32.mrf.mxu0
      %v1606 = vadd.f32 %v1413, %v1605
      %v1607 = vpop.f32.mrf.mxu0
      %v1608 = vadd.f32 %v1415, %v1607
      %v1609 = vpop.f32.mrf.mxu0
      %v1610 = vadd.f32 %v1417, %v1609
      %1611 = vdwg.mxu0
      %v1612 = vpack.c.bf16 %v1458, %v1454
      %v1613 = vpack.c.bf16 %v1460, %v1456
      %v1614 = vpack.c.bf16 %v1468, %v1464
      %v1615 = vpack.c.bf16 %v1470, %v1466
      %v1616 = vpack.c.bf16 %v1478, %v1474
      %v1617 = vpack.c.bf16 %v1480, %v1476
      %v1618 = vpack.c.bf16 %v1488, %v1484
      %v1619 = vpack.c.bf16 %v1490, %v1486
      %v1620 = vpack.c.bf16 %v1498, %v1494
      %v1621 = vpack.c.bf16 %v1500, %v1496
      %v1622 = vpack.c.bf16 %v1508, %v1504
      %v1623 = vpack.c.bf16 %v1510, %v1506
      %v1624 = vpack.c.bf16 %v1518, %v1514
      %v1625 = vpack.c.bf16 %v1520, %v1516
      %v1626 = vpack.c.bf16 %v1528, %v1524
      %v1627 = vpack.c.bf16 %v1530, %v1526
      %v1628 = vpack.c.bf16 %v1538, %v1534
      %v1629 = vpack.c.bf16 %v1540, %v1536
      %v1630 = vpack.c.bf16 %v1548, %v1544
      %v1631 = vpack.c.bf16 %v1550, %v1546
      %v1632 = vpack.c.bf16 %v1558, %v1554
      %v1633 = vpack.c.bf16 %v1560, %v1556
      %v1634 = vpack.c.bf16 %v1568, %v1564
      %v1635 = vpack.c.bf16 %v1570, %v1566
      %v1636 = vpack.c.bf16 %v1578, %v1574
      %v1637 = vpack.c.bf16 %v1580, %v1576
      %v1638 = vpack.c.bf16 %v1588, %v1584
      %v1639 = vpack.c.bf16 %v1590, %v1586
      %v1640 = vpack.c.bf16 %v1598, %v1594
      %v1641 = vpack.c.bf16 %v1600, %v1596
      %v1642 = vpack.c.bf16 %v1608, %v1604
      %v1643 = vpack.c.bf16 %v1610, %v1606
      %v1644 = vld [vmem:[%s3] sm:$0xf]
      %v1645 = vld [vmem:[%s3 + $0x4] sm:$0xf]
      %v1646 = vld [vmem:[%s3 + $0x8] sm:$0xf]
      %v1647 = vld [vmem:[%s3 + $0xc] sm:$0xf]
      %v1648 = vld [vmem:[%s3 + $0x10] sm:$0xf]
      %v1649 = vld [vmem:[%s3 + $0x14] sm:$0xf]
      %v1650 = vld [vmem:[%s3 + $0x18] sm:$0xf]
      %v1651 = vld [vmem:[%s3 + $0x1c] sm:$0xf]
      %v1652 = vld [vmem:[%s3 + $0x20] sm:$0xf]
      %v1653 = vld [vmem:[%s3 + $0x24] sm:$0xf]
      %v1654 = vld [vmem:[%s3 + $0x28] sm:$0xf]
      %v1655 = vld [vmem:[%s3 + $0x2c] sm:$0xf]
      %v1656 = vld [vmem:[%s3 + $0x30] sm:$0xf]
      %v1657 = vld [vmem:[%s3 + $0x34] sm:$0xf]
      %v1658 = vld [vmem:[%s3 + $0x38] sm:$0xf]
      %v1659 = vld [vmem:[%s3 + $0x3c] sm:$0xf]
      %v1660 = vld [vmem:[%s3 + $0x40] sm:$0xf]
      %v1661 = vld [vmem:[%s3 + $0x44] sm:$0xf]
      %v1662 = vld [vmem:[%s3 + $0x48] sm:$0xf]
      %v1663 = vld [vmem:[%s3 + $0x4c] sm:$0xf]
      %v1664 = vld [vmem:[%s3 + $0x50] sm:$0xf]
      %v1665 = vld [vmem:[%s3 + $0x54] sm:$0xf]
      %v1666 = vld [vmem:[%s3 + $0x58] sm:$0xf]
      %v1667 = vld [vmem:[%s3 + $0x5c] sm:$0xf]
      %v1668 = vld [vmem:[%s3 + $0x60] sm:$0xf]
      %v1669 = vld [vmem:[%s3 + $0x64] sm:$0xf]
      %v1670 = vld [vmem:[%s3 + $0x68] sm:$0xf]
      %v1671 = vld [vmem:[%s3 + $0x6c] sm:$0xf]
      %v1672 = vld [vmem:[%s3 + $0x70] sm:$0xf]
      %v1673 = vld [vmem:[%s3 + $0x74] sm:$0xf]
      %v1674 = vld [vmem:[%s3 + $0x78] sm:$0xf]
      %v1675 = vld [vmem:[%s3 + $0x7c] sm:$0xf]
      %v1676 = vld [vmem:[%s3 + $0x80] sm:$0xf]
      %v1677 = vld [vmem:[%s3 + $0x84] sm:$0xf]
      %v1678 = vld [vmem:[%s3 + $0x88] sm:$0xf]
      %v1679 = vld [vmem:[%s3 + $0x8c] sm:$0xf]
      %v1680 = vld [vmem:[%s3 + $0x90] sm:$0xf]
      %v1681 = vld [vmem:[%s3 + $0x94] sm:$0xf]
      %v1682 = vld [vmem:[%s3 + $0x98] sm:$0xf]
      %v1683 = vld [vmem:[%s3 + $0x9c] sm:$0xf]
      %v1684 = vld [vmem:[%s3 + $0xa0] sm:$0xf]
      %v1685 = vld [vmem:[%s3 + $0xa4] sm:$0xf]
      %v1686 = vld [vmem:[%s3 + $0xa8] sm:$0xf]
      %v1687 = vld [vmem:[%s3 + $0xac] sm:$0xf]
      %v1688 = vld [vmem:[%s3 + $0xb0] sm:$0xf]
      %v1689 = vld [vmem:[%s3 + $0xb4] sm:$0xf]
      %v1690 = vld [vmem:[%s3 + $0xb8] sm:$0xf]
      %v1691 = vld [vmem:[%s3 + $0xbc] sm:$0xf]
      %v1692 = vld [vmem:[%s3 + $0xc0] sm:$0xf]
      %v1693 = vld [vmem:[%s3 + $0xc4] sm:$0xf]
      %v1694 = vld [vmem:[%s3 + $0xc8] sm:$0xf]
      %v1695 = vld [vmem:[%s3 + $0xcc] sm:$0xf]
      %v1696 = vld [vmem:[%s3 + $0xd0] sm:$0xf]
      %v1697 = vld [vmem:[%s3 + $0xd4] sm:$0xf]
      %v1698 = vld [vmem:[%s3 + $0xd8] sm:$0xf]
      %v1699 = vld [vmem:[%s3 + $0xdc] sm:$0xf]
      %v1700 = vld [vmem:[%s3 + $0xe0] sm:$0xf]
      %v1701 = vld [vmem:[%s3 + $0xe4] sm:$0xf]
      %v1702 = vld [vmem:[%s3 + $0xe8] sm:$0xf]
      %v1703 = vld [vmem:[%s3 + $0xec] sm:$0xf]
      %v1704 = vld [vmem:[%s3 + $0xf0] sm:$0xf]
      %v1705 = vld [vmem:[%s3 + $0xf4] sm:$0xf]
      %v1706 = vld [vmem:[%s3 + $0xf8] sm:$0xf]
      %v1707 = vld [vmem:[%s3 + $0xfc] sm:$0xf]
      %v1708 = vld [vmem:[%s3 + $0x100] sm:$0xf]
      %v1709 = vld [vmem:[%s3 + $0x104] sm:$0xf]
      %v1710 = vld [vmem:[%s3 + $0x108] sm:$0xf]
      %v1711 = vld [vmem:[%s3 + $0x10c] sm:$0xf]
      %v1712 = vld [vmem:[%s3 + $0x110] sm:$0xf]
      %v1713 = vld [vmem:[%s3 + $0x114] sm:$0xf]
      %v1714 = vld [vmem:[%s3 + $0x118] sm:$0xf]
      %v1715 = vld [vmem:[%s3 + $0x11c] sm:$0xf]
      %v1716 = vld [vmem:[%s3 + $0x120] sm:$0xf]
      %v1717 = vld [vmem:[%s3 + $0x124] sm:$0xf]
      %v1718 = vld [vmem:[%s3 + $0x128] sm:$0xf]
      %v1719 = vld [vmem:[%s3 + $0x12c] sm:$0xf]
      %v1720 = vld [vmem:[%s3 + $0x130] sm:$0xf]
      %v1721 = vld [vmem:[%s3 + $0x134] sm:$0xf]
      %v1722 = vld [vmem:[%s3 + $0x138] sm:$0xf]
      %v1723 = vld [vmem:[%s3 + $0x13c] sm:$0xf]
      %v1724 = vld [vmem:[%s3 + $0x140] sm:$0xf]
      %v1725 = vld [vmem:[%s3 + $0x144] sm:$0xf]
      %v1726 = vld [vmem:[%s4] sm:$0x1]
      %v1727 = vld [vmem:[%s4 + $0x1] sm:$0x1]
      %v1728 = vld [vmem:[%s4 + $0x2] sm:$0x1]
      %v1729 = vld [vmem:[%s4 + $0x3] sm:$0x1]
      %v1730 = vld [vmem:[%s254] sm:$0xf]
      %v1731 = vld [vmem:[%s254 + $0x4] sm:$0xf]
      %v1732 = vld [vmem:[%s254 + $0x8] sm:$0xf]
      %v1733 = vld [vmem:[%s254 + $0xc] sm:$0xf]
      %v1734 = vld [vmem:[%s254 + $0x10] sm:$0xf]
      %v1735 = vld [vmem:[%s254 + $0x14] sm:$0xf]
      %v1736 = vld [vmem:[%s254 + $0x18] sm:$0xf]
      %v1737 = vld [vmem:[%s254 + $0x1c] sm:$0xf]
      %v1738 = vld [vmem:[%s254 + $0x20] sm:$0xf]
      %v1739 = vld [vmem:[%s254 + $0x24] sm:$0xf]
      %v1740 = vld [vmem:[%s254 + $0x28] sm:$0xf]
      %v1741 = vld [vmem:[%s254 + $0x2c] sm:$0xf]
      %v1742 = vld [vmem:[%s254 + $0x30] sm:$0xf]
      %v1743 = vld [vmem:[%s254 + $0x34] sm:$0xf]
      %v1744 = vld [vmem:[%s254 + $0x38] sm:$0xf]
      %v1745 = vld [vmem:[%s254 + $0x3c] sm:$0xf]
      %v1746 = vld [vmem:[%s254 + $0x40] sm:$0xf]
      %v1747 = vld [vmem:[%s254 + $0x44] sm:$0xf]
      %v1748 = vld [vmem:[%s254 + $0x48] sm:$0xf]
      %v1749 = vld [vmem:[%s254 + $0x4c] sm:$0xf]
      %v1750 = vld [vmem:[%s254 + $0x50] sm:$0xf]
      %v1751 = vld [vmem:[%s254 + $0x54] sm:$0xf]
      %v1752 = vld [vmem:[%s254 + $0x58] sm:$0xf]
      %v1753 = vld [vmem:[%s254 + $0x5c] sm:$0xf]
      %v1754 = vld [vmem:[%s254 + $0x60] sm:$0xf]
      %v1755 = vld [vmem:[%s254 + $0x64] sm:$0xf]
      %v1756 = vld [vmem:[%s254 + $0x68] sm:$0xf]
      %v1757 = vld [vmem:[%s254 + $0x6c] sm:$0xf]
      %v1758 = vld [vmem:[%s254 + $0x70] sm:$0xf]
      %v1759 = vld [vmem:[%s254 + $0x74] sm:$0xf]
      %v1760 = vld [vmem:[%s254 + $0x78] sm:$0xf]
      %v1761 = vld [vmem:[%s254 + $0x7c] sm:$0xf]
      %v1762 = vlaneseq
      %v1763 = vshrl.u32 %v1762, 7
      %v1764 = vsub.s32 0, %v1763
      %v1765 = vrot.slane %v1726, %v1764
      %v1798 = vunpack.c.l.b16 %v1730
      %v1799 = vunpack.c.l.b16 %v1731
      %v1800 = vunpack.c.l.b16 %v1732
      %v1801 = vunpack.c.l.b16 %v1733
      %v1802 = vunpack.c.l.b16 %v1734
      %v1803 = vunpack.c.l.b16 %v1735
      %v1804 = vunpack.c.l.b16 %v1736
      %v1805 = vunpack.c.l.b16 %v1737
      %v1806 = vunpack.c.l.b16 %v1738
      %v1807 = vunpack.c.l.b16 %v1739
      %v1808 = vunpack.c.l.b16 %v1740
      %v1809 = vunpack.c.l.b16 %v1741
      %v1810 = vunpack.c.l.b16 %v1742
      %v1811 = vunpack.c.l.b16 %v1743
      %v1812 = vunpack.c.l.b16 %v1744
      %v1813 = vunpack.c.l.b16 %v1745
      %v1814 = vunpack.c.l.b16 %v1746
      %v1815 = vunpack.c.l.b16 %v1747
      %v1816 = vunpack.c.l.b16 %v1748
      %v1817 = vunpack.c.l.b16 %v1749
      %v1818 = vunpack.c.l.b16 %v1750
      %v1819 = vunpack.c.l.b16 %v1751
      %v1820 = vunpack.c.l.b16 %v1752
      %v1821 = vunpack.c.l.b16 %v1753
      %v1822 = vunpack.c.l.b16 %v1754
      %v1823 = vunpack.c.l.b16 %v1755
      %v1824 = vunpack.c.l.b16 %v1756
      %v1825 = vunpack.c.l.b16 %v1757
      %v1826 = vunpack.c.l.b16 %v1758
      %v1827 = vunpack.c.l.b16 %v1759
      %v1828 = vunpack.c.l.b16 %v1760
      %v1829 = vunpack.c.l.b16 %v1761
      %v1830 = vpack.c.b16 %v1799, %v1798
      %v1831 = vpack.c.b16 %v1801, %v1800
      %v1832 = vpack.c.b16 %v1803, %v1802
      %v1833 = vpack.c.b16 %v1805, %v1804
      %v1834 = vpack.c.b16 %v1807, %v1806
      %v1835 = vpack.c.b16 %v1809, %v1808
      %v1836 = vpack.c.b16 %v1811, %v1810
      %v1837 = vpack.c.b16 %v1813, %v1812
      %v1838 = vpack.c.b16 %v1815, %v1814
      %v1839 = vpack.c.b16 %v1817, %v1816
      %v1840 = vpack.c.b16 %v1819, %v1818
      %v1841 = vpack.c.b16 %v1821, %v1820
      %v1842 = vpack.c.b16 %v1823, %v1822
      %v1843 = vpack.c.b16 %v1825, %v1824
      %v1844 = vpack.c.b16 %v1827, %v1826
      %v1845 = vpack.c.b16 %v1829, %v1828
      %v1848 = vunpack.c.l.b16 %v1644
      %v1849 = vunpack.c.l.b16 %v1645
      %v1850 = vpack.c.b16 %v1849, %v1848
      %vm1852 = vcmask 130048
      %v1854 = vsel %vm1852, %v1830, 0
      %v1857 = vsel %vm1852, %v1831, 0
      %v1860 = vsel %vm1852, %v1832, 0
      %v1863 = vsel %vm1852, %v1833, 0
      %v1866 = vsel %vm1852, %v1834, 0
      %v1869 = vsel %vm1852, %v1835, 0
      %v1872 = vsel %vm1852, %v1836, 0
      %v1875 = vsel %vm1852, %v1837, 0
      %v1878 = vsel %vm1852, %v1838, 0
      %v1881 = vsel %vm1852, %v1839, 0
      %v1884 = vsel %vm1852, %v1840, 0
      %v1887 = vsel %vm1852, %v1841, 0
      %v1890 = vsel %vm1852, %v1842, 0
      %v1893 = vsel %vm1852, %v1843, 0
      %v1896 = vsel %vm1852, %v1844, 0
      %v1899 = vsel %vm1852, %v1845, 0
      %1901 = vmatprep.subr.bf16.mxu0 0
      %1902 = vmatpush1.bf16.msra.mxu0 0
      %1903 = vmatprep.subr.bf16.mxu0 0
      %1904 = vmatpush1.bf16.msra.mxu0 0
      %1905 = vmatprep.subr.bf16.mxu0 0
      %1906 = vmatpush1.bf16.msra.mxu0 0
      %1907 = vmatprep.subr.bf16.mxu0 0
      %1908 = vmatpush1.bf16.msra.mxu0 0
      %1909 = vmatprep.subr.bf16.mxu0 0
      %1910 = vmatpush1.bf16.msra.mxu0 0
      %1911 = vmatprep.subr.bf16.mxu0 0
      %1912 = vmatpush1.bf16.msra.mxu0 0
      %1913 = vmatprep.subr.bf16.mxu0 0
      %1914 = vmatpush1.bf16.msra.mxu0 0
      %1915 = vmatprep.subr.bf16.mxu0 0
      %1916 = vmatpush1.bf16.msra.mxu0 %v1850
      %1917 = vmatprep.subr.bf16.mxu0 0
      %1918 = vmatpush2.bf16.msra.mxu0 0
      %1919 = vmatprep.subr.bf16.mxu0 0
      %1920 = vmatpush2.bf16.msra.mxu0 0
      %1921 = vmatprep.subr.bf16.mxu0 0
      %1922 = vmatpush2.bf16.msra.mxu0 0
      %1923 = vmatprep.subr.bf16.mxu0 0
      %1924 = vmatpush2.bf16.msra.mxu0 0
      %1925 = vmatprep.subr.bf16.mxu0 0
      %1926 = vmatpush2.bf16.msra.mxu0 0
      %1927 = vmatprep.subr.bf16.mxu0 0
      %1928 = vmatpush2.bf16.msra.mxu0 0
      %1929 = vmatprep.subr.bf16.mxu0 0
      %1930 = vmatpush2.bf16.msra.mxu0 0
      %1931 = vmatprep.subr.bf16.mxu0 0
      %1932 = vmatpush2.bf16.msra.mxu0 0
      %1933 = vmatprep.mubr.bf16.mxu0 0
      %1934 = vmatmul.mubr.bf16.gmra.mxu0 %v1854
      %v1935 = vpop.f32.mrf.mxu0
      %v1936 = vadd.f32 %v1765, %v1935
      %v1937 = vpop.f32.mrf.mxu0
      %v1938 = vpop.f32.mrf.mxu0
      %v1939 = vadd.f32 %v1765, %v1938
      %v1940 = vpop.f32.mrf.mxu0
      %1941 = vmatprep.mubr.bf16.mxu0 0
      %1942 = vmatmul.mubr.bf16.gmra.mxu0 %v1857
      %v1943 = vpop.f32.mrf.mxu0
      %v1944 = vadd.f32 %v1765, %v1943
      %v1945 = vpop.f32.mrf.mxu0
      %v1946 = vpop.f32.mrf.mxu0
      %v1947 = vadd.f32 %v1765, %v1946
      %v1948 = vpop.f32.mrf.mxu0
      %1949 = vmatprep.mubr.bf16.mxu0 0
      %1950 = vmatmul.mubr.bf16.gmra.mxu0 %v1860
      %v1951 = vpop.f32.mrf.mxu0
      %v1952 = vadd.f32 %v1765, %v1951
      %v1953 = vpop.f32.mrf.mxu0
      %v1954 = vpop.f32.mrf.mxu0
      %v1955 = vadd.f32 %v1765, %v1954
      %v1956 = vpop.f32.mrf.mxu0
      %1957 = vmatprep.mubr.bf16.mxu0 0
      %1958 = vmatmul.mubr.bf16.gmra.mxu0 %v1863
      %v1959 = vpop.f32.mrf.mxu0
      %v1960 = vadd.f32 %v1765, %v1959
      %v1961 = vpop.f32.mrf.mxu0
      %v1962 = vpop.f32.mrf.mxu0
      %v1963 = vadd.f32 %v1765, %v1962
      %v1964 = vpop.f32.mrf.mxu0
      %1965 = vmatprep.mubr.bf16.mxu0 0
      %1966 = vmatmul.mubr.bf16.gmra.mxu0 %v1866
      %v1967 = vpop.f32.mrf.mxu0
      %v1968 = vadd.f32 %v1765, %v1967
      %v1969 = vpop.f32.mrf.mxu0
      %v1970 = vpop.f32.mrf.mxu0
      %v1971 = vadd.f32 %v1765, %v1970
      %v1972 = vpop.f32.mrf.mxu0
      %1973 = vmatprep.mubr.bf16.mxu0 0
      %1974 = vmatmul.mubr.bf16.gmra.mxu0 %v1869
      %v1975 = vpop.f32.mrf.mxu0
      %v1976 = vadd.f32 %v1765, %v1975
      %v1977 = vpop.f32.mrf.mxu0
      %v1978 = vpop.f32.mrf.mxu0
      %v1979 = vadd.f32 %v1765, %v1978
      %v1980 = vpop.f32.mrf.mxu0
      %1981 = vmatprep.mubr.bf16.mxu0 0
      %1982 = vmatmul.mubr.bf16.gmra.mxu0 %v1872
      %v1983 = vpop.f32.mrf.mxu0
      %v1984 = vadd.f32 %v1765, %v1983
      %v1985 = vpop.f32.mrf.mxu0
      %v1986 = vpop.f32.mrf.mxu0
      %v1987 = vadd.f32 %v1765, %v1986
      %v1988 = vpop.f32.mrf.mxu0
      %1989 = vmatprep.mubr.bf16.mxu0 0
      %1990 = vmatmul.mubr.bf16.gmra.mxu0 %v1875
      %v1991 = vpop.f32.mrf.mxu0
      %v1992 = vadd.f32 %v1765, %v1991
      %v1993 = vpop.f32.mrf.mxu0
      %v1994 = vpop.f32.mrf.mxu0
      %v1995 = vadd.f32 %v1765, %v1994
      %v1996 = vpop.f32.mrf.mxu0
      %1997 = vmatprep.mubr.bf16.mxu0 0
      %1998 = vmatmul.mubr.bf16.gmra.mxu0 %v1878
      %v1999 = vpop.f32.mrf.mxu0
      %v2000 = vadd.f32 %v1765, %v1999
      %v2001 = vpop.f32.mrf.mxu0
      %v2002 = vpop.f32.mrf.mxu0
      %v2003 = vadd.f32 %v1765, %v2002
      %v2004 = vpop.f32.mrf.mxu0
      %2005 = vmatprep.mubr.bf16.mxu0 0
      %2006 = vmatmul.mubr.bf16.gmra.mxu0 %v1881
      %v2007 = vpop.f32.mrf.mxu0
      %v2008 = vadd.f32 %v1765, %v2007
      %v2009 = vpop.f32.mrf.mxu0
      %v2010 = vpop.f32.mrf.mxu0
      %v2011 = vadd.f32 %v1765, %v2010
      %v2012 = vpop.f32.mrf.mxu0
      %2013 = vmatprep.mubr.bf16.mxu0 0
      %2014 = vmatmul.mubr.bf16.gmra.mxu0 %v1884
      %v2015 = vpop.f32.mrf.mxu0
      %v2016 = vadd.f32 %v1765, %v2015
      %v2017 = vpop.f32.mrf.mxu0
      %v2018 = vpop.f32.mrf.mxu0
      %v2019 = vadd.f32 %v1765, %v2018
      %v2020 = vpop.f32.mrf.mxu0
      %2021 = vmatprep.mubr.bf16.mxu0 0
      %2022 = vmatmul.mubr.bf16.gmra.mxu0 %v1887
      %v2023 = vpop.f32.mrf.mxu0
      %v2024 = vadd.f32 %v1765, %v2023
      %v2025 = vpop.f32.mrf.mxu0
      %v2026 = vpop.f32.mrf.mxu0
      %v2027 = vadd.f32 %v1765, %v2026
      %v2028 = vpop.f32.mrf.mxu0
      %2029 = vmatprep.mubr.bf16.mxu0 0
      %2030 = vmatmul.mubr.bf16.gmra.mxu0 %v1890
      %v2031 = vpop.f32.mrf.mxu0
      %v2032 = vadd.f32 %v1765, %v2031
      %v2033 = vpop.f32.mrf.mxu0
      %v2034 = vpop.f32.mrf.mxu0
      %v2035 = vadd.f32 %v1765, %v2034
      %v2036 = vpop.f32.mrf.mxu0
      %2037 = vmatprep.mubr.bf16.mxu0 0
      %2038 = vmatmul.mubr.bf16.gmra.mxu0 %v1893
      %v2039 = vpop.f32.mrf.mxu0
      %v2040 = vadd.f32 %v1765, %v2039
      %v2041 = vpop.f32.mrf.mxu0
      %v2042 = vpop.f32.mrf.mxu0
      %v2043 = vadd.f32 %v1765, %v2042
      %v2044 = vpop.f32.mrf.mxu0
      %2045 = vmatprep.mubr.bf16.mxu0 0
      %2046 = vmatmul.mubr.bf16.gmra.mxu0 %v1896
      %v2047 = vpop.f32.mrf.mxu0
      %v2048 = vadd.f32 %v1765, %v2047
      %v2049 = vpop.f32.mrf.mxu0
      %v2050 = vpop.f32.mrf.mxu0
      %v2051 = vadd.f32 %v1765, %v2050
      %v2052 = vpop.f32.mrf.mxu0
      %2053 = vmatprep.mubr.bf16.mxu0 0
      %2054 = vmatmul.mubr.bf16.gmra.mxu0 %v1899
      %v2055 = vpop.f32.mrf.mxu0
      %v2056 = vadd.f32 %v1765, %v2055
      %v2057 = vpop.f32.mrf.mxu0
      %v2058 = vpop.f32.mrf.mxu0
      %v2059 = vadd.f32 %v1765, %v2058
      %v2060 = vpop.f32.mrf.mxu0
      %2061 = vdwg.mxu0
      %v2062 = vpack.c.bf16 %v1939, %v1936
      %v2063 = vpack.c.bf16 %v1947, %v1944
      %v2064 = vpack.c.bf16 %v1955, %v1952
      %v2065 = vpack.c.bf16 %v1963, %v1960
      %v2066 = vpack.c.bf16 %v1971, %v1968
      %v2067 = vpack.c.bf16 %v1979, %v1976
      %v2068 = vpack.c.bf16 %v1987, %v1984
      %v2069 = vpack.c.bf16 %v1995, %v1992
      %v2070 = vpack.c.bf16 %v2003, %v2000
      %v2071 = vpack.c.bf16 %v2011, %v2008
      %v2072 = vpack.c.bf16 %v2019, %v2016
      %v2073 = vpack.c.bf16 %v2027, %v2024
      %v2074 = vpack.c.bf16 %v2035, %v2032
      %v2075 = vpack.c.bf16 %v2043, %v2040
      %v2076 = vpack.c.bf16 %v2051, %v2048
      %v2077 = vpack.c.bf16 %v2059, %v2056
      %2078 = vmatprep.subr.bf16.mxu0 0
      %2079 = vmatpush1.bf16.msra.mxu0 %v2069
      %2080 = vmatprep.subr.bf16.mxu0 0
      %2081 = vmatpush1.bf16.msra.mxu0 %v2068
      %2082 = vmatprep.subr.bf16.mxu0 0
      %2083 = vmatpush1.bf16.msra.mxu0 %v2067
      %2084 = vmatprep.subr.bf16.mxu0 0
      %2085 = vmatpush1.bf16.msra.mxu0 %v2066
      %2086 = vmatprep.subr.bf16.mxu0 0
      %2087 = vmatpush1.bf16.msra.mxu0 %v2065
      %2088 = vmatprep.subr.bf16.mxu0 0
      %2089 = vmatpush1.bf16.msra.mxu0 %v2064
      %2090 = vmatprep.subr.bf16.mxu0 0
      %2091 = vmatpush1.bf16.msra.mxu0 %v2063
      %2092 = vmatprep.subr.bf16.mxu0 0
      %2093 = vmatpush1.bf16.msra.mxu0 %v2062
      %2094 = vmatprep.subr.bf16.mxu0 0
      %2095 = vmatpush2.bf16.msra.mxu0 %v2077
      %2096 = vmatprep.subr.bf16.mxu0 0
      %2097 = vmatpush2.bf16.msra.mxu0 %v2076
      %2098 = vmatprep.subr.bf16.mxu0 0
      %2099 = vmatpush2.bf16.msra.mxu0 %v2075
      %2100 = vmatprep.subr.bf16.mxu0 0
      %2101 = vmatpush2.bf16.msra.mxu0 %v2074
      %2102 = vmatprep.subr.bf16.mxu0 0
      %2103 = vmatpush2.bf16.msra.mxu0 %v2073
      %2104 = vmatprep.subr.bf16.mxu0 0
      %2105 = vmatpush2.bf16.msra.mxu0 %v2072
      %2106 = vmatprep.subr.bf16.mxu0 0
      %2107 = vmatpush2.bf16.msra.mxu0 %v2071
      %2108 = vmatprep.subr.bf16.mxu0 0
      %2109 = vmatpush2.bf16.msra.mxu0 %v2070
      %2110 = vmatprep.mubr.bf16.mxu0 %v1613
      %2111 = vmatmul.mubr.bf16.gmra.mxu0 %v1612
      %v2112 = vpop.f32.mrf.mxu0
      %v2113 = vadd.f32 0.0, %v2112
      %v2114 = vpop.f32.mrf.mxu0
      %v2115 = vpop.f32.mrf.mxu0
      %v2116 = vadd.f32 0.0, %v2115
      %v2117 = vpop.f32.mrf.mxu0
      %2118 = vmatprep.mubr.bf16.mxu0 %v1615
      %2119 = vmatmul.mubr.bf16.gmra.mxu0 %v1614
      %v2120 = vpop.f32.mrf.mxu0
      %v2121 = vadd.f32 0.0, %v2120
      %v2122 = vpop.f32.mrf.mxu0
      %v2123 = vpop.f32.mrf.mxu0
      %v2124 = vadd.f32 0.0, %v2123
      %v2125 = vpop.f32.mrf.mxu0
      %2126 = vmatprep.mubr.bf16.mxu0 %v1617
      %2127 = vmatmul.mubr.bf16.gmra.mxu0 %v1616
      %v2128 = vpop.f32.mrf.mxu0
      %v2129 = vadd.f32 0.0, %v2128
      %v2130 = vpop.f32.mrf.mxu0
      %v2131 = vpop.f32.mrf.mxu0
      %v2132 = vadd.f32 0.0, %v2131
      %v2133 = vpop.f32.mrf.mxu0
      %2134 = vmatprep.mubr.bf16.mxu0 %v1619
      %2135 = vmatmul.mubr.bf16.gmra.mxu0 %v1618
      %v2136 = vpop.f32.mrf.mxu0
      %v2137 = vadd.f32 0.0, %v2136
      %v2138 = vpop.f32.mrf.mxu0
      %v2139 = vpop.f32.mrf.mxu0
      %v2140 = vadd.f32 0.0, %v2139
      %v2141 = vpop.f32.mrf.mxu0
      %2142 = vmatprep.mubr.bf16.mxu0 %v1621
      %2143 = vmatmul.mubr.bf16.gmra.mxu0 %v1620
      %v2144 = vpop.f32.mrf.mxu0
      %v2145 = vadd.f32 0.0, %v2144
      %v2146 = vpop.f32.mrf.mxu0
      %v2147 = vpop.f32.mrf.mxu0
      %v2148 = vadd.f32 0.0, %v2147
      %v2149 = vpop.f32.mrf.mxu0
      %2150 = vmatprep.mubr.bf16.mxu0 %v1623
      %2151 = vmatmul.mubr.bf16.gmra.mxu0 %v1622
      %v2152 = vpop.f32.mrf.mxu0
      %v2153 = vadd.f32 0.0, %v2152
      %v2154 = vpop.f32.mrf.mxu0
      %v2155 = vpop.f32.mrf.mxu0
      %v2156 = vadd.f32 0.0, %v2155
      %v2157 = vpop.f32.mrf.mxu0
      %2158 = vmatprep.mubr.bf16.mxu0 %v1625
      %2159 = vmatmul.mubr.bf16.gmra.mxu0 %v1624
      %v2160 = vpop.f32.mrf.mxu0
      %v2161 = vadd.f32 0.0, %v2160
      %v2162 = vpop.f32.mrf.mxu0
      %v2163 = vpop.f32.mrf.mxu0
      %v2164 = vadd.f32 0.0, %v2163
      %v2165 = vpop.f32.mrf.mxu0
      %2166 = vmatprep.mubr.bf16.mxu0 %v1627
      %2167 = vmatmul.mubr.bf16.gmra.mxu0 %v1626
      %v2168 = vpop.f32.mrf.mxu0
      %v2169 = vadd.f32 0.0, %v2168
      %v2170 = vpop.f32.mrf.mxu0
      %v2171 = vpop.f32.mrf.mxu0
      %v2172 = vadd.f32 0.0, %v2171
      %v2173 = vpop.f32.mrf.mxu0
      %2174 = vmatprep.mubr.bf16.mxu0 %v1629
      %2175 = vmatmul.mubr.bf16.gmra.mxu0 %v1628
      %v2176 = vpop.f32.mrf.mxu0
      %v2177 = vadd.f32 0.0, %v2176
      %v2178 = vpop.f32.mrf.mxu0
      %v2179 = vpop.f32.mrf.mxu0
      %v2180 = vadd.f32 0.0, %v2179
      %v2181 = vpop.f32.mrf.mxu0
      %2182 = vmatprep.mubr.bf16.mxu0 %v1631
      %2183 = vmatmul.mubr.bf16.gmra.mxu0 %v1630
      %v2184 = vpop.f32.mrf.mxu0
      %v2185 = vadd.f32 0.0, %v2184
      %v2186 = vpop.f32.mrf.mxu0
      %v2187 = vpop.f32.mrf.mxu0
      %v2188 = vadd.f32 0.0, %v2187
      %v2189 = vpop.f32.mrf.mxu0
      %2190 = vmatprep.mubr.bf16.mxu0 %v1633
      %2191 = vmatmul.mubr.bf16.gmra.mxu0 %v1632
      %v2192 = vpop.f32.mrf.mxu0
      %v2193 = vadd.f32 0.0, %v2192
      %v2194 = vpop.f32.mrf.mxu0
      %v2195 = vpop.f32.mrf.mxu0
      %v2196 = vadd.f32 0.0, %v2195
      %v2197 = vpop.f32.mrf.mxu0
      %2198 = vmatprep.mubr.bf16.mxu0 %v1635
      %2199 = vmatmul.mubr.bf16.gmra.mxu0 %v1634
      %v2200 = vpop.f32.mrf.mxu0
      %v2201 = vadd.f32 0.0, %v2200
      %v2202 = vpop.f32.mrf.mxu0
      %v2203 = vpop.f32.mrf.mxu0
      %v2204 = vadd.f32 0.0, %v2203
      %v2205 = vpop.f32.mrf.mxu0
      %2206 = vmatprep.mubr.bf16.mxu0 %v1637
      %2207 = vmatmul.mubr.bf16.gmra.mxu0 %v1636
      %v2208 = vpop.f32.mrf.mxu0
      %v2209 = vadd.f32 0.0, %v2208
      %v2210 = vpop.f32.mrf.mxu0
      %v2211 = vpop.f32.mrf.mxu0
      %v2212 = vadd.f32 0.0, %v2211
      %v2213 = vpop.f32.mrf.mxu0
      %2214 = vmatprep.mubr.bf16.mxu0 %v1639
      %2215 = vmatmul.mubr.bf16.gmra.mxu0 %v1638
      %v2216 = vpop.f32.mrf.mxu0
      %v2217 = vadd.f32 0.0, %v2216
      %v2218 = vpop.f32.mrf.mxu0
      %v2219 = vpop.f32.mrf.mxu0
      %v2220 = vadd.f32 0.0, %v2219
      %v2221 = vpop.f32.mrf.mxu0
      %2222 = vmatprep.mubr.bf16.mxu0 %v1641
      %2223 = vmatmul.mubr.bf16.gmra.mxu0 %v1640
      %v2224 = vpop.f32.mrf.mxu0
      %v2225 = vadd.f32 0.0, %v2224
      %v2226 = vpop.f32.mrf.mxu0
      %v2227 = vpop.f32.mrf.mxu0
      %v2228 = vadd.f32 0.0, %v2227
      %v2229 = vpop.f32.mrf.mxu0
      %2230 = vmatprep.mubr.bf16.mxu0 %v1643
      %2231 = vmatmul.mubr.bf16.gmra.mxu0 %v1642
      %v2232 = vpop.f32.mrf.mxu0
      %v2233 = vadd.f32 0.0, %v2232
      %v2234 = vpop.f32.mrf.mxu0
      %v2235 = vpop.f32.mrf.mxu0
      %v2236 = vadd.f32 0.0, %v2235
      %v2237 = vpop.f32.mrf.mxu0
      %2238 = vdwg.mxu0
      %v2239 = vpack.c.bf16 %v2116, %v2113
      %v2240 = vpack.c.bf16 %v2124, %v2121
      %v2241 = vpack.c.bf16 %v2132, %v2129
      %v2242 = vpack.c.bf16 %v2140, %v2137
      %v2243 = vpack.c.bf16 %v2148, %v2145
      %v2244 = vpack.c.bf16 %v2156, %v2153
      %v2245 = vpack.c.bf16 %v2164, %v2161
      %v2246 = vpack.c.bf16 %v2172, %v2169
      %v2247 = vpack.c.bf16 %v2180, %v2177
      %v2248 = vpack.c.bf16 %v2188, %v2185
      %v2249 = vpack.c.bf16 %v2196, %v2193
      %v2250 = vpack.c.bf16 %v2204, %v2201
      %v2251 = vpack.c.bf16 %v2212, %v2209
      %v2252 = vpack.c.bf16 %v2220, %v2217
      %v2253 = vpack.c.bf16 %v2228, %v2225
      %v2254 = vpack.c.bf16 %v2236, %v2233
      %v2271 = vunpack.c.l.b16 %v1662
      %v2272 = vunpack.c.l.b16 %v1663
      %v2273 = vunpack.c.l.b16 %v1664
      %v2274 = vunpack.c.l.b16 %v1665
      %v2275 = vunpack.c.l.b16 %v1666
      %v2276 = vunpack.c.l.b16 %v1667
      %v2277 = vunpack.c.l.b16 %v1668
      %v2278 = vunpack.c.l.b16 %v1669
      %v2279 = vunpack.c.l.b16 %v1670
      %v2280 = vunpack.c.l.b16 %v1671
      %v2281 = vunpack.c.l.b16 %v1672
      %v2282 = vunpack.c.l.b16 %v1673
      %v2283 = vunpack.c.l.b16 %v1674
      %v2284 = vunpack.c.l.b16 %v1675
      %v2285 = vunpack.c.l.b16 %v1676
      %v2286 = vunpack.c.l.b16 %v1677
      %v2287 = vpack.c.b16 %v2272, %v2271
      %v2288 = vpack.c.b16 %v2274, %v2273
      %v2289 = vpack.c.b16 %v2276, %v2275
      %v2290 = vpack.c.b16 %v2278, %v2277
      %v2291 = vpack.c.b16 %v2280, %v2279
      %v2292 = vpack.c.b16 %v2282, %v2281
      %v2293 = vpack.c.b16 %v2284, %v2283
      %v2294 = vpack.c.b16 %v2286, %v2285
      %2303 = vmatprep.subr.bf16.mxu0 0
      %2304 = vmatpush1.bf16.msra.mxu0 %v2294
      %2305 = vmatprep.subr.bf16.mxu0 0
      %2306 = vmatpush1.bf16.msra.mxu0 %v2293
      %2307 = vmatprep.subr.bf16.mxu0 0
      %2308 = vmatpush1.bf16.msra.mxu0 %v2292
      %2309 = vmatprep.subr.bf16.mxu0 0
      %2310 = vmatpush1.bf16.msra.mxu0 %v2291
      %2311 = vmatprep.subr.bf16.mxu0 0
      %2312 = vmatpush1.bf16.msra.mxu0 %v2290
      %2313 = vmatprep.subr.bf16.mxu0 0
      %2314 = vmatpush1.bf16.msra.mxu0 %v2289
      %2315 = vmatprep.subr.bf16.mxu0 0
      %2316 = vmatpush1.bf16.msra.mxu0 %v2288
      %2317 = vmatprep.subr.bf16.mxu0 0
      %2318 = vmatpush1.bf16.msra.mxu0 %v2287
      %2319 = vmatprep.subr.bf16.mxu0 0
      %2320 = vmatpush2.bf16.msra.mxu0 0
      %2321 = vmatprep.subr.bf16.mxu0 0
      %2322 = vmatpush2.bf16.msra.mxu0 0
      %2323 = vmatprep.subr.bf16.mxu0 0
      %2324 = vmatpush2.bf16.msra.mxu0 0
      %2325 = vmatprep.subr.bf16.mxu0 0
      %2326 = vmatpush2.bf16.msra.mxu0 0
      %2327 = vmatprep.subr.bf16.mxu0 0
      %2328 = vmatpush2.bf16.msra.mxu0 0
      %2329 = vmatprep.subr.bf16.mxu0 0
      %2330 = vmatpush2.bf16.msra.mxu0 0
      %2331 = vmatprep.subr.bf16.mxu0 0
      %2332 = vmatpush2.bf16.msra.mxu0 0
      %2333 = vmatprep.subr.bf16.mxu0 0
      %2334 = vmatpush2.bf16.msra.mxu0 0
      %2335 = vmatprep.mubr.bf16.mxu0 0
      %2336 = vmatmul.mubr.bf16.gmra.mxu0 %v2062
      %v2337 = vpop.f32.mrf.mxu0
      %v2338 = vadd.f32 0.0, %v2337
      %v2339 = vpop.f32.mrf.mxu0
      %v2340 = vpop.f32.mrf.mxu0
      %v2341 = vadd.f32 0.0, %v2340
      %v2342 = vpop.f32.mrf.mxu0
      %2343 = vmatprep.mubr.bf16.mxu0 0
      %2344 = vmatmul.mubr.bf16.gmra.mxu0 %v2063
      %v2345 = vpop.f32.mrf.mxu0
      %v2346 = vadd.f32 0.0, %v2345
      %v2347 = vpop.f32.mrf.mxu0
      %v2348 = vpop.f32.mrf.mxu0
      %v2349 = vadd.f32 0.0, %v2348
      %v2350 = vpop.f32.mrf.mxu0
      %2351 = vmatprep.mubr.bf16.mxu0 0
      %2352 = vmatmul.mubr.bf16.gmra.mxu0 %v2064
      %v2353 = vpop.f32.mrf.mxu0
      %v2354 = vadd.f32 0.0, %v2353
      %v2355 = vpop.f32.mrf.mxu0
      %v2356 = vpop.f32.mrf.mxu0
      %v2357 = vadd.f32 0.0, %v2356
      %v2358 = vpop.f32.mrf.mxu0
      %2359 = vmatprep.mubr.bf16.mxu0 0
      %2360 = vmatmul.mubr.bf16.gmra.mxu0 %v2065
      %v2361 = vpop.f32.mrf.mxu0
      %v2362 = vadd.f32 0.0, %v2361
      %v2363 = vpop.f32.mrf.mxu0
      %v2364 = vpop.f32.mrf.mxu0
      %v2365 = vadd.f32 0.0, %v2364
      %v2366 = vpop.f32.mrf.mxu0
      %2367 = vmatprep.mubr.bf16.mxu0 0
      %2368 = vmatmul.mubr.bf16.gmra.mxu0 %v2066
      %v2369 = vpop.f32.mrf.mxu0
      %v2370 = vadd.f32 0.0, %v2369
      %v2371 = vpop.f32.mrf.mxu0
      %v2372 = vpop.f32.mrf.mxu0
      %v2373 = vadd.f32 0.0, %v2372
      %v2374 = vpop.f32.mrf.mxu0
      %2375 = vmatprep.mubr.bf16.mxu0 0
      %2376 = vmatmul.mubr.bf16.gmra.mxu0 %v2067
      %v2377 = vpop.f32.mrf.mxu0
      %v2378 = vadd.f32 0.0, %v2377
      %v2379 = vpop.f32.mrf.mxu0
      %v2380 = vpop.f32.mrf.mxu0
      %v2381 = vadd.f32 0.0, %v2380
      %v2382 = vpop.f32.mrf.mxu0
      %2383 = vmatprep.mubr.bf16.mxu0 0
      %2384 = vmatmul.mubr.bf16.gmra.mxu0 %v2068
      %v2385 = vpop.f32.mrf.mxu0
      %v2386 = vadd.f32 0.0, %v2385
      %v2387 = vpop.f32.mrf.mxu0
      %v2388 = vpop.f32.mrf.mxu0
      %v2389 = vadd.f32 0.0, %v2388
      %v2390 = vpop.f32.mrf.mxu0
      %2391 = vmatprep.mubr.bf16.mxu0 0
      %2392 = vmatmul.mubr.bf16.gmra.mxu0 %v2069
      %v2393 = vpop.f32.mrf.mxu0
      %v2394 = vadd.f32 0.0, %v2393
      %v2395 = vpop.f32.mrf.mxu0
      %v2396 = vpop.f32.mrf.mxu0
      %v2397 = vadd.f32 0.0, %v2396
      %v2398 = vpop.f32.mrf.mxu0
      %2399 = vmatprep.mubr.bf16.mxu0 0
      %2400 = vmatmul.mubr.bf16.gmra.mxu0 %v2070
      %v2401 = vpop.f32.mrf.mxu0
      %v2402 = vadd.f32 0.0, %v2401
      %v2403 = vpop.f32.mrf.mxu0
      %v2404 = vpop.f32.mrf.mxu0
      %v2405 = vadd.f32 0.0, %v2404
      %v2406 = vpop.f32.mrf.mxu0
      %2407 = vmatprep.mubr.bf16.mxu0 0
      %2408 = vmatmul.mubr.bf16.gmra.mxu0 %v2071
      %v2409 = vpop.f32.mrf.mxu0
      %v2410 = vadd.f32 0.0, %v2409
      %v2411 = vpop.f32.mrf.mxu0
      %v2412 = vpop.f32.mrf.mxu0
      %v2413 = vadd.f32 0.0, %v2412
      %v2414 = vpop.f32.mrf.mxu0
      %2415 = vmatprep.mubr.bf16.mxu0 0
      %2416 = vmatmul.mubr.bf16.gmra.mxu0 %v2072
      %v2417 = vpop.f32.mrf.mxu0
      %v2418 = vadd.f32 0.0, %v2417
      %v2419 = vpop.f32.mrf.mxu0
      %v2420 = vpop.f32.mrf.mxu0
      %v2421 = vadd.f32 0.0, %v2420
      %v2422 = vpop.f32.mrf.mxu0
      %2423 = vmatprep.mubr.bf16.mxu0 0
      %2424 = vmatmul.mubr.bf16.gmra.mxu0 %v2073
      %v2425 = vpop.f32.mrf.mxu0
      %v2426 = vadd.f32 0.0, %v2425
      %v2427 = vpop.f32.mrf.mxu0
      %v2428 = vpop.f32.mrf.mxu0
      %v2429 = vadd.f32 0.0, %v2428
      %v2430 = vpop.f32.mrf.mxu0
      %2431 = vmatprep.mubr.bf16.mxu0 0
      %2432 = vmatmul.mubr.bf16.gmra.mxu0 %v2074
      %v2433 = vpop.f32.mrf.mxu0
      %v2434 = vadd.f32 0.0, %v2433
      %v2435 = vpop.f32.mrf.mxu0
      %v2436 = vpop.f32.mrf.mxu0
      %v2437 = vadd.f32 0.0, %v2436
      %v2438 = vpop.f32.mrf.mxu0
      %2439 = vmatprep.mubr.bf16.mxu0 0
      %2440 = vmatmul.mubr.bf16.gmra.mxu0 %v2075
      %v2441 = vpop.f32.mrf.mxu0
      %v2442 = vadd.f32 0.0, %v2441
      %v2443 = vpop.f32.mrf.mxu0
      %v2444 = vpop.f32.mrf.mxu0
      %v2445 = vadd.f32 0.0, %v2444
      %v2446 = vpop.f32.mrf.mxu0
      %2447 = vmatprep.mubr.bf16.mxu0 0
      %2448 = vmatmul.mubr.bf16.gmra.mxu0 %v2076
      %v2449 = vpop.f32.mrf.mxu0
      %v2450 = vadd.f32 0.0, %v2449
      %v2451 = vpop.f32.mrf.mxu0
      %v2452 = vpop.f32.mrf.mxu0
      %v2453 = vadd.f32 0.0, %v2452
      %v2454 = vpop.f32.mrf.mxu0
      %2455 = vmatprep.mubr.bf16.mxu0 0
      %2456 = vmatmul.mubr.bf16.gmra.mxu0 %v2077
      %v2457 = vpop.f32.mrf.mxu0
      %v2458 = vadd.f32 0.0, %v2457
      %v2459 = vpop.f32.mrf.mxu0
      %v2460 = vpop.f32.mrf.mxu0
      %v2461 = vadd.f32 0.0, %v2460
      %v2462 = vpop.f32.mrf.mxu0
      %2463 = vdwg.mxu0
      %v2480 = vunpack.c.l.b16 %v1646
      %v2481 = vunpack.c.l.b16 %v1647
      %v2482 = vunpack.c.l.b16 %v1648
      %v2483 = vunpack.c.l.b16 %v1649
      %v2484 = vunpack.c.l.b16 %v1650
      %v2485 = vunpack.c.l.b16 %v1651
      %v2486 = vunpack.c.l.b16 %v1652
      %v2487 = vunpack.c.l.b16 %v1653
      %v2488 = vunpack.c.l.b16 %v1654
      %v2489 = vunpack.c.l.b16 %v1655
      %v2490 = vunpack.c.l.b16 %v1656
      %v2491 = vunpack.c.l.b16 %v1657
      %v2492 = vunpack.c.l.b16 %v1658
      %v2493 = vunpack.c.l.b16 %v1659
      %v2494 = vunpack.c.l.b16 %v1660
      %v2495 = vunpack.c.l.b16 %v1661
      %v2496 = vpack.c.b16 %v2481, %v2480
      %v2497 = vpack.c.b16 %v2483, %v2482
      %v2498 = vpack.c.b16 %v2485, %v2484
      %v2499 = vpack.c.b16 %v2487, %v2486
      %v2500 = vpack.c.b16 %v2489, %v2488
      %v2501 = vpack.c.b16 %v2491, %v2490
      %v2502 = vpack.c.b16 %v2493, %v2492
      %v2503 = vpack.c.b16 %v2495, %v2494
      %2512 = vmatprep.subr.bf16.mxu0 0
      %2513 = vmatpush1.bf16.msra.mxu0 %v2503
      %2514 = vmatprep.subr.bf16.mxu0 0
      %2515 = vmatpush1.bf16.msra.mxu0 %v2502
      %2516 = vmatprep.subr.bf16.mxu0 0
      %2517 = vmatpush1.bf16.msra.mxu0 %v2501
      %2518 = vmatprep.subr.bf16.mxu0 0
      %2519 = vmatpush1.bf16.msra.mxu0 %v2500
      %2520 = vmatprep.subr.bf16.mxu0 0
      %2521 = vmatpush1.bf16.msra.mxu0 %v2499
      %2522 = vmatprep.subr.bf16.mxu0 0
      %2523 = vmatpush1.bf16.msra.mxu0 %v2498
      %2524 = vmatprep.subr.bf16.mxu0 0
      %2525 = vmatpush1.bf16.msra.mxu0 %v2497
      %2526 = vmatprep.subr.bf16.mxu0 0
      %2527 = vmatpush1.bf16.msra.mxu0 %v2496
      %2528 = vmatprep.subr.bf16.mxu0 0
      %2529 = vmatpush2.bf16.msra.mxu0 0
      %2530 = vmatprep.subr.bf16.mxu0 0
      %2531 = vmatpush2.bf16.msra.mxu0 0
      %2532 = vmatprep.subr.bf16.mxu0 0
      %2533 = vmatpush2.bf16.msra.mxu0 0
      %2534 = vmatprep.subr.bf16.mxu0 0
      %2535 = vmatpush2.bf16.msra.mxu0 0
      %2536 = vmatprep.subr.bf16.mxu0 0
      %2537 = vmatpush2.bf16.msra.mxu0 0
      %2538 = vmatprep.subr.bf16.mxu0 0
      %2539 = vmatpush2.bf16.msra.mxu0 0
      %2540 = vmatprep.subr.bf16.mxu0 0
      %2541 = vmatpush2.bf16.msra.mxu0 0
      %2542 = vmatprep.subr.bf16.mxu0 0
      %2543 = vmatpush2.bf16.msra.mxu0 0
      %2544 = vmatprep.mubr.bf16.mxu0 0
      %2545 = vmatmul.mubr.bf16.gmra.mxu0 %v2239
      %v2546 = vpop.f32.mrf.mxu0
      %v2547 = vadd.f32 %v2338, %v2546
      %v2548 = vpop.f32.mrf.mxu0
      %v2549 = vpop.f32.mrf.mxu0
      %v2550 = vadd.f32 %v2341, %v2549
      %v2551 = vpop.f32.mrf.mxu0
      %2552 = vmatprep.mubr.bf16.mxu0 0
      %2553 = vmatmul.mubr.bf16.gmra.mxu0 %v2240
      %v2554 = vpop.f32.mrf.mxu0
      %v2555 = vadd.f32 %v2346, %v2554
      %v2556 = vpop.f32.mrf.mxu0
      %v2557 = vpop.f32.mrf.mxu0
      %v2558 = vadd.f32 %v2349, %v2557
      %v2559 = vpop.f32.mrf.mxu0
      %2560 = vmatprep.mubr.bf16.mxu0 0
      %2561 = vmatmul.mubr.bf16.gmra.mxu0 %v2241
      %v2562 = vpop.f32.mrf.mxu0
      %v2563 = vadd.f32 %v2354, %v2562
      %v2564 = vpop.f32.mrf.mxu0
      %v2565 = vpop.f32.mrf.mxu0
      %v2566 = vadd.f32 %v2357, %v2565
      %v2567 = vpop.f32.mrf.mxu0
      %2568 = vmatprep.mubr.bf16.mxu0 0
      %2569 = vmatmul.mubr.bf16.gmra.mxu0 %v2242
      %v2570 = vpop.f32.mrf.mxu0
      %v2571 = vadd.f32 %v2362, %v2570
      %v2572 = vpop.f32.mrf.mxu0
      %v2573 = vpop.f32.mrf.mxu0
      %v2574 = vadd.f32 %v2365, %v2573
      %v2575 = vpop.f32.mrf.mxu0
      %2576 = vmatprep.mubr.bf16.mxu0 0
      %2577 = vmatmul.mubr.bf16.gmra.mxu0 %v2243
      %v2578 = vpop.f32.mrf.mxu0
      %v2579 = vadd.f32 %v2370, %v2578
      %v2580 = vpop.f32.mrf.mxu0
      %v2581 = vpop.f32.mrf.mxu0
      %v2582 = vadd.f32 %v2373, %v2581
      %v2583 = vpop.f32.mrf.mxu0
      %2584 = vmatprep.mubr.bf16.mxu0 0
      %2585 = vmatmul.mubr.bf16.gmra.mxu0 %v2244
      %v2586 = vpop.f32.mrf.mxu0
      %v2587 = vadd.f32 %v2378, %v2586
      %v2588 = vpop.f32.mrf.mxu0
      %v2589 = vpop.f32.mrf.mxu0
      %v2590 = vadd.f32 %v2381, %v2589
      %v2591 = vpop.f32.mrf.mxu0
      %2592 = vmatprep.mubr.bf16.mxu0 0
      %2593 = vmatmul.mubr.bf16.gmra.mxu0 %v2245
      %v2594 = vpop.f32.mrf.mxu0
      %v2595 = vadd.f32 %v2386, %v2594
      %v2596 = vpop.f32.mrf.mxu0
      %v2597 = vpop.f32.mrf.mxu0
      %v2598 = vadd.f32 %v2389, %v2597
      %v2599 = vpop.f32.mrf.mxu0
      %2600 = vmatprep.mubr.bf16.mxu0 0
      %2601 = vmatmul.mubr.bf16.gmra.mxu0 %v2246
      %v2602 = vpop.f32.mrf.mxu0
      %v2603 = vadd.f32 %v2394, %v2602
      %v2604 = vpop.f32.mrf.mxu0
      %v2605 = vpop.f32.mrf.mxu0
      %v2606 = vadd.f32 %v2397, %v2605
      %v2607 = vpop.f32.mrf.mxu0
      %2608 = vmatprep.mubr.bf16.mxu0 0
      %2609 = vmatmul.mubr.bf16.gmra.mxu0 %v2247
      %v2610 = vpop.f32.mrf.mxu0
      %v2611 = vadd.f32 %v2402, %v2610
      %v2612 = vpop.f32.mrf.mxu0
      %v2613 = vpop.f32.mrf.mxu0
      %v2614 = vadd.f32 %v2405, %v2613
      %v2615 = vpop.f32.mrf.mxu0
      %2616 = vmatprep.mubr.bf16.mxu0 0
      %2617 = vmatmul.mubr.bf16.gmra.mxu0 %v2248
      %v2618 = vpop.f32.mrf.mxu0
      %v2619 = vadd.f32 %v2410, %v2618
      %v2620 = vpop.f32.mrf.mxu0
      %v2621 = vpop.f32.mrf.mxu0
      %v2622 = vadd.f32 %v2413, %v2621
      %v2623 = vpop.f32.mrf.mxu0
      %2624 = vmatprep.mubr.bf16.mxu0 0
      %2625 = vmatmul.mubr.bf16.gmra.mxu0 %v2249
      %v2626 = vpop.f32.mrf.mxu0
      %v2627 = vadd.f32 %v2418, %v2626
      %v2628 = vpop.f32.mrf.mxu0
      %v2629 = vpop.f32.mrf.mxu0
      %v2630 = vadd.f32 %v2421, %v2629
      %v2631 = vpop.f32.mrf.mxu0
      %2632 = vmatprep.mubr.bf16.mxu0 0
      %2633 = vmatmul.mubr.bf16.gmra.mxu0 %v2250
      %v2634 = vpop.f32.mrf.mxu0
      %v2635 = vadd.f32 %v2426, %v2634
      %v2636 = vpop.f32.mrf.mxu0
      %v2637 = vpop.f32.mrf.mxu0
      %v2638 = vadd.f32 %v2429, %v2637
      %v2639 = vpop.f32.mrf.mxu0
      %2640 = vmatprep.mubr.bf16.mxu0 0
      %2641 = vmatmul.mubr.bf16.gmra.mxu0 %v2251
      %v2642 = vpop.f32.mrf.mxu0
      %v2643 = vadd.f32 %v2434, %v2642
      %v2644 = vpop.f32.mrf.mxu0
      %v2645 = vpop.f32.mrf.mxu0
      %v2646 = vadd.f32 %v2437, %v2645
      %v2647 = vpop.f32.mrf.mxu0
      %2648 = vmatprep.mubr.bf16.mxu0 0
      %2649 = vmatmul.mubr.bf16.gmra.mxu0 %v2252
      %v2650 = vpop.f32.mrf.mxu0
      %v2651 = vadd.f32 %v2442, %v2650
      %v2652 = vpop.f32.mrf.mxu0
      %v2653 = vpop.f32.mrf.mxu0
      %v2654 = vadd.f32 %v2445, %v2653
      %v2655 = vpop.f32.mrf.mxu0
      %2656 = vmatprep.mubr.bf16.mxu0 0
      %2657 = vmatmul.mubr.bf16.gmra.mxu0 %v2253
      %v2658 = vpop.f32.mrf.mxu0
      %v2659 = vadd.f32 %v2450, %v2658
      %v2660 = vpop.f32.mrf.mxu0
      %v2661 = vpop.f32.mrf.mxu0
      %v2662 = vadd.f32 %v2453, %v2661
      %v2663 = vpop.f32.mrf.mxu0
      %2664 = vmatprep.mubr.bf16.mxu0 0
      %2665 = vmatmul.mubr.bf16.gmra.mxu0 %v2254
      %v2666 = vpop.f32.mrf.mxu0
      %v2667 = vadd.f32 %v2458, %v2666
      %v2668 = vpop.f32.mrf.mxu0
      %v2669 = vpop.f32.mrf.mxu0
      %v2670 = vadd.f32 %v2461, %v2669
      %v2671 = vpop.f32.mrf.mxu0
      %2672 = vdwg.mxu0
      %v2673 = vlaneseq
      %v2674 = vshrl.u32 %v2673, 7
      %v2675 = vsub.s32 0, %v2674
      %v2676 = vrot.slane %v1727, %v2675
      %v2677 = vadd.f32 %v2547, %v2676
      %v2678 = vadd.f32 %v2550, %v2676
      %v2679 = vadd.f32 %v2555, %v2676
      %v2680 = vadd.f32 %v2558, %v2676
      %v2681 = vadd.f32 %v2563, %v2676
      %v2682 = vadd.f32 %v2566, %v2676
      %v2683 = vadd.f32 %v2571, %v2676
      %v2684 = vadd.f32 %v2574, %v2676
      %v2685 = vadd.f32 %v2579, %v2676
      %v2686 = vadd.f32 %v2582, %v2676
      %v2687 = vadd.f32 %v2587, %v2676
      %v2688 = vadd.f32 %v2590, %v2676
      %v2689 = vadd.f32 %v2595, %v2676
      %v2690 = vadd.f32 %v2598, %v2676
      %v2691 = vadd.f32 %v2603, %v2676
      %v2692 = vadd.f32 %v2606, %v2676
      %v2693 = vadd.f32 %v2611, %v2676
      %v2694 = vadd.f32 %v2614, %v2676
      %v2695 = vadd.f32 %v2619, %v2676
      %v2696 = vadd.f32 %v2622, %v2676
      %v2697 = vadd.f32 %v2627, %v2676
      %v2698 = vadd.f32 %v2630, %v2676
      %v2699 = vadd.f32 %v2635, %v2676
      %v2700 = vadd.f32 %v2638, %v2676
      %v2701 = vadd.f32 %v2643, %v2676
      %v2702 = vadd.f32 %v2646, %v2676
      %v2703 = vadd.f32 %v2651, %v2676
      %v2704 = vadd.f32 %v2654, %v2676
      %v2705 = vadd.f32 %v2659, %v2676
      %v2706 = vadd.f32 %v2662, %v2676
      %v2707 = vadd.f32 %v2667, %v2676
      %v2708 = vadd.f32 %v2670, %v2676
      %v2709 = vtanh.pop %v2677
      %v2710 = vtanh.pop %v2678
      %v2711 = vtanh.pop %v2679
      %v2712 = vtanh.pop %v2680
      %v2713 = vtanh.pop %v2681
      %v2714 = vtanh.pop %v2682
      %v2715 = vtanh.pop %v2683
      %v2716 = vtanh.pop %v2684
      %v2717 = vtanh.pop %v2685
      %v2718 = vtanh.pop %v2686
      %v2719 = vtanh.pop %v2687
      %v2720 = vtanh.pop %v2688
      %v2721 = vtanh.pop %v2689
      %v2722 = vtanh.pop %v2690
      %v2723 = vtanh.pop %v2691
      %v2724 = vtanh.pop %v2692
      %v2725 = vtanh.pop %v2693
      %v2726 = vtanh.pop %v2694
      %v2727 = vtanh.pop %v2695
      %v2728 = vtanh.pop %v2696
      %v2729 = vtanh.pop %v2697
      %v2730 = vtanh.pop %v2698
      %v2731 = vtanh.pop %v2699
      %v2732 = vtanh.pop %v2700
      %v2733 = vtanh.pop %v2701
      %v2734 = vtanh.pop %v2702
      %v2735 = vtanh.pop %v2703
      %v2736 = vtanh.pop %v2704
      %v2737 = vtanh.pop %v2705
      %v2738 = vtanh.pop %v2706
      %v2739 = vtanh.pop %v2707
      %v2740 = vtanh.pop %v2708
      %v2741 = vpack.c.bf16 %v2710, %v2709
      %v2742 = vpack.c.bf16 %v2712, %v2711
      %v2743 = vpack.c.bf16 %v2714, %v2713
      %v2744 = vpack.c.bf16 %v2716, %v2715
      %v2745 = vpack.c.bf16 %v2718, %v2717
      %v2746 = vpack.c.bf16 %v2720, %v2719
      %v2747 = vpack.c.bf16 %v2722, %v2721
      %v2748 = vpack.c.bf16 %v2724, %v2723
      %v2749 = vpack.c.bf16 %v2726, %v2725
      %v2750 = vpack.c.bf16 %v2728, %v2727
      %v2751 = vpack.c.bf16 %v2730, %v2729
      %v2752 = vpack.c.bf16 %v2732, %v2731
      %v2753 = vpack.c.bf16 %v2734, %v2733
      %v2754 = vpack.c.bf16 %v2736, %v2735
      %v2755 = vpack.c.bf16 %v2738, %v2737
      %v2756 = vpack.c.bf16 %v2740, %v2739
      %2757 = vmatprep.subr.bf16.mxu0 0
      %2758 = vmatpush1.bf16.msra.mxu0 %v2748
      %2759 = vmatprep.subr.bf16.mxu0 0
      %2760 = vmatpush1.bf16.msra.mxu0 %v2747
      %2761 = vmatprep.subr.bf16.mxu0 0
      %2762 = vmatpush1.bf16.msra.mxu0 %v2746
      %2763 = vmatprep.subr.bf16.mxu0 0
      %2764 = vmatpush1.bf16.msra.mxu0 %v2745
      %2765 = vmatprep.subr.bf16.mxu0 0
      %2766 = vmatpush1.bf16.msra.mxu0 %v2744
      %2767 = vmatprep.subr.bf16.mxu0 0
      %2768 = vmatpush1.bf16.msra.mxu0 %v2743
      %2769 = vmatprep.subr.bf16.mxu0 0
      %2770 = vmatpush1.bf16.msra.mxu0 %v2742
      %2771 = vmatprep.subr.bf16.mxu0 0
      %2772 = vmatpush1.bf16.msra.mxu0 %v2741
      %2773 = vmatprep.subr.bf16.mxu0 0
      %2774 = vmatpush2.bf16.msra.mxu0 %v2756
      %2775 = vmatprep.subr.bf16.mxu0 0
      %2776 = vmatpush2.bf16.msra.mxu0 %v2755
      %2777 = vmatprep.subr.bf16.mxu0 0
      %2778 = vmatpush2.bf16.msra.mxu0 %v2754
      %2779 = vmatprep.subr.bf16.mxu0 0
      %2780 = vmatpush2.bf16.msra.mxu0 %v2753
      %2781 = vmatprep.subr.bf16.mxu0 0
      %2782 = vmatpush2.bf16.msra.mxu0 %v2752
      %2783 = vmatprep.subr.bf16.mxu0 0
      %2784 = vmatpush2.bf16.msra.mxu0 %v2751
      %2785 = vmatprep.subr.bf16.mxu0 0
      %2786 = vmatpush2.bf16.msra.mxu0 %v2750
      %2787 = vmatprep.subr.bf16.mxu0 0
      %2788 = vmatpush2.bf16.msra.mxu0 %v2749
      %2789 = vmatprep.mubr.bf16.mxu0 %v1613
      %2790 = vmatmul.mubr.bf16.gmra.mxu0 %v1612
      %v2791 = vpop.f32.mrf.mxu0
      %v2792 = vadd.f32 0.0, %v2791
      %v2793 = vpop.f32.mrf.mxu0
      %v2794 = vpop.f32.mrf.mxu0
      %v2795 = vadd.f32 0.0, %v2794
      %v2796 = vpop.f32.mrf.mxu0
      %2797 = vmatprep.mubr.bf16.mxu0 %v1615
      %2798 = vmatmul.mubr.bf16.gmra.mxu0 %v1614
      %v2799 = vpop.f32.mrf.mxu0
      %v2800 = vadd.f32 0.0, %v2799
      %v2801 = vpop.f32.mrf.mxu0
      %v2802 = vpop.f32.mrf.mxu0
      %v2803 = vadd.f32 0.0, %v2802
      %v2804 = vpop.f32.mrf.mxu0
      %2805 = vmatprep.mubr.bf16.mxu0 %v1617
      %2806 = vmatmul.mubr.bf16.gmra.mxu0 %v1616
      %v2807 = vpop.f32.mrf.mxu0
      %v2808 = vadd.f32 0.0, %v2807
      %v2809 = vpop.f32.mrf.mxu0
      %v2810 = vpop.f32.mrf.mxu0
      %v2811 = vadd.f32 0.0, %v2810
      %v2812 = vpop.f32.mrf.mxu0
      %2813 = vmatprep.mubr.bf16.mxu0 %v1619
      %2814 = vmatmul.mubr.bf16.gmra.mxu0 %v1618
      %v2815 = vpop.f32.mrf.mxu0
      %v2816 = vadd.f32 0.0, %v2815
      %v2817 = vpop.f32.mrf.mxu0
      %v2818 = vpop.f32.mrf.mxu0
      %v2819 = vadd.f32 0.0, %v2818
      %v2820 = vpop.f32.mrf.mxu0
      %2821 = vmatprep.mubr.bf16.mxu0 %v1621
      %2822 = vmatmul.mubr.bf16.gmra.mxu0 %v1620
      %v2823 = vpop.f32.mrf.mxu0
      %v2824 = vadd.f32 0.0, %v2823
      %v2825 = vpop.f32.mrf.mxu0
      %v2826 = vpop.f32.mrf.mxu0
      %v2827 = vadd.f32 0.0, %v2826
      %v2828 = vpop.f32.mrf.mxu0
      %2829 = vmatprep.mubr.bf16.mxu0 %v1623
      %2830 = vmatmul.mubr.bf16.gmra.mxu0 %v1622
      %v2831 = vpop.f32.mrf.mxu0
      %v2832 = vadd.f32 0.0, %v2831
      %v2833 = vpop.f32.mrf.mxu0
      %v2834 = vpop.f32.mrf.mxu0
      %v2835 = vadd.f32 0.0, %v2834
      %v2836 = vpop.f32.mrf.mxu0
      %2837 = vmatprep.mubr.bf16.mxu0 %v1625
      %2838 = vmatmul.mubr.bf16.gmra.mxu0 %v1624
      %v2839 = vpop.f32.mrf.mxu0
      %v2840 = vadd.f32 0.0, %v2839
      %v2841 = vpop.f32.mrf.mxu0
      %v2842 = vpop.f32.mrf.mxu0
      %v2843 = vadd.f32 0.0, %v2842
      %v2844 = vpop.f32.mrf.mxu0
      %2845 = vmatprep.mubr.bf16.mxu0 %v1627
      %2846 = vmatmul.mubr.bf16.gmra.mxu0 %v1626
      %v2847 = vpop.f32.mrf.mxu0
      %v2848 = vadd.f32 0.0, %v2847
      %v2849 = vpop.f32.mrf.mxu0
      %v2850 = vpop.f32.mrf.mxu0
      %v2851 = vadd.f32 0.0, %v2850
      %v2852 = vpop.f32.mrf.mxu0
      %2853 = vmatprep.mubr.bf16.mxu0 %v1629
      %2854 = vmatmul.mubr.bf16.gmra.mxu0 %v1628
      %v2855 = vpop.f32.mrf.mxu0
      %v2856 = vadd.f32 0.0, %v2855
      %v2857 = vpop.f32.mrf.mxu0
      %v2858 = vpop.f32.mrf.mxu0
      %v2859 = vadd.f32 0.0, %v2858
      %v2860 = vpop.f32.mrf.mxu0
      %2861 = vmatprep.mubr.bf16.mxu0 %v1631
      %2862 = vmatmul.mubr.bf16.gmra.mxu0 %v1630
      %v2863 = vpop.f32.mrf.mxu0
      %v2864 = vadd.f32 0.0, %v2863
      %v2865 = vpop.f32.mrf.mxu0
      %v2866 = vpop.f32.mrf.mxu0
      %v2867 = vadd.f32 0.0, %v2866
      %v2868 = vpop.f32.mrf.mxu0
      %2869 = vmatprep.mubr.bf16.mxu0 %v1633
      %2870 = vmatmul.mubr.bf16.gmra.mxu0 %v1632
      %v2871 = vpop.f32.mrf.mxu0
      %v2872 = vadd.f32 0.0, %v2871
      %v2873 = vpop.f32.mrf.mxu0
      %v2874 = vpop.f32.mrf.mxu0
      %v2875 = vadd.f32 0.0, %v2874
      %v2876 = vpop.f32.mrf.mxu0
      %2877 = vmatprep.mubr.bf16.mxu0 %v1635
      %2878 = vmatmul.mubr.bf16.gmra.mxu0 %v1634
      %v2879 = vpop.f32.mrf.mxu0
      %v2880 = vadd.f32 0.0, %v2879
      %v2881 = vpop.f32.mrf.mxu0
      %v2882 = vpop.f32.mrf.mxu0
      %v2883 = vadd.f32 0.0, %v2882
      %v2884 = vpop.f32.mrf.mxu0
      %2885 = vmatprep.mubr.bf16.mxu0 %v1637
      %2886 = vmatmul.mubr.bf16.gmra.mxu0 %v1636
      %v2887 = vpop.f32.mrf.mxu0
      %v2888 = vadd.f32 0.0, %v2887
      %v2889 = vpop.f32.mrf.mxu0
      %v2890 = vpop.f32.mrf.mxu0
      %v2891 = vadd.f32 0.0, %v2890
      %v2892 = vpop.f32.mrf.mxu0
      %2893 = vmatprep.mubr.bf16.mxu0 %v1639
      %2894 = vmatmul.mubr.bf16.gmra.mxu0 %v1638
      %v2895 = vpop.f32.mrf.mxu0
      %v2896 = vadd.f32 0.0, %v2895
      %v2897 = vpop.f32.mrf.mxu0
      %v2898 = vpop.f32.mrf.mxu0
      %v2899 = vadd.f32 0.0, %v2898
      %v2900 = vpop.f32.mrf.mxu0
      %2901 = vmatprep.mubr.bf16.mxu0 %v1641
      %2902 = vmatmul.mubr.bf16.gmra.mxu0 %v1640
      %v2903 = vpop.f32.mrf.mxu0
      %v2904 = vadd.f32 0.0, %v2903
      %v2905 = vpop.f32.mrf.mxu0
      %v2906 = vpop.f32.mrf.mxu0
      %v2907 = vadd.f32 0.0, %v2906
      %v2908 = vpop.f32.mrf.mxu0
      %2909 = vmatprep.mubr.bf16.mxu0 %v1643
      %2910 = vmatmul.mubr.bf16.gmra.mxu0 %v1642
      %v2911 = vpop.f32.mrf.mxu0
      %v2912 = vadd.f32 0.0, %v2911
      %v2913 = vpop.f32.mrf.mxu0
      %v2914 = vpop.f32.mrf.mxu0
      %v2915 = vadd.f32 0.0, %v2914
      %v2916 = vpop.f32.mrf.mxu0
      %2917 = vdwg.mxu0
      %v2918 = vpack.c.bf16 %v2795, %v2792
      %v2919 = vpack.c.bf16 %v2803, %v2800
      %v2920 = vpack.c.bf16 %v2811, %v2808
      %v2921 = vpack.c.bf16 %v2819, %v2816
      %v2922 = vpack.c.bf16 %v2827, %v2824
      %v2923 = vpack.c.bf16 %v2835, %v2832
      %v2924 = vpack.c.bf16 %v2843, %v2840
      %v2925 = vpack.c.bf16 %v2851, %v2848
      %v2926 = vpack.c.bf16 %v2859, %v2856
      %v2927 = vpack.c.bf16 %v2867, %v2864
      %v2928 = vpack.c.bf16 %v2875, %v2872
      %v2929 = vpack.c.bf16 %v2883, %v2880
      %v2930 = vpack.c.bf16 %v2891, %v2888
      %v2931 = vpack.c.bf16 %v2899, %v2896
      %v2932 = vpack.c.bf16 %v2907, %v2904
      %v2933 = vpack.c.bf16 %v2915, %v2912
      %v2950 = vunpack.c.l.b16 %v1694
      %v2951 = vunpack.c.l.b16 %v1695
      %v2952 = vunpack.c.l.b16 %v1696
      %v2953 = vunpack.c.l.b16 %v1697
      %v2954 = vunpack.c.l.b16 %v1698
      %v2955 = vunpack.c.l.b16 %v1699
      %v2956 = vunpack.c.l.b16 %v1700
      %v2957 = vunpack.c.l.b16 %v1701
      %v2958 = vunpack.c.l.b16 %v1702
      %v2959 = vunpack.c.l.b16 %v1703
      %v2960 = vunpack.c.l.b16 %v1704
      %v2961 = vunpack.c.l.b16 %v1705
      %v2962 = vunpack.c.l.b16 %v1706
      %v2963 = vunpack.c.l.b16 %v1707
      %v2964 = vunpack.c.l.b16 %v1708
      %v2965 = vunpack.c.l.b16 %v1709
      %v2966 = vpack.c.b16 %v2951, %v2950
      %v2967 = vpack.c.b16 %v2953, %v2952
      %v2968 = vpack.c.b16 %v2955, %v2954
      %v2969 = vpack.c.b16 %v2957, %v2956
      %v2970 = vpack.c.b16 %v2959, %v2958
      %v2971 = vpack.c.b16 %v2961, %v2960
      %v2972 = vpack.c.b16 %v2963, %v2962
      %v2973 = vpack.c.b16 %v2965, %v2964
      %2982 = vmatprep.subr.bf16.mxu0 0
      %2983 = vmatpush1.bf16.msra.mxu0 %v2973
      %2984 = vmatprep.subr.bf16.mxu0 0
      %2985 = vmatpush1.bf16.msra.mxu0 %v2972
      %2986 = vmatprep.subr.bf16.mxu0 0
      %2987 = vmatpush1.bf16.msra.mxu0 %v2971
      %2988 = vmatprep.subr.bf16.mxu0 0
      %2989 = vmatpush1.bf16.msra.mxu0 %v2970
      %2990 = vmatprep.subr.bf16.mxu0 0
      %2991 = vmatpush1.bf16.msra.mxu0 %v2969
      %2992 = vmatprep.subr.bf16.mxu0 0
      %2993 = vmatpush1.bf16.msra.mxu0 %v2968
      %2994 = vmatprep.subr.bf16.mxu0 0
      %2995 = vmatpush1.bf16.msra.mxu0 %v2967
      %2996 = vmatprep.subr.bf16.mxu0 0
      %2997 = vmatpush1.bf16.msra.mxu0 %v2966
      %2998 = vmatprep.subr.bf16.mxu0 0
      %2999 = vmatpush2.bf16.msra.mxu0 0
      %3000 = vmatprep.subr.bf16.mxu0 0
      %3001 = vmatpush2.bf16.msra.mxu0 0
      %3002 = vmatprep.subr.bf16.mxu0 0
      %3003 = vmatpush2.bf16.msra.mxu0 0
      %3004 = vmatprep.subr.bf16.mxu0 0
      %3005 = vmatpush2.bf16.msra.mxu0 0
      %3006 = vmatprep.subr.bf16.mxu0 0
      %3007 = vmatpush2.bf16.msra.mxu0 0
      %3008 = vmatprep.subr.bf16.mxu0 0
      %3009 = vmatpush2.bf16.msra.mxu0 0
      %3010 = vmatprep.subr.bf16.mxu0 0
      %3011 = vmatpush2.bf16.msra.mxu0 0
      %3012 = vmatprep.subr.bf16.mxu0 0
      %3013 = vmatpush2.bf16.msra.mxu0 0
      %3014 = vmatprep.mubr.bf16.mxu0 0
      %3015 = vmatmul.mubr.bf16.gmra.mxu0 %v2741
      %v3016 = vpop.f32.mrf.mxu0
      %v3017 = vadd.f32 0.0, %v3016
      %v3018 = vpop.f32.mrf.mxu0
      %v3019 = vpop.f32.mrf.mxu0
      %v3020 = vadd.f32 0.0, %v3019
      %v3021 = vpop.f32.mrf.mxu0
      %3022 = vmatprep.mubr.bf16.mxu0 0
      %3023 = vmatmul.mubr.bf16.gmra.mxu0 %v2742
      %v3024 = vpop.f32.mrf.mxu0
      %v3025 = vadd.f32 0.0, %v3024
      %v3026 = vpop.f32.mrf.mxu0
      %v3027 = vpop.f32.mrf.mxu0
      %v3028 = vadd.f32 0.0, %v3027
      %v3029 = vpop.f32.mrf.mxu0
      %3030 = vmatprep.mubr.bf16.mxu0 0
      %3031 = vmatmul.mubr.bf16.gmra.mxu0 %v2743
      %v3032 = vpop.f32.mrf.mxu0
      %v3033 = vadd.f32 0.0, %v3032
      %v3034 = vpop.f32.mrf.mxu0
      %v3035 = vpop.f32.mrf.mxu0
      %v3036 = vadd.f32 0.0, %v3035
      %v3037 = vpop.f32.mrf.mxu0
      %3038 = vmatprep.mubr.bf16.mxu0 0
      %3039 = vmatmul.mubr.bf16.gmra.mxu0 %v2744
      %v3040 = vpop.f32.mrf.mxu0
      %v3041 = vadd.f32 0.0, %v3040
      %v3042 = vpop.f32.mrf.mxu0
      %v3043 = vpop.f32.mrf.mxu0
      %v3044 = vadd.f32 0.0, %v3043
      %v3045 = vpop.f32.mrf.mxu0
      %3046 = vmatprep.mubr.bf16.mxu0 0
      %3047 = vmatmul.mubr.bf16.gmra.mxu0 %v2745
      %v3048 = vpop.f32.mrf.mxu0
      %v3049 = vadd.f32 0.0, %v3048
      %v3050 = vpop.f32.mrf.mxu0
      %v3051 = vpop.f32.mrf.mxu0
      %v3052 = vadd.f32 0.0, %v3051
      %v3053 = vpop.f32.mrf.mxu0
      %3054 = vmatprep.mubr.bf16.mxu0 0
      %3055 = vmatmul.mubr.bf16.gmra.mxu0 %v2746
      %v3056 = vpop.f32.mrf.mxu0
      %v3057 = vadd.f32 0.0, %v3056
      %v3058 = vpop.f32.mrf.mxu0
      %v3059 = vpop.f32.mrf.mxu0
      %v3060 = vadd.f32 0.0, %v3059
      %v3061 = vpop.f32.mrf.mxu0
      %3062 = vmatprep.mubr.bf16.mxu0 0
      %3063 = vmatmul.mubr.bf16.gmra.mxu0 %v2747
      %v3064 = vpop.f32.mrf.mxu0
      %v3065 = vadd.f32 0.0, %v3064
      %v3066 = vpop.f32.mrf.mxu0
      %v3067 = vpop.f32.mrf.mxu0
      %v3068 = vadd.f32 0.0, %v3067
      %v3069 = vpop.f32.mrf.mxu0
      %3070 = vmatprep.mubr.bf16.mxu0 0
      %3071 = vmatmul.mubr.bf16.gmra.mxu0 %v2748
      %v3072 = vpop.f32.mrf.mxu0
      %v3073 = vadd.f32 0.0, %v3072
      %v3074 = vpop.f32.mrf.mxu0
      %v3075 = vpop.f32.mrf.mxu0
      %v3076 = vadd.f32 0.0, %v3075
      %v3077 = vpop.f32.mrf.mxu0
      %3078 = vmatprep.mubr.bf16.mxu0 0
      %3079 = vmatmul.mubr.bf16.gmra.mxu0 %v2749
      %v3080 = vpop.f32.mrf.mxu0
      %v3081 = vadd.f32 0.0, %v3080
      %v3082 = vpop.f32.mrf.mxu0
      %v3083 = vpop.f32.mrf.mxu0
      %v3084 = vadd.f32 0.0, %v3083
      %v3085 = vpop.f32.mrf.mxu0
      %3086 = vmatprep.mubr.bf16.mxu0 0
      %3087 = vmatmul.mubr.bf16.gmra.mxu0 %v2750
      %v3088 = vpop.f32.mrf.mxu0
      %v3089 = vadd.f32 0.0, %v3088
      %v3090 = vpop.f32.mrf.mxu0
      %v3091 = vpop.f32.mrf.mxu0
      %v3092 = vadd.f32 0.0, %v3091
      %v3093 = vpop.f32.mrf.mxu0
      %3094 = vmatprep.mubr.bf16.mxu0 0
      %3095 = vmatmul.mubr.bf16.gmra.mxu0 %v2751
      %v3096 = vpop.f32.mrf.mxu0
      %v3097 = vadd.f32 0.0, %v3096
      %v3098 = vpop.f32.mrf.mxu0
      %v3099 = vpop.f32.mrf.mxu0
      %v3100 = vadd.f32 0.0, %v3099
      %v3101 = vpop.f32.mrf.mxu0
      %3102 = vmatprep.mubr.bf16.mxu0 0
      %3103 = vmatmul.mubr.bf16.gmra.mxu0 %v2752
      %v3104 = vpop.f32.mrf.mxu0
      %v3105 = vadd.f32 0.0, %v3104
      %v3106 = vpop.f32.mrf.mxu0
      %v3107 = vpop.f32.mrf.mxu0
      %v3108 = vadd.f32 0.0, %v3107
      %v3109 = vpop.f32.mrf.mxu0
      %3110 = vmatprep.mubr.bf16.mxu0 0
      %3111 = vmatmul.mubr.bf16.gmra.mxu0 %v2753
      %v3112 = vpop.f32.mrf.mxu0
      %v3113 = vadd.f32 0.0, %v3112
      %v3114 = vpop.f32.mrf.mxu0
      %v3115 = vpop.f32.mrf.mxu0
      %v3116 = vadd.f32 0.0, %v3115
      %v3117 = vpop.f32.mrf.mxu0
      %3118 = vmatprep.mubr.bf16.mxu0 0
      %3119 = vmatmul.mubr.bf16.gmra.mxu0 %v2754
      %v3120 = vpop.f32.mrf.mxu0
      %v3121 = vadd.f32 0.0, %v3120
      %v3122 = vpop.f32.mrf.mxu0
      %v3123 = vpop.f32.mrf.mxu0
      %v3124 = vadd.f32 0.0, %v3123
      %v3125 = vpop.f32.mrf.mxu0
      %3126 = vmatprep.mubr.bf16.mxu0 0
      %3127 = vmatmul.mubr.bf16.gmra.mxu0 %v2755
      %v3128 = vpop.f32.mrf.mxu0
      %v3129 = vadd.f32 0.0, %v3128
      %v3130 = vpop.f32.mrf.mxu0
      %v3131 = vpop.f32.mrf.mxu0
      %v3132 = vadd.f32 0.0, %v3131
      %v3133 = vpop.f32.mrf.mxu0
      %3134 = vmatprep.mubr.bf16.mxu0 0
      %3135 = vmatmul.mubr.bf16.gmra.mxu0 %v2756
      %v3136 = vpop.f32.mrf.mxu0
      %v3137 = vadd.f32 0.0, %v3136
      %v3138 = vpop.f32.mrf.mxu0
      %v3139 = vpop.f32.mrf.mxu0
      %v3140 = vadd.f32 0.0, %v3139
      %v3141 = vpop.f32.mrf.mxu0
      %3142 = vdwg.mxu0
      %v3159 = vunpack.c.l.b16 %v1678
      %v3160 = vunpack.c.l.b16 %v1679
      %v3161 = vunpack.c.l.b16 %v1680
      %v3162 = vunpack.c.l.b16 %v1681
      %v3163 = vunpack.c.l.b16 %v1682
      %v3164 = vunpack.c.l.b16 %v1683
      %v3165 = vunpack.c.l.b16 %v1684
      %v3166 = vunpack.c.l.b16 %v1685
      %v3167 = vunpack.c.l.b16 %v1686
      %v3168 = vunpack.c.l.b16 %v1687
      %v3169 = vunpack.c.l.b16 %v1688
      %v3170 = vunpack.c.l.b16 %v1689
      %v3171 = vunpack.c.l.b16 %v1690
      %v3172 = vunpack.c.l.b16 %v1691
      %v3173 = vunpack.c.l.b16 %v1692
      %v3174 = vunpack.c.l.b16 %v1693
      %v3175 = vpack.c.b16 %v3160, %v3159
      %v3176 = vpack.c.b16 %v3162, %v3161
      %v3177 = vpack.c.b16 %v3164, %v3163
      %v3178 = vpack.c.b16 %v3166, %v3165
      %v3179 = vpack.c.b16 %v3168, %v3167
      %v3180 = vpack.c.b16 %v3170, %v3169
      %v3181 = vpack.c.b16 %v3172, %v3171
      %v3182 = vpack.c.b16 %v3174, %v3173
      %3191 = vmatprep.subr.bf16.mxu0 0
      %3192 = vmatpush1.bf16.msra.mxu0 %v3182
      %3193 = vmatprep.subr.bf16.mxu0 0
      %3194 = vmatpush1.bf16.msra.mxu0 %v3181
      %3195 = vmatprep.subr.bf16.mxu0 0
      %3196 = vmatpush1.bf16.msra.mxu0 %v3180
      %3197 = vmatprep.subr.bf16.mxu0 0
      %3198 = vmatpush1.bf16.msra.mxu0 %v3179
      %3199 = vmatprep.subr.bf16.mxu0 0
      %3200 = vmatpush1.bf16.msra.mxu0 %v3178
      %3201 = vmatprep.subr.bf16.mxu0 0
      %3202 = vmatpush1.bf16.msra.mxu0 %v3177
      %3203 = vmatprep.subr.bf16.mxu0 0
      %3204 = vmatpush1.bf16.msra.mxu0 %v3176
      %3205 = vmatprep.subr.bf16.mxu0 0
      %3206 = vmatpush1.bf16.msra.mxu0 %v3175
      %3207 = vmatprep.subr.bf16.mxu0 0
      %3208 = vmatpush2.bf16.msra.mxu0 0
      %3209 = vmatprep.subr.bf16.mxu0 0
      %3210 = vmatpush2.bf16.msra.mxu0 0
      %3211 = vmatprep.subr.bf16.mxu0 0
      %3212 = vmatpush2.bf16.msra.mxu0 0
      %3213 = vmatprep.subr.bf16.mxu0 0
      %3214 = vmatpush2.bf16.msra.mxu0 0
      %3215 = vmatprep.subr.bf16.mxu0 0
      %3216 = vmatpush2.bf16.msra.mxu0 0
      %3217 = vmatprep.subr.bf16.mxu0 0
      %3218 = vmatpush2.bf16.msra.mxu0 0
      %3219 = vmatprep.subr.bf16.mxu0 0
      %3220 = vmatpush2.bf16.msra.mxu0 0
      %3221 = vmatprep.subr.bf16.mxu0 0
      %3222 = vmatpush2.bf16.msra.mxu0 0
      %3223 = vmatprep.mubr.bf16.mxu0 0
      %3224 = vmatmul.mubr.bf16.gmra.mxu0 %v2918
      %v3225 = vpop.f32.mrf.mxu0
      %v3226 = vadd.f32 %v3017, %v3225
      %v3227 = vpop.f32.mrf.mxu0
      %v3228 = vpop.f32.mrf.mxu0
      %v3229 = vadd.f32 %v3020, %v3228
      %v3230 = vpop.f32.mrf.mxu0
      %3231 = vmatprep.mubr.bf16.mxu0 0
      %3232 = vmatmul.mubr.bf16.gmra.mxu0 %v2919
      %v3233 = vpop.f32.mrf.mxu0
      %v3234 = vadd.f32 %v3025, %v3233
      %v3235 = vpop.f32.mrf.mxu0
      %v3236 = vpop.f32.mrf.mxu0
      %v3237 = vadd.f32 %v3028, %v3236
      %v3238 = vpop.f32.mrf.mxu0
      %3239 = vmatprep.mubr.bf16.mxu0 0
      %3240 = vmatmul.mubr.bf16.gmra.mxu0 %v2920
      %v3241 = vpop.f32.mrf.mxu0
      %v3242 = vadd.f32 %v3033, %v3241
      %v3243 = vpop.f32.mrf.mxu0
      %v3244 = vpop.f32.mrf.mxu0
      %v3245 = vadd.f32 %v3036, %v3244
      %v3246 = vpop.f32.mrf.mxu0
      %3247 = vmatprep.mubr.bf16.mxu0 0
      %3248 = vmatmul.mubr.bf16.gmra.mxu0 %v2921
      %v3249 = vpop.f32.mrf.mxu0
      %v3250 = vadd.f32 %v3041, %v3249
      %v3251 = vpop.f32.mrf.mxu0
      %v3252 = vpop.f32.mrf.mxu0
      %v3253 = vadd.f32 %v3044, %v3252
      %v3254 = vpop.f32.mrf.mxu0
      %3255 = vmatprep.mubr.bf16.mxu0 0
      %3256 = vmatmul.mubr.bf16.gmra.mxu0 %v2922
      %v3257 = vpop.f32.mrf.mxu0
      %v3258 = vadd.f32 %v3049, %v3257
      %v3259 = vpop.f32.mrf.mxu0
      %v3260 = vpop.f32.mrf.mxu0
      %v3261 = vadd.f32 %v3052, %v3260
      %v3262 = vpop.f32.mrf.mxu0
      %3263 = vmatprep.mubr.bf16.mxu0 0
      %3264 = vmatmul.mubr.bf16.gmra.mxu0 %v2923
      %v3265 = vpop.f32.mrf.mxu0
      %v3266 = vadd.f32 %v3057, %v3265
      %v3267 = vpop.f32.mrf.mxu0
      %v3268 = vpop.f32.mrf.mxu0
      %v3269 = vadd.f32 %v3060, %v3268
      %v3270 = vpop.f32.mrf.mxu0
      %3271 = vmatprep.mubr.bf16.mxu0 0
      %3272 = vmatmul.mubr.bf16.gmra.mxu0 %v2924
      %v3273 = vpop.f32.mrf.mxu0
      %v3274 = vadd.f32 %v3065, %v3273
      %v3275 = vpop.f32.mrf.mxu0
      %v3276 = vpop.f32.mrf.mxu0
      %v3277 = vadd.f32 %v3068, %v3276
      %v3278 = vpop.f32.mrf.mxu0
      %3279 = vmatprep.mubr.bf16.mxu0 0
      %3280 = vmatmul.mubr.bf16.gmra.mxu0 %v2925
      %v3281 = vpop.f32.mrf.mxu0
      %v3282 = vadd.f32 %v3073, %v3281
      %v3283 = vpop.f32.mrf.mxu0
      %v3284 = vpop.f32.mrf.mxu0
      %v3285 = vadd.f32 %v3076, %v3284
      %v3286 = vpop.f32.mrf.mxu0
      %3287 = vmatprep.mubr.bf16.mxu0 0
      %3288 = vmatmul.mubr.bf16.gmra.mxu0 %v2926
      %v3289 = vpop.f32.mrf.mxu0
      %v3290 = vadd.f32 %v3081, %v3289
      %v3291 = vpop.f32.mrf.mxu0
      %v3292 = vpop.f32.mrf.mxu0
      %v3293 = vadd.f32 %v3084, %v3292
      %v3294 = vpop.f32.mrf.mxu0
      %3295 = vmatprep.mubr.bf16.mxu0 0
      %3296 = vmatmul.mubr.bf16.gmra.mxu0 %v2927
      %v3297 = vpop.f32.mrf.mxu0
      %v3298 = vadd.f32 %v3089, %v3297
      %v3299 = vpop.f32.mrf.mxu0
      %v3300 = vpop.f32.mrf.mxu0
      %v3301 = vadd.f32 %v3092, %v3300
      %v3302 = vpop.f32.mrf.mxu0
      %3303 = vmatprep.mubr.bf16.mxu0 0
      %3304 = vmatmul.mubr.bf16.gmra.mxu0 %v2928
      %v3305 = vpop.f32.mrf.mxu0
      %v3306 = vadd.f32 %v3097, %v3305
      %v3307 = vpop.f32.mrf.mxu0
      %v3308 = vpop.f32.mrf.mxu0
      %v3309 = vadd.f32 %v3100, %v3308
      %v3310 = vpop.f32.mrf.mxu0
      %3311 = vmatprep.mubr.bf16.mxu0 0
      %3312 = vmatmul.mubr.bf16.gmra.mxu0 %v2929
      %v3313 = vpop.f32.mrf.mxu0
      %v3314 = vadd.f32 %v3105, %v3313
      %v3315 = vpop.f32.mrf.mxu0
      %v3316 = vpop.f32.mrf.mxu0
      %v3317 = vadd.f32 %v3108, %v3316
      %v3318 = vpop.f32.mrf.mxu0
      %3319 = vmatprep.mubr.bf16.mxu0 0
      %3320 = vmatmul.mubr.bf16.gmra.mxu0 %v2930
      %v3321 = vpop.f32.mrf.mxu0
      %v3322 = vadd.f32 %v3113, %v3321
      %v3323 = vpop.f32.mrf.mxu0
      %v3324 = vpop.f32.mrf.mxu0
      %v3325 = vadd.f32 %v3116, %v3324
      %v3326 = vpop.f32.mrf.mxu0
      %3327 = vmatprep.mubr.bf16.mxu0 0
      %3328 = vmatmul.mubr.bf16.gmra.mxu0 %v2931
      %v3329 = vpop.f32.mrf.mxu0
      %v3330 = vadd.f32 %v3121, %v3329
      %v3331 = vpop.f32.mrf.mxu0
      %v3332 = vpop.f32.mrf.mxu0
      %v3333 = vadd.f32 %v3124, %v3332
      %v3334 = vpop.f32.mrf.mxu0
      %3335 = vmatprep.mubr.bf16.mxu0 0
      %3336 = vmatmul.mubr.bf16.gmra.mxu0 %v2932
      %v3337 = vpop.f32.mrf.mxu0
      %v3338 = vadd.f32 %v3129, %v3337
      %v3339 = vpop.f32.mrf.mxu0
      %v3340 = vpop.f32.mrf.mxu0
      %v3341 = vadd.f32 %v3132, %v3340
      %v3342 = vpop.f32.mrf.mxu0
      %3343 = vmatprep.mubr.bf16.mxu0 0
      %3344 = vmatmul.mubr.bf16.gmra.mxu0 %v2933
      %v3345 = vpop.f32.mrf.mxu0
      %v3346 = vadd.f32 %v3137, %v3345
      %v3347 = vpop.f32.mrf.mxu0
      %v3348 = vpop.f32.mrf.mxu0
      %v3349 = vadd.f32 %v3140, %v3348
      %v3350 = vpop.f32.mrf.mxu0
      %3351 = vdwg.mxu0
      %v3352 = vlaneseq
      %v3353 = vshrl.u32 %v3352, 7
      %v3354 = vsub.s32 0, %v3353
      %v3355 = vrot.slane %v1728, %v3354
      %v3356 = vadd.f32 %v3226, %v3355
      %v3357 = vadd.f32 %v3229, %v3355
      %v3358 = vadd.f32 %v3234, %v3355
      %v3359 = vadd.f32 %v3237, %v3355
      %v3360 = vadd.f32 %v3242, %v3355
      %v3361 = vadd.f32 %v3245, %v3355
      %v3362 = vadd.f32 %v3250, %v3355
      %v3363 = vadd.f32 %v3253, %v3355
      %v3364 = vadd.f32 %v3258, %v3355
      %v3365 = vadd.f32 %v3261, %v3355
      %v3366 = vadd.f32 %v3266, %v3355
      %v3367 = vadd.f32 %v3269, %v3355
      %v3368 = vadd.f32 %v3274, %v3355
      %v3369 = vadd.f32 %v3277, %v3355
      %v3370 = vadd.f32 %v3282, %v3355
      %v3371 = vadd.f32 %v3285, %v3355
      %v3372 = vadd.f32 %v3290, %v3355
      %v3373 = vadd.f32 %v3293, %v3355
      %v3374 = vadd.f32 %v3298, %v3355
      %v3375 = vadd.f32 %v3301, %v3355
      %v3376 = vadd.f32 %v3306, %v3355
      %v3377 = vadd.f32 %v3309, %v3355
      %v3378 = vadd.f32 %v3314, %v3355
      %v3379 = vadd.f32 %v3317, %v3355
      %v3380 = vadd.f32 %v3322, %v3355
      %v3381 = vadd.f32 %v3325, %v3355
      %v3382 = vadd.f32 %v3330, %v3355
      %v3383 = vadd.f32 %v3333, %v3355
      %v3384 = vadd.f32 %v3338, %v3355
      %v3385 = vadd.f32 %v3341, %v3355
      %v3386 = vadd.f32 %v3346, %v3355
      %v3387 = vadd.f32 %v3349, %v3355
      %v3388 = vtanh.pop %v3356
      %v3389 = vtanh.pop %v3357
      %v3390 = vtanh.pop %v3358
      %v3391 = vtanh.pop %v3359
      %v3392 = vtanh.pop %v3360
      %v3393 = vtanh.pop %v3361
      %v3394 = vtanh.pop %v3362
      %v3395 = vtanh.pop %v3363
      %v3396 = vtanh.pop %v3364
      %v3397 = vtanh.pop %v3365
      %v3398 = vtanh.pop %v3366
      %v3399 = vtanh.pop %v3367
      %v3400 = vtanh.pop %v3368
      %v3401 = vtanh.pop %v3369
      %v3402 = vtanh.pop %v3370
      %v3403 = vtanh.pop %v3371
      %v3404 = vtanh.pop %v3372
      %v3405 = vtanh.pop %v3373
      %v3406 = vtanh.pop %v3374
      %v3407 = vtanh.pop %v3375
      %v3408 = vtanh.pop %v3376
      %v3409 = vtanh.pop %v3377
      %v3410 = vtanh.pop %v3378
      %v3411 = vtanh.pop %v3379
      %v3412 = vtanh.pop %v3380
      %v3413 = vtanh.pop %v3381
      %v3414 = vtanh.pop %v3382
      %v3415 = vtanh.pop %v3383
      %v3416 = vtanh.pop %v3384
      %v3417 = vtanh.pop %v3385
      %v3418 = vtanh.pop %v3386
      %v3419 = vtanh.pop %v3387
      %v3420 = vpack.c.bf16 %v3389, %v3388
      %v3421 = vpack.c.bf16 %v3391, %v3390
      %v3422 = vpack.c.bf16 %v3393, %v3392
      %v3423 = vpack.c.bf16 %v3395, %v3394
      %v3424 = vpack.c.bf16 %v3397, %v3396
      %v3425 = vpack.c.bf16 %v3399, %v3398
      %v3426 = vpack.c.bf16 %v3401, %v3400
      %v3427 = vpack.c.bf16 %v3403, %v3402
      %v3428 = vpack.c.bf16 %v3405, %v3404
      %v3429 = vpack.c.bf16 %v3407, %v3406
      %v3430 = vpack.c.bf16 %v3409, %v3408
      %v3431 = vpack.c.bf16 %v3411, %v3410
      %v3432 = vpack.c.bf16 %v3413, %v3412
      %v3433 = vpack.c.bf16 %v3415, %v3414
      %v3434 = vpack.c.bf16 %v3417, %v3416
      %v3435 = vpack.c.bf16 %v3419, %v3418
      %v3436 = vlaneseq
      %v3437 = vshrl.u32 %v3436, 7
      %v3438 = vsub.s32 0, %v3437
      %v3439 = vrot.slane %v1729, %v3438
      %v3456 = vunpack.c.l.b16 %v1710
      %v3457 = vunpack.c.l.b16 %v1711
      %v3458 = vunpack.c.l.b16 %v1712
      %v3459 = vunpack.c.l.b16 %v1713
      %v3460 = vunpack.c.l.b16 %v1714
      %v3461 = vunpack.c.l.b16 %v1715
      %v3462 = vunpack.c.l.b16 %v1716
      %v3463 = vunpack.c.l.b16 %v1717
      %v3464 = vunpack.c.l.b16 %v1718
      %v3465 = vunpack.c.l.b16 %v1719
      %v3466 = vunpack.c.l.b16 %v1720
      %v3467 = vunpack.c.l.b16 %v1721
      %v3468 = vunpack.c.l.b16 %v1722
      %v3469 = vunpack.c.l.b16 %v1723
      %v3470 = vunpack.c.l.b16 %v1724
      %v3471 = vunpack.c.l.b16 %v1725
      %v3472 = vpack.c.b16 %v3457, %v3456
      %v3473 = vpack.c.b16 %v3459, %v3458
      %v3474 = vpack.c.b16 %v3461, %v3460
      %v3475 = vpack.c.b16 %v3463, %v3462
      %v3476 = vpack.c.b16 %v3465, %v3464
      %v3477 = vpack.c.b16 %v3467, %v3466
      %v3478 = vpack.c.b16 %v3469, %v3468
      %v3479 = vpack.c.b16 %v3471, %v3470
      %3488 = vmatprep.subr.bf16.mxu0 0
      %3489 = vmatpush1.bf16.msra.mxu0 %v3479
      %3490 = vmatprep.subr.bf16.mxu0 0
      %3491 = vmatpush1.bf16.msra.mxu0 %v3478
      %3492 = vmatprep.subr.bf16.mxu0 0
      %3493 = vmatpush1.bf16.msra.mxu0 %v3477
      %3494 = vmatprep.subr.bf16.mxu0 0
      %3495 = vmatpush1.bf16.msra.mxu0 %v3476
      %3496 = vmatprep.subr.bf16.mxu0 0
      %3497 = vmatpush1.bf16.msra.mxu0 %v3475
      %3498 = vmatprep.subr.bf16.mxu0 0
      %3499 = vmatpush1.bf16.msra.mxu0 %v3474
      %3500 = vmatprep.subr.bf16.mxu0 0
      %3501 = vmatpush1.bf16.msra.mxu0 %v3473
      %3502 = vmatprep.subr.bf16.mxu0 0
      %3503 = vmatpush1.bf16.msra.mxu0 %v3472
      %3504 = vmatprep.subr.bf16.mxu0 0
      %3505 = vmatpush2.bf16.msra.mxu0 0
      %3506 = vmatprep.subr.bf16.mxu0 0
      %3507 = vmatpush2.bf16.msra.mxu0 0
      %3508 = vmatprep.subr.bf16.mxu0 0
      %3509 = vmatpush2.bf16.msra.mxu0 0
      %3510 = vmatprep.subr.bf16.mxu0 0
      %3511 = vmatpush2.bf16.msra.mxu0 0
      %3512 = vmatprep.subr.bf16.mxu0 0
      %3513 = vmatpush2.bf16.msra.mxu0 0
      %3514 = vmatprep.subr.bf16.mxu0 0
      %3515 = vmatpush2.bf16.msra.mxu0 0
      %3516 = vmatprep.subr.bf16.mxu0 0
      %3517 = vmatpush2.bf16.msra.mxu0 0
      %3518 = vmatprep.subr.bf16.mxu0 0
      %3519 = vmatpush2.bf16.msra.mxu0 0
      %3520 = vmatprep.mubr.bf16.mxu0 0
      %3521 = vmatmul.mubr.bf16.gmra.mxu0 %v3420
      %v3522 = vpop.f32.mrf.mxu0
      %v3523 = vadd.f32 %v3439, %v3522
      %v3524 = vpop.f32.mrf.mxu0
      %v3525 = vpop.f32.mrf.mxu0
      %v3526 = vadd.f32 %v3439, %v3525
      %v3527 = vpop.f32.mrf.mxu0
      %3528 = vmatprep.mubr.bf16.mxu0 0
      %3529 = vmatmul.mubr.bf16.gmra.mxu0 %v3421
      %v3530 = vpop.f32.mrf.mxu0
      %v3531 = vadd.f32 %v3439, %v3530
      %v3532 = vpop.f32.mrf.mxu0
      %v3533 = vpop.f32.mrf.mxu0
      %v3534 = vadd.f32 %v3439, %v3533
      %v3535 = vpop.f32.mrf.mxu0
      %3536 = vmatprep.mubr.bf16.mxu0 0
      %3537 = vmatmul.mubr.bf16.gmra.mxu0 %v3422
      %v3538 = vpop.f32.mrf.mxu0
      %v3539 = vadd.f32 %v3439, %v3538
      %v3540 = vpop.f32.mrf.mxu0
      %v3541 = vpop.f32.mrf.mxu0
      %v3542 = vadd.f32 %v3439, %v3541
      %v3543 = vpop.f32.mrf.mxu0
      %3544 = vmatprep.mubr.bf16.mxu0 0
      %3545 = vmatmul.mubr.bf16.gmra.mxu0 %v3423
      %v3546 = vpop.f32.mrf.mxu0
      %v3547 = vadd.f32 %v3439, %v3546
      %v3548 = vpop.f32.mrf.mxu0
      %v3549 = vpop.f32.mrf.mxu0
      %v3550 = vadd.f32 %v3439, %v3549
      %v3551 = vpop.f32.mrf.mxu0
      %3552 = vmatprep.mubr.bf16.mxu0 0
      %3553 = vmatmul.mubr.bf16.gmra.mxu0 %v3424
      %v3554 = vpop.f32.mrf.mxu0
      %v3555 = vadd.f32 %v3439, %v3554
      %v3556 = vpop.f32.mrf.mxu0
      %v3557 = vpop.f32.mrf.mxu0
      %v3558 = vadd.f32 %v3439, %v3557
      %v3559 = vpop.f32.mrf.mxu0
      %3560 = vmatprep.mubr.bf16.mxu0 0
      %3561 = vmatmul.mubr.bf16.gmra.mxu0 %v3425
      %v3562 = vpop.f32.mrf.mxu0
      %v3563 = vadd.f32 %v3439, %v3562
      %v3564 = vpop.f32.mrf.mxu0
      %v3565 = vpop.f32.mrf.mxu0
      %v3566 = vadd.f32 %v3439, %v3565
      %v3567 = vpop.f32.mrf.mxu0
      %3568 = vmatprep.mubr.bf16.mxu0 0
      %3569 = vmatmul.mubr.bf16.gmra.mxu0 %v3426
      %v3570 = vpop.f32.mrf.mxu0
      %v3571 = vadd.f32 %v3439, %v3570
      %v3572 = vpop.f32.mrf.mxu0
      %v3573 = vpop.f32.mrf.mxu0
      %v3574 = vadd.f32 %v3439, %v3573
      %v3575 = vpop.f32.mrf.mxu0
      %3576 = vmatprep.mubr.bf16.mxu0 0
      %3577 = vmatmul.mubr.bf16.gmra.mxu0 %v3427
      %v3578 = vpop.f32.mrf.mxu0
      %v3579 = vadd.f32 %v3439, %v3578
      %v3580 = vpop.f32.mrf.mxu0
      %v3581 = vpop.f32.mrf.mxu0
      %v3582 = vadd.f32 %v3439, %v3581
      %v3583 = vpop.f32.mrf.mxu0
      %3584 = vmatprep.mubr.bf16.mxu0 0
      %3585 = vmatmul.mubr.bf16.gmra.mxu0 %v3428
      %v3586 = vpop.f32.mrf.mxu0
      %v3587 = vadd.f32 %v3439, %v3586
      %v3588 = vpop.f32.mrf.mxu0
      %v3589 = vpop.f32.mrf.mxu0
      %v3590 = vadd.f32 %v3439, %v3589
      %v3591 = vpop.f32.mrf.mxu0
      %3592 = vmatprep.mubr.bf16.mxu0 0
      %3593 = vmatmul.mubr.bf16.gmra.mxu0 %v3429
      %v3594 = vpop.f32.mrf.mxu0
      %v3595 = vadd.f32 %v3439, %v3594
      %v3596 = vpop.f32.mrf.mxu0
      %v3597 = vpop.f32.mrf.mxu0
      %v3598 = vadd.f32 %v3439, %v3597
      %v3599 = vpop.f32.mrf.mxu0
      %3600 = vmatprep.mubr.bf16.mxu0 0
      %3601 = vmatmul.mubr.bf16.gmra.mxu0 %v3430
      %v3602 = vpop.f32.mrf.mxu0
      %v3603 = vadd.f32 %v3439, %v3602
      %v3604 = vpop.f32.mrf.mxu0
      %v3605 = vpop.f32.mrf.mxu0
      %v3606 = vadd.f32 %v3439, %v3605
      %v3607 = vpop.f32.mrf.mxu0
      %3608 = vmatprep.mubr.bf16.mxu0 0
      %3609 = vmatmul.mubr.bf16.gmra.mxu0 %v3431
      %v3610 = vpop.f32.mrf.mxu0
      %v3611 = vadd.f32 %v3439, %v3610
      %v3612 = vpop.f32.mrf.mxu0
      %v3613 = vpop.f32.mrf.mxu0
      %v3614 = vadd.f32 %v3439, %v3613
      %v3615 = vpop.f32.mrf.mxu0
      %3616 = vmatprep.mubr.bf16.mxu0 0
      %3617 = vmatmul.mubr.bf16.gmra.mxu0 %v3432
      %v3618 = vpop.f32.mrf.mxu0
      %v3619 = vadd.f32 %v3439, %v3618
      %v3620 = vpop.f32.mrf.mxu0
      %v3621 = vpop.f32.mrf.mxu0
      %v3622 = vadd.f32 %v3439, %v3621
      %v3623 = vpop.f32.mrf.mxu0
      %3624 = vmatprep.mubr.bf16.mxu0 0
      %3625 = vmatmul.mubr.bf16.gmra.mxu0 %v3433
      %v3626 = vpop.f32.mrf.mxu0
      %v3627 = vadd.f32 %v3439, %v3626
      %v3628 = vpop.f32.mrf.mxu0
      %v3629 = vpop.f32.mrf.mxu0
      %v3630 = vadd.f32 %v3439, %v3629
      %v3631 = vpop.f32.mrf.mxu0
      %3632 = vmatprep.mubr.bf16.mxu0 0
      %3633 = vmatmul.mubr.bf16.gmra.mxu0 %v3434
      %v3634 = vpop.f32.mrf.mxu0
      %v3635 = vadd.f32 %v3439, %v3634
      %v3636 = vpop.f32.mrf.mxu0
      %v3637 = vpop.f32.mrf.mxu0
      %v3638 = vadd.f32 %v3439, %v3637
      %v3639 = vpop.f32.mrf.mxu0
      %3640 = vmatprep.mubr.bf16.mxu0 0
      %3641 = vmatmul.mubr.bf16.gmra.mxu0 %v3435
      %v3642 = vpop.f32.mrf.mxu0
      %v3643 = vadd.f32 %v3439, %v3642
      %v3644 = vpop.f32.mrf.mxu0
      %v3645 = vpop.f32.mrf.mxu0
      %v3646 = vadd.f32 %v3439, %v3645
      %v3647 = vpop.f32.mrf.mxu0
      %3648 = vdwg.mxu0
      %v3649 = vtanh.pop %v3523
      %v3650 = vtanh.pop %v3526
      %v3651 = vtanh.pop %v3531
      %v3652 = vtanh.pop %v3534
      %v3653 = vtanh.pop %v3539
      %v3654 = vtanh.pop %v3542
      %v3655 = vtanh.pop %v3547
      %v3656 = vtanh.pop %v3550
      %v3657 = vtanh.pop %v3555
      %v3658 = vtanh.pop %v3558
      %v3659 = vtanh.pop %v3563
      %v3660 = vtanh.pop %v3566
      %v3661 = vtanh.pop %v3571
      %v3662 = vtanh.pop %v3574
      %v3663 = vtanh.pop %v3579
      %v3664 = vtanh.pop %v3582
      %v3665 = vtanh.pop %v3587
      %v3666 = vtanh.pop %v3590
      %v3667 = vtanh.pop %v3595
      %v3668 = vtanh.pop %v3598
      %v3669 = vtanh.pop %v3603
      %v3670 = vtanh.pop %v3606
      %v3671 = vtanh.pop %v3611
      %v3672 = vtanh.pop %v3614
      %v3673 = vtanh.pop %v3619
      %v3674 = vtanh.pop %v3622
      %v3675 = vtanh.pop %v3627
      %v3676 = vtanh.pop %v3630
      %v3677 = vtanh.pop %v3635
      %v3678 = vtanh.pop %v3638
      %v3679 = vtanh.pop %v3643
      %v3680 = vtanh.pop %v3646
      %v3681 = vlaneseq
      %v3682 = vand.u32 %v3681, 127
      %v3683 = vadd.s32 %v3682, 128
      %v3684 = vmul.u32 %v266, 8
      %v3685 = vmul.u32 %v267, 8
      %v3686 = vmul.u32 %v268, 8
      %v3687 = vmul.u32 %v269, 8
      %vm3688 = vcmp.ge.s32.totalorder %v3682, %v3684
      %vm3689 = vcmp.ge.s32.totalorder %v3683, %v3684
      %vm3690 = vcmp.ge.s32.totalorder %v3682, %v3685
      %vm3691 = vcmp.ge.s32.totalorder %v3683, %v3685
      %vm3692 = vcmp.ge.s32.totalorder %v3682, %v3686
      %vm3693 = vcmp.ge.s32.totalorder %v3683, %v3686
      %vm3694 = vcmp.ge.s32.totalorder %v3682, %v3687
      %vm3695 = vcmp.ge.s32.totalorder %v3683, %v3687
      %v3696 = vadd.s32 %v266, 1
      %v3697 = vadd.s32 %v267, 1
      %v3698 = vadd.s32 %v268, 1
      %v3699 = vadd.s32 %v269, 1
      %v3700 = vmul.u32 %v3696, 8
      %v3701 = vmul.u32 %v3697, 8
      %v3702 = vmul.u32 %v3698, 8
      %v3703 = vmul.u32 %v3699, 8
      %vm3704 = vcmp.lt.s32.totalorder %v3682, %v3700
      %vm3705 = vcmp.lt.s32.totalorder %v3683, %v3700
      %vm3706 = vcmp.lt.s32.totalorder %v3682, %v3701
      %vm3707 = vcmp.lt.s32.totalorder %v3683, %v3701
      %vm3708 = vcmp.lt.s32.totalorder %v3682, %v3702
      %vm3709 = vcmp.lt.s32.totalorder %v3683, %v3702
      %vm3710 = vcmp.lt.s32.totalorder %v3682, %v3703
      %vm3711 = vcmp.lt.s32.totalorder %v3683, %v3703
      %vm3712 = vmand %vm3688, %vm3704
      %vm3713 = vmand %vm3689, %vm3705
      %vm3714 = vmand %vm3690, %vm3706
      %vm3715 = vmand %vm3691, %vm3707
      %vm3716 = vmand %vm3692, %vm3708
      %vm3717 = vmand %vm3693, %vm3709
      %vm3718 = vmand %vm3694, %vm3710
      %vm3719 = vmand %vm3695, %vm3711
      %v3720 = vsel %vm3712, 1, 0
      %v3721 = vsel %vm3713, 1, 0
      %v3722 = vsel %vm3714, 1, 0
      %v3723 = vsel %vm3715, 1, 0
      %v3724 = vsel %vm3716, 1, 0
      %v3725 = vsel %vm3717, 1, 0
      %v3726 = vsel %vm3718, 1, 0
      %v3727 = vsel %vm3719, 1, 0
      %v3728 = vcvt.s32.f32 %v3720
      %v3729 = vcvt.s32.f32 %v3721
      %v3730 = vcvt.s32.f32 %v3722
      %v3731 = vcvt.s32.f32 %v3723
      %v3732 = vcvt.s32.f32 %v3724
      %v3733 = vcvt.s32.f32 %v3725
      %v3734 = vcvt.s32.f32 %v3726
      %v3735 = vcvt.s32.f32 %v3727
      %v3736 = vpack.c.bf16 %v3730, %v3728
      %v3737 = vpack.c.bf16 %v3731, %v3729
      %v3738 = vpack.c.bf16 %v3734, %v3732
      %v3739 = vpack.c.bf16 %v3735, %v3733
      %v3740 = vpack.c.bf16 %v3650, %v3649
      %v3741 = vpack.c.bf16 %v3652, %v3651
      %v3742 = vpack.c.bf16 %v3654, %v3653
      %v3743 = vpack.c.bf16 %v3656, %v3655
      %v3744 = vpack.c.bf16 %v3658, %v3657
      %v3745 = vpack.c.bf16 %v3660, %v3659
      %v3746 = vpack.c.bf16 %v3662, %v3661
      %v3747 = vpack.c.bf16 %v3664, %v3663
      %v3748 = vpack.c.bf16 %v3666, %v3665
      %v3749 = vpack.c.bf16 %v3668, %v3667
      %v3750 = vpack.c.bf16 %v3670, %v3669
      %v3751 = vpack.c.bf16 %v3672, %v3671
      %v3752 = vpack.c.bf16 %v3674, %v3673
      %v3753 = vpack.c.bf16 %v3676, %v3675
      %v3754 = vpack.c.bf16 %v3678, %v3677
      %v3755 = vpack.c.bf16 %v3680, %v3679
      %3756 = vmatprep.subr.bf16.mxu0 0
      %3757 = vmatpush1.bf16.msra.mxu0 %v3747
      %3758 = vmatprep.subr.bf16.mxu0 0
      %3759 = vmatpush1.bf16.msra.mxu0 %v3746
      %3760 = vmatprep.subr.bf16.mxu0 0
      %3761 = vmatpush1.bf16.msra.mxu0 %v3745
      %3762 = vmatprep.subr.bf16.mxu0 0
      %3763 = vmatpush1.bf16.msra.mxu0 %v3744
      %3764 = vmatprep.subr.bf16.mxu0 0
      %3765 = vmatpush1.bf16.msra.mxu0 %v3743
      %3766 = vmatprep.subr.bf16.mxu0 0
      %3767 = vmatpush1.bf16.msra.mxu0 %v3742
      %3768 = vmatprep.subr.bf16.mxu0 0
      %3769 = vmatpush1.bf16.msra.mxu0 %v3741
      %3770 = vmatprep.subr.bf16.mxu0 0
      %3771 = vmatpush1.bf16.msra.mxu0 %v3740
      %3772 = vmatprep.subr.bf16.mxu0 0
      %3773 = vmatpush2.bf16.msra.mxu0 %v3755
      %3774 = vmatprep.subr.bf16.mxu0 0
      %3775 = vmatpush2.bf16.msra.mxu0 %v3754
      %3776 = vmatprep.subr.bf16.mxu0 0
      %3777 = vmatpush2.bf16.msra.mxu0 %v3753
      %3778 = vmatprep.subr.bf16.mxu0 0
      %3779 = vmatpush2.bf16.msra.mxu0 %v3752
      %3780 = vmatprep.subr.bf16.mxu0 0
      %3781 = vmatpush2.bf16.msra.mxu0 %v3751
      %3782 = vmatprep.subr.bf16.mxu0 0
      %3783 = vmatpush2.bf16.msra.mxu0 %v3750
      %3784 = vmatprep.subr.bf16.mxu0 0
      %3785 = vmatpush2.bf16.msra.mxu0 %v3749
      %3786 = vmatprep.subr.bf16.mxu0 0
      %3787 = vmatpush2.bf16.msra.mxu0 %v3748
      %3788 = vmatprep.mubr.bf16.mxu0 %v3737
      %3789 = vmatmul.mubr.bf16.gmra.mxu0 %v3736
      %v3790 = vpop.f32.mrf.mxu0
      %v3791 = vadd.f32 0.0, %v3790
      %v3792 = vpop.f32.mrf.mxu0
      %v3793 = vpop.f32.mrf.mxu0
      %v3794 = vadd.f32 0.0, %v3793
      %v3795 = vpop.f32.mrf.mxu0
      %3796 = vmatprep.mubr.bf16.mxu0 %v3739
      %3797 = vmatmul.mubr.bf16.gmra.mxu0 %v3738
      %v3798 = vpop.f32.mrf.mxu0
      %v3799 = vadd.f32 0.0, %v3798
      %v3800 = vpop.f32.mrf.mxu0
      %v3801 = vpop.f32.mrf.mxu0
      %v3802 = vadd.f32 0.0, %v3801
      %v3803 = vpop.f32.mrf.mxu0
      %3804 = vdwg.mxu0
      %v3805 = vmul.f32 %v3791, 0.125
      %v3806 = vmul.f32 %v3794, 0.125
      %v3807 = vmul.f32 %v3799, 0.125
      %v3808 = vmul.f32 %v3802, 0.125
      %v3809 = vadd.f32 %v3805, 0.54132485
      %v3810 = vadd.f32 %v3806, 0.54132485
      %v3811 = vadd.f32 %v3807, 0.54132485
      %v3812 = vadd.f32 %v3808, 0.54132485
      %v3813 = vmax.f32 %v3809, 0.0
      %v3814 = vmax.f32 %v3810, 0.0
      %v3815 = vmax.f32 %v3811, 0.0
      %v3816 = vmax.f32 %v3812, 0.0
      %v3817 = vand.u32 2147483647, %v3809
      %v3818 = vand.u32 2147483647, %v3810
      %v3819 = vand.u32 2147483647, %v3811
      %v3820 = vand.u32 2147483647, %v3812
      %v3821 = vsub.f32 0.0, %v3817
      %v3822 = vsub.f32 0.0, %v3818
      %v3823 = vsub.f32 0.0, %v3819
      %v3824 = vsub.f32 0.0, %v3820
      %v3825 = vmul.f32 %v3821, 1.442695
      %v3826 = vpow.pop %v3825
      %v3827 = vmul.f32 %v3822, 1.442695
      %v3828 = vpow.pop %v3827
      %v3829 = vmul.f32 %v3823, 1.442695
      %v3830 = vpow.pop %v3829
      %v3831 = vmul.f32 %v3824, 1.442695
      %v3832 = vpow.pop %v3831
      %v3833 = vadd.f32 %v3826, 1.0
      %v3834 = vlog2.pop %v3833
      %v3835 = vmul.f32 %v3834, 0.6931472
      %v3836 = vmul.f32 -0.5, %v3826
      %v3837 = vadd.f32 %v3836, 1.0
      %v3838 = vmul.f32 %v3837, %v3826
      %v3839 = vand.u32 2147483647, %v3826
      %vm3840 = vcmp.lt.f32.partialorder %v3839, 0.0004427343
      %v3841 = vsel %vm3840, %v3838, %v3835
      %v3842 = vadd.f32 %v3828, 1.0
      %v3843 = vlog2.pop %v3842
      %v3844 = vmul.f32 %v3843, 0.6931472
      %v3845 = vmul.f32 -0.5, %v3828
      %v3846 = vadd.f32 %v3845, 1.0
      %v3847 = vmul.f32 %v3846, %v3828
      %v3848 = vand.u32 2147483647, %v3828
      %vm3849 = vcmp.lt.f32.partialorder %v3848, 0.0004427343
      %v3850 = vsel %vm3849, %v3847, %v3844
      %v3851 = vadd.f32 %v3830, 1.0
      %v3852 = vlog2.pop %v3851
      %v3853 = vmul.f32 %v3852, 0.6931472
      %v3854 = vmul.f32 -0.5, %v3830
      %v3855 = vadd.f32 %v3854, 1.0
      %v3856 = vmul.f32 %v3855, %v3830
      %v3857 = vand.u32 2147483647, %v3830
      %vm3858 = vcmp.lt.f32.partialorder %v3857, 0.0004427343
      %v3859 = vsel %vm3858, %v3856, %v3853
      %v3860 = vadd.f32 %v3832, 1.0
      %v3861 = vlog2.pop %v3860
      %v3862 = vmul.f32 %v3861, 0.6931472
      %v3863 = vmul.f32 -0.5, %v3832
      %v3864 = vadd.f32 %v3863, 1.0
      %v3865 = vmul.f32 %v3864, %v3832
      %v3866 = vand.u32 2147483647, %v3832
      %vm3867 = vcmp.lt.f32.partialorder %v3866, 0.0004427343
      %v3868 = vsel %vm3867, %v3865, %v3862
      %v3869 = vadd.f32 %v3813, %v3841
      %v3870 = vadd.f32 %v3814, %v3850
      %v3871 = vadd.f32 %v3815, %v3859
      %v3872 = vadd.f32 %v3816, %v3868
      %v3873 = vmax.f32 %v3869, 0.0001
      %v3874 = vmax.f32 %v3870, 0.0001
      %v3875 = vmax.f32 %v3871, 0.0001
      %v3876 = vmax.f32 %v3872, 0.0001
      %vm3877 = vcmp.lt.s32.totalorder %v3682, 8
      %vm3878 = vcmp.lt.s32.totalorder %v3682, 16
      %v3879 = vsel %vm3878, %v3873, 0.0
      %v3880 = vsel %vm3878, %v3874, 0.0
      %v3881 = vsel %vm3878, %v3875, 0.0
      %v3882 = vsel %vm3878, %v3876, 0.0
      %v3883 = vsel %vm3877, %v3805, %v3879
      %v3884 = vsel %vm3877, %v3806, %v3880
      %v3885 = vsel %vm3877, %v3807, %v3881
      %v3886 = vsel %vm3877, %v3808, %v3882
      %3887 = vst [vmem:[%s260] sm:$0xff] %v3883
      %3888 = vst [vmem:[%s260 + $0x8] sm:$0xff] %v3884
      %3889 = vst [vmem:[%s260 + $0x10] sm:$0xff] %v3885
      %3890 = vst [vmem:[%s260 + $0x18] sm:$0xff] %v3886
      %s3891 = smul.u32 4, %s16
      %p3892 = scmp.lt.s32.totalorder %s3891, 7
      %s3893 = scalar_select %p3892, %s3891, 7
      %s3894 = smul.addr %s3893, 8
      %s3895 = scalar_lea.vmem %s5, %s3894
      // Predicated region
      $region41: #{multinode_actor_forward_batched.1} parent=39 // pred_check
        %p3896 = pneg %p154
      $region42: #{multinode_actor_forward_batched.1} parent=39 // pred_check_branch
        %3898 = sbr.rel (%p3896) target = $region44
      $region43: #{multinode_actor_forward_batched.1} parent=39 // pred_region
        %s3899 = smul.u32 4, %s16
      $region44: #{multinode_actor_forward_batched.1} parent=39 // pred_fallthru
        _
    $region40: #{multinode_actor_forward_batched.1} parent=5 // pred_fallthru
      _
    %p3900 = scmp.le.s32.totalorder 2, %s11
    // Predicated region
    $region45: #{multinode_actor_forward_batched.1} parent=5 // pred_check
      %p3901 = pneg %p3900
    $region46: #{multinode_actor_forward_batched.1} parent=5 // pred_check_branch
      %3903 = sbr.rel (%p3901) target = $region48
    $region47: #{multinode_actor_forward_batched.1} parent=5 // pred_region
      %s3904 = ssub.s32 %s11, 2
      // Predicated region
      $region49: #{multinode_actor_forward_batched.1} parent=47 // pred_check
        %p3905 = pneg %p160
      $region50: #{multinode_actor_forward_batched.1} parent=47 // pred_check_branch
        %3907 = sbr.rel (%p3905) target = $region52
      $region51: #{multinode_actor_forward_batched.1} parent=47 // pred_region
        %s3908 = smul.u32 4, %s17
        %p3909 = scmp.lt.s32.totalorder %s3908, 7
        %s3910 = scalar_select %p3909, %s3908, 7
        %s3911 = smul.addr %s3910, 8
        %s3912 = scalar_lea.vmem %s5, %s3911
      $region52: #{multinode_actor_forward_batched.1} parent=47 // pred_fallthru
        _
    $region48: #{multinode_actor_forward_batched.1} parent=5 // pred_fallthru
      _
  $region6: #{multinode_actor_forward_batched.1} parent=0 // loop_footer
    %s15 = sadd.s32 1, %s11
  $region7: #{multinode_actor_forward_batched.1} parent=0 // loop_footer_branch
    %10 = sbr.rel target = $region3
  $region8: #{multinode_actor_forward_batched.1} parent=0 // loop_exit
    _

</llo_original>
